<compile_context>
chip_gen: v7x
topology: tpu7x:2x2x1
jax: 0.10.0
libtpu: 0.0.40
codegen_flags: <defaults>
</compile_context>

<pallas_src>
import jax
import jax.numpy as jnp
from jax.experimental import pallas as pl
from jax.experimental.pallas import tpu as pltpu

# ----- small, module-consistent hyperparameters -----
DIM_MODEL = 32
NUM_HEADS = 4
HEAD_DIM = DIM_MODEL // NUM_HEADS
NUM_LAYERS = 2
DIM_FF = 64
DIM_INTERFACE = 12
K_QUERY = 8
BATCH = 2
NUM_POINTS = 16
LN_EPS = 1e-5                      # torch.nn.LayerNorm default

# vec64 packing relies on DIM_FF == 2 * DIM_MODEL (both 64-wide rows).
assert DIM_FF == 2 * DIM_MODEL

# Row indices inside the per-layer (10, 32) vector slab.
(_R_SA_OB, _R_G1, _R_BE1, _R_CA_QB, _R_CA_OB,
 _R_G2, _R_BE2, _R_B2, _R_G3, _R_BE3) = range(10)
# Row indices inside the per-layer (2, 64) vector slab.
_R64_CA_KVB, _R64_B1 = 0, 1


# ======================================================================
# Single fused Pallas kernel: decoder stack (+ fused encoder) -> output
# One grid step == one batch element (no cross-batch masking needed).
# ======================================================================
def _fused_forward_kernel(pc_ref, x1_ref,
                          sa_qkv_wt_ref, sa_qkv_b_ref, sa_o_wt_ref,
                          ca_q_wt_ref, ca_kv_wt_ref, ca_o_wt_ref,
                          w1t_ref, w2t_ref,
                          vec32_ref, vec64_ref,
                          out_wt_ref, out_b_ref, o_ref):
    f32 = jnp.float32
    D = DIM_MODEL

    def ln(x, g, b):
        mu = jnp.mean(x, axis=-1, keepdims=True)
        xc = x - mu
        var = jnp.mean(xc * xc, axis=-1, keepdims=True)
        xn = xc * jax.lax.rsqrt(var + LN_EPS)
        return xn if g is None else xn * g + b

    def attend(q, k, v, o_wt, o_b):
        # q is pre-scaled by 1/sqrt(head_dim) via its projection weights/bias.
        heads = []
        for h in range(NUM_HEADS):                       # static unroll
            sl = slice(h * HEAD_DIM, (h + 1) * HEAD_DIM)
            s = jnp.dot(q[:, sl], k[:, sl].T, preferred_element_type=f32)
            s = s - jnp.max(s, axis=-1, keepdims=True)
            p = jnp.exp(s)
            p = p * pl.reciprocal(jnp.sum(p, axis=-1, keepdims=True), approx=True)
            heads.append(jnp.dot(p, v[:, sl], preferred_element_type=f32))
        ctx = jnp.concatenate(heads, axis=-1)            # (Nq, D): lane placement only
        return jnp.dot(ctx, o_wt, preferred_element_type=f32) + o_b

    def v32(l, r):
        return vec32_ref[l, r:r + 1, :]                  # (1, 32) ref slice at use site

    def v64(l, r):
        return vec64_ref[l, r:r + 1, :]                  # (1, 64)

    pc = pc_ref[...]                                     # (N, 3) this example's points
    x = x1_ref[...]                                      # (K, D) post layer-0 SA + LN1 (hoisted)

    for l in range(NUM_LAYERS):                          # static unroll
        if l > 0:
            # --- self-attention: one fused (K,D)@(D,3D) QKV projection ---
            qkv = (jnp.dot(x, sa_qkv_wt_ref[l - 1], preferred_element_type=f32)
                   + sa_qkv_b_ref[l - 1])
            sa = attend(qkv[:, 0:D], qkv[:, D:2 * D], qkv[:, 2 * D:3 * D],
                        sa_o_wt_ref[l - 1], v32(l, _R_SA_OB))
            x = ln(x + sa, v32(l, _R_G1), v32(l, _R_BE1))

        # --- cross-attention: point encoder folded into K|V weights ---
        q = jnp.dot(x, ca_q_wt_ref[l], preferred_element_type=f32) + v32(l, _R_CA_QB)
        kv = (jnp.dot(pc, ca_kv_wt_ref[l], preferred_element_type=f32)
              + v64(l, _R64_CA_KVB))                     # (N, 2D) = K | V
        ca = attend(q, kv[:, 0:D], kv[:, D:2 * D], ca_o_wt_ref[l], v32(l, _R_CA_OB))
        x = ln(x + ca, v32(l, _R_G2), v32(l, _R_BE2))

        # --- feed-forward (ReLU) ---
        h = jnp.dot(x, w1t_ref[l], preferred_element_type=f32) + v64(l, _R64_B1)
        h = jnp.maximum(h, 0.0)
        ff = jnp.dot(h, w2t_ref[l], preferred_element_type=f32) + v32(l, _R_B2)
        if l == NUM_LAYERS - 1:
            x = ln(x + ff, None, None)                   # gain/beta folded into out proj
        else:
            x = ln(x + ff, v32(l, _R_G3), v32(l, _R_BE3))

    # --- output projection (last-LN gain/beta pre-folded) ---
    o_ref[...] = (jnp.dot(x, out_wt_ref[...], preferred_element_type=f32)
                  + out_b_ref[...]).astype(o_ref.dtype)


# ======================================================================
# Host-side helpers for pack-time algebra
# ======================================================================
def _host_ln(x, g, b):
    mu = jnp.mean(x, axis=-1, keepdims=True)
    var = jnp.mean(jnp.square(x - mu), axis=-1, keepdims=True)
    return (x - mu) * jax.lax.rsqrt(var + LN_EPS) * g + b


def _host_mha2d(q_in, kv_in, in_w, in_b, out_w, out_b):
    D, hd = DIM_MODEL, HEAD_DIM
    q = q_in @ in_w[:D].T + in_b[:D]
    k = kv_in @ in_w[D:2 * D].T + in_b[D:2 * D]
    v = kv_in @ in_w[2 * D:].T + in_b[2 * D:]
    qh = q.reshape(-1, NUM_HEADS, hd).transpose(1, 0, 2)
    kh = k.reshape(-1, NUM_HEADS, hd).transpose(1, 0, 2)
    vh = v.reshape(-1, NUM_HEADS, hd).transpose(1, 0, 2)
    s = jnp.einsum("hqd,hkd->hqk", qh, kh) / (float(hd) ** 0.5)
    p = jax.nn.softmax(s, axis=-1)
    o = jnp.einsum("hqk,hkd->hqd", p, vh).transpose(1, 0, 2).reshape(-1, D)
    return o @ out_w.T + out_b


def pack_params(params):
    """Pre-transpose / fuse / fold the weights once on the host.

    * q-projection weights+bias pre-scaled by 1/sqrt(head_dim)
    * self-attn QKV fused along lanes -> (D, 3D)
    * point encoder composed into cross-attn K/V -> (3, 2D)
    * layer-0 self-attention + LN1 precomputed (input independent)
    * last LN gain/beta folded into the output projection
    """
    scale = 1.0 / (float(HEAD_DIM) ** 0.5)
    D = DIM_MODEL
    layers = params["layers"]

    tok = params["token_pool"].astype(jnp.float32)            # (K, D)
    enc_wT = params["enc_w"].T.astype(jnp.float32)            # (3, D)
    enc_b = params["enc_b"].astype(jnp.float32)               # (1, D)

    # ---- hoist layer-0 self-attention + norm1 (depends only on weights) ----
    lp0 = layers[0]
    sa0 = _host_mha2d(tok, tok, lp0["sa_w"], lp0["sa_b"][0], lp0["sa_ow"], lp0["sa_ob"][0])
    x1 = _host_ln(tok + sa0, lp0["g1"][0], lp0["be1"][0])     # (K, D)

    sa_qkv_wt, sa_qkv_b, sa_o_wt = [], [], []
    ca_q_wt, ca_kv_wt, ca_o_wt = [], [], []
    w1t, w2t, vec32, vec64 = [], [], [], []

    for l, lp in enumerate(layers):
        ca_w, ca_b = lp["ca_w"], lp["ca_b"][0]
        wqT, wkT, wvT = ca_w[:D].T, ca_w[D:2 * D].T, ca_w[2 * D:].T
        bq, bk, bv = ca_b[:D], ca_b[D:2 * D], ca_b[2 * D:]

        ca_q_wt.append(wqT * scale)
        # compose the point encoder into cross-attention K/V
        ca_kv_wt.append(jnp.concatenate([enc_wT @ wkT, enc_wT @ wvT], axis=1))   # (3, 2D)
        ca_kv_b = jnp.concatenate([enc_b @ wkT + bk[None], enc_b @ wvT + bv[None]], axis=1)
        ca_o_wt.append(lp["ca_ow"].T)

        if l > 0:  # layer-0 self-attention was hoisted
            sa_w, sa_b = lp["sa_w"], lp["sa_b"][0]
            sa_qkv_wt.append(jnp.concatenate(
                [sa_w[:D].T * scale, sa_w[D:2 * D].T, sa_w[2 * D:].T], axis=1))   # (D, 3D)
            sa_qkv_b.append(jnp.concatenate(
                [sa_b[:D] * scale, sa_b[D:2 * D], sa_b[2 * D:]])[None])          # (1, 3D)
            sa_o_wt.append(lp["sa_ow"].T)

        w1t.append(lp["w1"].T)                                                    # (D, FF)
        w2t.append(lp["w2"].T)                                                    # (FF, D)

        vec32.append(jnp.stack([
            lp["sa_ob"][0], lp["g1"][0], lp["be1"][0],      # unused for l == 0
            bq * scale, lp["ca_ob"][0],
            lp["g2"][0], lp["be2"][0],
            lp["b2"][0], lp["g3"][0], lp["be3"][0],         # last-layer g3/be3 unused (folded)
        ], axis=0))                                                               # (10, D)
        vec64.append(jnp.stack([ca_kv_b[0], lp["b1"][0]], axis=0))                # (2, 64)

    # ---- fold last LayerNorm's gain/beta into the output projection ----
    lpL = layers[-1]
    out_wT = params["out_w"].T.astype(jnp.float32)                                # (D, I)
    g3, be3 = lpL["g3"][0], lpL["be3"][0]
    out_wt = g3[:, None] * out_wT
    out_b = be3[None] @ out_wT + params["out_b"]

    return {
        "x1": x1,                                                                 # (K, D)
        "sa_qkv_wt": jnp.stack(sa_qkv_wt, axis=0),                                # (L-1, D, 3D)
        "sa_qkv_b": jnp.stack(sa_qkv_b, axis=0),                                  # (L-1, 1, 3D)
        "sa_o_wt": jnp.stack(sa_o_wt, axis=0),                                    # (L-1, D, D)
        "ca_q_wt": jnp.stack(ca_q_wt, axis=0),                                    # (L, D, D)
        "ca_kv_wt": jnp.stack(ca_kv_wt, axis=0),                                  # (L, 3, 2D)
        "ca_o_wt": jnp.stack(ca_o_wt, axis=0),                                    # (L, D, D)
        "w1t": jnp.stack(w1t, axis=0),                                            # (L, D, FF)
        "w2t": jnp.stack(w2t, axis=0),                                            # (L, FF, D)
        "vec32": jnp.stack(vec32, axis=0),                                        # (L, 10, D)
        "vec64": jnp.stack(vec64, axis=0),                                        # (L, 2, 64)
        "out_wt": out_wt,                                                         # (D, I)
        "out_b": out_b,                                                           # (1, I)
    }


# ======================================================================
# Wrapper: single pallas_call, grid over batch examples
# ======================================================================
def hand_interface_transformer(object_pc, packed):
    B, N, _ = object_pc.shape
    assert N == NUM_POINTS
    pc = object_pc.astype(jnp.float32)

    weight_inputs = (packed["x1"], packed["sa_qkv_wt"], packed["sa_qkv_b"],
                     packed["sa_o_wt"], packed["ca_q_wt"], packed["ca_kv_wt"],
                     packed["ca_o_wt"], packed["w1t"], packed["w2t"],
                     packed["vec32"], packed["vec64"],
                     packed["out_wt"], packed["out_b"])

    def const_spec(a):
        nd = a.ndim
        return pl.BlockSpec(a.shape, lambda b, _n=nd: (0,) * _n)

    out = pl.pallas_call(
        _fused_forward_kernel,
        out_shape=jax.ShapeDtypeStruct((B, K_QUERY, DIM_INTERFACE), jnp.float32),
        grid=(B,),
        in_specs=[pl.BlockSpec((None, NUM_POINTS, 3), lambda b: (b, 0, 0))]
                 + [const_spec(a) for a in weight_inputs],
        out_specs=pl.BlockSpec((None, K_QUERY, DIM_INTERFACE), lambda b: (b, 0, 0)),
        compiler_params=pltpu.CompilerParams(dimension_semantics=("parallel",)),
    )(pc, *weight_inputs)
    return out


# ======================================================================
# Pure-JAX reference (unpacked params) for numerical verification
# ======================================================================
def _ref_ln(x, g, b):
    mu = jnp.mean(x, axis=-1, keepdims=True)
    var = jnp.mean(jnp.square(x - mu), axis=-1, keepdims=True)
    return (x - mu) * jax.lax.rsqrt(var + LN_EPS) * g + b


def _ref_mha(q_in, kv_in, in_w, in_b, out_w, out_b):
    D = q_in.shape[-1]
    hd = D // NUM_HEADS
    q = q_in @ in_w[:D].T + in_b[:D]
    k = kv_in @ in_w[D:2 * D].T + in_b[D:2 * D]
    v = kv_in @ in_w[2 * D:].T + in_b[2 * D:]
    B, K, _ = q.shape
    S = k.shape[1]
    qh = q.reshape(B, K, NUM_HEADS, hd).transpose(0, 2, 1, 3)
    kh = k.reshape(B, S, NUM_HEADS, hd).transpose(0, 2, 1, 3)
    vh = v.reshape(B, S, NUM_HEADS, hd).transpose(0, 2, 1, 3)
    s = jnp.einsum("bhkd,bhsd->bhks", qh, kh) / (float(hd) ** 0.5)
    p = jax.nn.softmax(s, axis=-1)
    o = jnp.einsum("bhks,bhsd->bhkd", p, vh).transpose(0, 2, 1, 3).reshape(B, K, D)
    return o @ out_w.T + out_b


def reference_forward(object_pc, params):
    B = object_pc.shape[0]
    memory = object_pc @ params["enc_w"].T + params["enc_b"][0]
    x = jnp.broadcast_to(params["token_pool"][None], (B, K_QUERY, DIM_MODEL)).astype(jnp.float32)
    for lp in params["layers"]:
        sa = _ref_mha(x, x, lp["sa_w"], lp["sa_b"][0], lp["sa_ow"], lp["sa_ob"][0])
        x = _ref_ln(x + sa, lp["g1"][0], lp["be1"][0])
        ca = _ref_mha(x, memory, lp["ca_w"], lp["ca_b"][0], lp["ca_ow"], lp["ca_ob"][0])
        x = _ref_ln(x + ca, lp["g2"][0], lp["be2"][0])
        h = jax.nn.relu(x @ lp["w1"].T + lp["b1"][0])
        ff = h @ lp["w2"].T + lp["b2"][0]
        x = _ref_ln(x + ff, lp["g3"][0], lp["be3"][0])
    return x @ params["out_w"].T + params["out_b"][0]


# ======================================================================
# Deterministic parameter initialization (synthetic; no checkpoint load)
# ======================================================================
def init_params(key):
    keys = iter(jax.random.split(key, 128))

    def w(shape, scale=0.02):
        return (scale * jax.random.normal(next(keys), shape)).astype(jnp.float32)

    params = {
        "token_pool": w((K_QUERY, DIM_MODEL), 1.0),     # nn.Embedding ~ N(0, 1)
        "enc_w": w((DIM_MODEL, 3)),
        "enc_b": w((1, DIM_MODEL)),
        "out_w": w((DIM_INTERFACE, DIM_MODEL)),
        "out_b": w((1, DIM_INTERFACE)),
        "layers": [],
    }
    for _ in range(NUM_LAYERS):
        params["layers"].append(dict(
            sa_w=w((3 * DIM_MODEL, DIM_MODEL)), sa_b=w((1, 3 * DIM_MODEL)),
            sa_ow=w((DIM_MODEL, DIM_MODEL)), sa_ob=w((1, DIM_MODEL)),
            ca_w=w((3 * DIM_MODEL, DIM_MODEL)), ca_b=w((1, 3 * DIM_MODEL)),
            ca_ow=w((DIM_MODEL, DIM_MODEL)), ca_ob=w((1, DIM_MODEL)),
            w1=w((DIM_FF, DIM_MODEL)), b1=w((1, DIM_FF)),
            w2=w((DIM_MODEL, DIM_FF)), b2=w((1, DIM_MODEL)),
            g1=jnp.ones((1, DIM_MODEL), jnp.float32), be1=jnp.zeros((1, DIM_MODEL), jnp.float32),
            g2=jnp.ones((1, DIM_MODEL), jnp.float32), be2=jnp.zeros((1, DIM_MODEL), jnp.float32),
            g3=jnp.ones((1, DIM_MODEL), jnp.float32), be3=jnp.zeros((1, DIM_MODEL), jnp.float32),
        ))
    return params


if __name__ == "__main__":
    key = jax.random.PRNGKey(0)
    pkey, dkey = jax.random.split(key)
    params = init_params(pkey)
    packed = pack_params(params)
    object_pc = jax.random.normal(dkey, (BATCH, NUM_POINTS, 3), dtype=jnp.float32)

    out = hand_interface_transformer(object_pc, packed)
    out = jax.block_until_ready(out)
    assert out.shape == (BATCH, K_QUERY, DIM_INTERFACE), out.shape

    ref = jax.block_until_ready(reference_forward(object_pc, params))
    # approx reciprocal in the kernel softmax -> slightly looser bound
    if not bool(jnp.allclose(out, ref, rtol=2e-3, atol=2e-3)):
        raise AssertionError("Pallas kernel output mismatch vs pure-JAX reference")

    print("KERNEL_OK")
</pallas_src>

<mosaic_0001>
module attributes {stable_mosaic.version = 11 : i64} {
  func.func @_fused_forward_kernel(%arg0: i32, %arg1: memref<1x16x3xf32, #tpu.memory_space<vmem>>, %arg2: memref<8x32xf32, #tpu.memory_space<vmem>>, %arg3: memref<1x32x96xf32, #tpu.memory_space<vmem>>, %arg4: memref<1x1x96xf32, #tpu.memory_space<vmem>>, %arg5: memref<1x32x32xf32, #tpu.memory_space<vmem>>, %arg6: memref<2x32x32xf32, #tpu.memory_space<vmem>>, %arg7: memref<2x3x64xf32, #tpu.memory_space<vmem>>, %arg8: memref<2x32x32xf32, #tpu.memory_space<vmem>>, %arg9: memref<2x32x64xf32, #tpu.memory_space<vmem>>, %arg10: memref<2x64x32xf32, #tpu.memory_space<vmem>>, %arg11: memref<2x10x32xf32, #tpu.memory_space<vmem>>, %arg12: memref<2x2x64xf32, #tpu.memory_space<vmem>>, %arg13: memref<32x12xf32, #tpu.memory_space<vmem>>, %arg14: memref<1x12xf32, #tpu.memory_space<vmem>>, %arg15: memref<1x8x12xf32, #tpu.memory_space<vmem>>) attributes {dimension_semantics = [#tpu.dimension_semantics<parallel>], iteration_bounds = array<i64: 2>, scalar_prefetch = 0 : i64, scratch_operands = 0 : i64, tpu.core_type = #tpu.core_type<tc>, window_params = [{transform_indices = @transform_0, window_bounds = array<i64: 1, 16, 3>}, {pipeline_mode = #tpu.pipeline_mode<synchronous>, transform_indices = @transform_1, window_bounds = array<i64: 8, 32>}, {pipeline_mode = #tpu.pipeline_mode<synchronous>, transform_indices = @transform_2, window_bounds = array<i64: 1, 32, 96>}, {pipeline_mode = #tpu.pipeline_mode<synchronous>, transform_indices = @transform_3, window_bounds = array<i64: 1, 1, 96>}, {pipeline_mode = #tpu.pipeline_mode<synchronous>, transform_indices = @transform_4, window_bounds = array<i64: 1, 32, 32>}, {pipeline_mode = #tpu.pipeline_mode<synchronous>, transform_indices = @transform_5, window_bounds = array<i64: 2, 32, 32>}, {pipeline_mode = #tpu.pipeline_mode<synchronous>, transform_indices = @transform_6, window_bounds = array<i64: 2, 3, 64>}, {pipeline_mode = #tpu.pipeline_mode<synchronous>, transform_indices = @transform_7, window_bounds = array<i64: 2, 32, 32>}, {pipeline_mode = #tpu.pipeline_mode<synchronous>, transform_indices = @transform_8, window_bounds = array<i64: 2, 32, 64>}, {pipeline_mode = #tpu.pipeline_mode<synchronous>, transform_indices = @transform_9, window_bounds = array<i64: 2, 64, 32>}, {pipeline_mode = #tpu.pipeline_mode<synchronous>, transform_indices = @transform_10, window_bounds = array<i64: 2, 10, 32>}, {pipeline_mode = #tpu.pipeline_mode<synchronous>, transform_indices = @transform_11, window_bounds = array<i64: 2, 2, 64>}, {pipeline_mode = #tpu.pipeline_mode<synchronous>, transform_indices = @transform_12, window_bounds = array<i64: 32, 12>}, {pipeline_mode = #tpu.pipeline_mode<synchronous>, transform_indices = @transform_13, window_bounds = array<i64: 1, 12>}, {transform_indices = @transform_14, window_bounds = array<i64: 1, 8, 12>}]} {
    %c0 = arith.constant 0 : index
    %c0_0 = arith.constant 0 : index
    %c0_1 = arith.constant 0 : index
    %0 = vector.load %arg1[%c0, %c0_0, %c0_1] : memref<1x16x3xf32, #tpu.memory_space<vmem>>, vector<1x16x3xf32>
    %1 = vector.shape_cast %0 : vector<1x16x3xf32> to vector<16x3xf32>
    %c0_2 = arith.constant 0 : index
    %c0_3 = arith.constant 0 : index
    %2 = vector.load %arg2[%c0_2, %c0_3] : memref<8x32xf32, #tpu.memory_space<vmem>>, vector<8x32xf32>
    %c0_4 = arith.constant 0 : index
    %c0_5 = arith.constant 0 : index
    %c0_6 = arith.constant 0 : index
    %3 = vector.load %arg6[%c0_4, %c0_5, %c0_6] : memref<2x32x32xf32, #tpu.memory_space<vmem>>, vector<1x32x32xf32>
    %4 = vector.shape_cast %3 : vector<1x32x32xf32> to vector<32x32xf32>
    %cst = arith.constant dense<0.000000e+00> : vector<8x32xf32>
    %5 = tpu.matmul %2, %4, %cst {dimension_numbers = #tpu.dot_dimension_numbers<[1], [0], [0], [1], [0, 0, 1, 1], [], []>} : vector<8x32xf32>, vector<32x32xf32>, vector<8x32xf32> -> vector<8x32xf32>
    %c0_7 = arith.constant 0 : index
    %c3 = arith.constant 3 : index
    %c0_8 = arith.constant 0 : index
    %6 = vector.load %arg11[%c0_7, %c3, %c0_8] : memref<2x10x32xf32, #tpu.memory_space<vmem>>, vector<1x1x32xf32>
    %7 = vector.shape_cast %6 : vector<1x1x32xf32> to vector<1x32xf32>
    %8 = vector.broadcast %7 : vector<1x32xf32> to vector<8x32xf32>
    %9 = arith.addf %5, %8 : vector<8x32xf32>
    %c0_9 = arith.constant 0 : index
    %c0_10 = arith.constant 0 : index
    %c0_11 = arith.constant 0 : index
    %10 = vector.load %arg7[%c0_9, %c0_10, %c0_11] : memref<2x3x64xf32, #tpu.memory_space<vmem>>, vector<1x3x64xf32>
    %11 = vector.shape_cast %10 : vector<1x3x64xf32> to vector<3x64xf32>
    %cst_12 = arith.constant dense<0.000000e+00> : vector<16x64xf32>
    %12 = tpu.matmul %1, %11, %cst_12 {dimension_numbers = #tpu.dot_dimension_numbers<[1], [0], [0], [1], [0, 0, 1, 1], [], []>} : vector<16x3xf32>, vector<3x64xf32>, vector<16x64xf32> -> vector<16x64xf32>
    %c0_13 = arith.constant 0 : index
    %c0_14 = arith.constant 0 : index
    %c0_15 = arith.constant 0 : index
    %13 = vector.load %arg12[%c0_13, %c0_14, %c0_15] : memref<2x2x64xf32, #tpu.memory_space<vmem>>, vector<1x1x64xf32>
    %14 = vector.shape_cast %13 : vector<1x1x64xf32> to vector<1x64xf32>
    %15 = vector.broadcast %14 : vector<1x64xf32> to vector<16x64xf32>
    %16 = arith.addf %12, %15 : vector<16x64xf32>
    %17 = vector.extract_strided_slice %16 {offsets = [0, 0], sizes = [16, 32], strides = [1, 1]} : vector<16x64xf32> to vector<16x32xf32>
    %18 = vector.extract_strided_slice %16 {offsets = [0, 32], sizes = [16, 32], strides = [1, 1]} : vector<16x64xf32> to vector<16x32xf32>
    %c0_16 = arith.constant 0 : index
    %c0_17 = arith.constant 0 : index
    %c0_18 = arith.constant 0 : index
    %19 = vector.load %arg8[%c0_16, %c0_17, %c0_18] : memref<2x32x32xf32, #tpu.memory_space<vmem>>, vector<1x32x32xf32>
    %20 = vector.shape_cast %19 : vector<1x32x32xf32> to vector<32x32xf32>
    %c0_19 = arith.constant 0 : index
    %c4 = arith.constant 4 : index
    %c0_20 = arith.constant 0 : index
    %21 = vector.load %arg11[%c0_19, %c4, %c0_20] : memref<2x10x32xf32, #tpu.memory_space<vmem>>, vector<1x1x32xf32>
    %22 = vector.shape_cast %21 : vector<1x1x32xf32> to vector<1x32xf32>
    %23 = vector.extract_strided_slice %9 {offsets = [0, 0], sizes = [8, 8], strides = [1, 1]} : vector<8x32xf32> to vector<8x8xf32>
    %24 = vector.extract_strided_slice %17 {offsets = [0, 0], sizes = [16, 8], strides = [1, 1]} : vector<16x32xf32> to vector<16x8xf32>
    %25 = tpu.transpose %24, [1, 0] : vector<16x8xf32> -> vector<8x16xf32>
    %cst_21 = arith.constant dense<0.000000e+00> : vector<8x16xf32>
    %26 = tpu.matmul %23, %25, %cst_21 {dimension_numbers = #tpu.dot_dimension_numbers<[1], [0], [0], [1], [0, 0, 1, 1], [], []>} : vector<8x8xf32>, vector<8x16xf32>, vector<8x16xf32> -> vector<8x16xf32>
    %cst_22 = arith.constant dense<0xFF800000> : vector<8xf32>
    %27 = vector.multi_reduction <maximumf>, %26, %cst_22 [1] : vector<8x16xf32> to vector<8xf32>
    %28 = vector.shape_cast %27 : vector<8xf32> to vector<8x1xf32>
    %29 = vector.broadcast %28 : vector<8x1xf32> to vector<8x16xf32>
    %30 = arith.subf %26, %29 : vector<8x16xf32>
    %31 = math.exp %30 : vector<8x16xf32>
    %cst_23 = arith.constant dense<0.000000e+00> : vector<8xf32>
    %32 = vector.multi_reduction <add>, %31, %cst_23 [1] : vector<8x16xf32> to vector<8xf32>
    %33 = vector.shape_cast %32 : vector<8xf32> to vector<8x1xf32>
    %34 = tpu.reciprocal %33 {approx = true} : vector<8x1xf32> -> vector<8x1xf32>
    %35 = vector.broadcast %34 : vector<8x1xf32> to vector<8x16xf32>
    %36 = arith.mulf %31, %35 : vector<8x16xf32>
    %37 = vector.extract_strided_slice %18 {offsets = [0, 0], sizes = [16, 8], strides = [1, 1]} : vector<16x32xf32> to vector<16x8xf32>
    %cst_24 = arith.constant dense<0.000000e+00> : vector<8x8xf32>
    %38 = tpu.matmul %36, %37, %cst_24 {dimension_numbers = #tpu.dot_dimension_numbers<[1], [0], [0], [1], [0, 0, 1, 1], [], []>} : vector<8x16xf32>, vector<16x8xf32>, vector<8x8xf32> -> vector<8x8xf32>
    %39 = vector.extract_strided_slice %9 {offsets = [0, 8], sizes = [8, 8], strides = [1, 1]} : vector<8x32xf32> to vector<8x8xf32>
    %40 = vector.extract_strided_slice %17 {offsets = [0, 8], sizes = [16, 8], strides = [1, 1]} : vector<16x32xf32> to vector<16x8xf32>
    %41 = tpu.transpose %40, [1, 0] : vector<16x8xf32> -> vector<8x16xf32>
    %cst_25 = arith.constant dense<0.000000e+00> : vector<8x16xf32>
    %42 = tpu.matmul %39, %41, %cst_25 {dimension_numbers = #tpu.dot_dimension_numbers<[1], [0], [0], [1], [0, 0, 1, 1], [], []>} : vector<8x8xf32>, vector<8x16xf32>, vector<8x16xf32> -> vector<8x16xf32>
    %cst_26 = arith.constant dense<0xFF800000> : vector<8xf32>
    %43 = vector.multi_reduction <maximumf>, %42, %cst_26 [1] : vector<8x16xf32> to vector<8xf32>
    %44 = vector.shape_cast %43 : vector<8xf32> to vector<8x1xf32>
    %45 = vector.broadcast %44 : vector<8x1xf32> to vector<8x16xf32>
    %46 = arith.subf %42, %45 : vector<8x16xf32>
    %47 = math.exp %46 : vector<8x16xf32>
    %cst_27 = arith.constant dense<0.000000e+00> : vector<8xf32>
    %48 = vector.multi_reduction <add>, %47, %cst_27 [1] : vector<8x16xf32> to vector<8xf32>
    %49 = vector.shape_cast %48 : vector<8xf32> to vector<8x1xf32>
    %50 = tpu.reciprocal %49 {approx = true} : vector<8x1xf32> -> vector<8x1xf32>
    %51 = vector.broadcast %50 : vector<8x1xf32> to vector<8x16xf32>
    %52 = arith.mulf %47, %51 : vector<8x16xf32>
    %53 = vector.extract_strided_slice %18 {offsets = [0, 8], sizes = [16, 8], strides = [1, 1]} : vector<16x32xf32> to vector<16x8xf32>
    %cst_28 = arith.constant dense<0.000000e+00> : vector<8x8xf32>
    %54 = tpu.matmul %52, %53, %cst_28 {dimension_numbers = #tpu.dot_dimension_numbers<[1], [0], [0], [1], [0, 0, 1, 1], [], []>} : vector<8x16xf32>, vector<16x8xf32>, vector<8x8xf32> -> vector<8x8xf32>
    %55 = vector.extract_strided_slice %9 {offsets = [0, 16], sizes = [8, 8], strides = [1, 1]} : vector<8x32xf32> to vector<8x8xf32>
    %56 = vector.extract_strided_slice %17 {offsets = [0, 16], sizes = [16, 8], strides = [1, 1]} : vector<16x32xf32> to vector<16x8xf32>
    %57 = tpu.transpose %56, [1, 0] : vector<16x8xf32> -> vector<8x16xf32>
    %cst_29 = arith.constant dense<0.000000e+00> : vector<8x16xf32>
    %58 = tpu.matmul %55, %57, %cst_29 {dimension_numbers = #tpu.dot_dimension_numbers<[1], [0], [0], [1], [0, 0, 1, 1], [], []>} : vector<8x8xf32>, vector<8x16xf32>, vector<8x16xf32> -> vector<8x16xf32>
    %cst_30 = arith.constant dense<0xFF800000> : vector<8xf32>
    %59 = vector.multi_reduction <maximumf>, %58, %cst_30 [1] : vector<8x16xf32> to vector<8xf32>
    %60 = vector.shape_cast %59 : vector<8xf32> to vector<8x1xf32>
    %61 = vector.broadcast %60 : vector<8x1xf32> to vector<8x16xf32>
    %62 = arith.subf %58, %61 : vector<8x16xf32>
    %63 = math.exp %62 : vector<8x16xf32>
    %cst_31 = arith.constant dense<0.000000e+00> : vector<8xf32>
    %64 = vector.multi_reduction <add>, %63, %cst_31 [1] : vector<8x16xf32> to vector<8xf32>
    %65 = vector.shape_cast %64 : vector<8xf32> to vector<8x1xf32>
    %66 = tpu.reciprocal %65 {approx = true} : vector<8x1xf32> -> vector<8x1xf32>
    %67 = vector.broadcast %66 : vector<8x1xf32> to vector<8x16xf32>
    %68 = arith.mulf %63, %67 : vector<8x16xf32>
    %69 = vector.extract_strided_slice %18 {offsets = [0, 16], sizes = [16, 8], strides = [1, 1]} : vector<16x32xf32> to vector<16x8xf32>
    %cst_32 = arith.constant dense<0.000000e+00> : vector<8x8xf32>
    %70 = tpu.matmul %68, %69, %cst_32 {dimension_numbers = #tpu.dot_dimension_numbers<[1], [0], [0], [1], [0, 0, 1, 1], [], []>} : vector<8x16xf32>, vector<16x8xf32>, vector<8x8xf32> -> vector<8x8xf32>
    %71 = vector.extract_strided_slice %9 {offsets = [0, 24], sizes = [8, 8], strides = [1, 1]} : vector<8x32xf32> to vector<8x8xf32>
    %72 = vector.extract_strided_slice %17 {offsets = [0, 24], sizes = [16, 8], strides = [1, 1]} : vector<16x32xf32> to vector<16x8xf32>
    %73 = tpu.transpose %72, [1, 0] : vector<16x8xf32> -> vector<8x16xf32>
    %cst_33 = arith.constant dense<0.000000e+00> : vector<8x16xf32>
    %74 = tpu.matmul %71, %73, %cst_33 {dimension_numbers = #tpu.dot_dimension_numbers<[1], [0], [0], [1], [0, 0, 1, 1], [], []>} : vector<8x8xf32>, vector<8x16xf32>, vector<8x16xf32> -> vector<8x16xf32>
    %cst_34 = arith.constant dense<0xFF800000> : vector<8xf32>
    %75 = vector.multi_reduction <maximumf>, %74, %cst_34 [1] : vector<8x16xf32> to vector<8xf32>
    %76 = vector.shape_cast %75 : vector<8xf32> to vector<8x1xf32>
    %77 = vector.broadcast %76 : vector<8x1xf32> to vector<8x16xf32>
    %78 = arith.subf %74, %77 : vector<8x16xf32>
    %79 = math.exp %78 : vector<8x16xf32>
    %cst_35 = arith.constant dense<0.000000e+00> : vector<8xf32>
    %80 = vector.multi_reduction <add>, %79, %cst_35 [1] : vector<8x16xf32> to vector<8xf32>
    %81 = vector.shape_cast %80 : vector<8xf32> to vector<8x1xf32>
    %82 = tpu.reciprocal %81 {approx = true} : vector<8x1xf32> -> vector<8x1xf32>
    %83 = vector.broadcast %82 : vector<8x1xf32> to vector<8x16xf32>
    %84 = arith.mulf %79, %83 : vector<8x16xf32>
    %85 = vector.extract_strided_slice %18 {offsets = [0, 24], sizes = [16, 8], strides = [1, 1]} : vector<16x32xf32> to vector<16x8xf32>
    %cst_36 = arith.constant dense<0.000000e+00> : vector<8x8xf32>
    %86 = tpu.matmul %84, %85, %cst_36 {dimension_numbers = #tpu.dot_dimension_numbers<[1], [0], [0], [1], [0, 0, 1, 1], [], []>} : vector<8x16xf32>, vector<16x8xf32>, vector<8x8xf32> -> vector<8x8xf32>
    %87 = tpu.concatenate %38, %54, %70, %86 in 1 : vector<8x8xf32>, vector<8x8xf32>, vector<8x8xf32>, vector<8x8xf32> -> vector<8x32xf32>
    %cst_37 = arith.constant dense<0.000000e+00> : vector<8x32xf32>
    %88 = tpu.matmul %87, %20, %cst_37 {dimension_numbers = #tpu.dot_dimension_numbers<[1], [0], [0], [1], [0, 0, 1, 1], [], []>} : vector<8x32xf32>, vector<32x32xf32>, vector<8x32xf32> -> vector<8x32xf32>
    %89 = vector.broadcast %22 : vector<1x32xf32> to vector<8x32xf32>
    %90 = arith.addf %88, %89 : vector<8x32xf32>
    %91 = arith.addf %2, %90 : vector<8x32xf32>
    %c0_38 = arith.constant 0 : index
    %c5 = arith.constant 5 : index
    %c0_39 = arith.constant 0 : index
    %92 = vector.load %arg11[%c0_38, %c5, %c0_39] : memref<2x10x32xf32, #tpu.memory_space<vmem>>, vector<1x1x32xf32>
    %93 = vector.shape_cast %92 : vector<1x1x32xf32> to vector<1x32xf32>
    %c0_40 = arith.constant 0 : index
    %c6 = arith.constant 6 : index
    %c0_41 = arith.constant 0 : index
    %94 = vector.load %arg11[%c0_40, %c6, %c0_41] : memref<2x10x32xf32, #tpu.memory_space<vmem>>, vector<1x1x32xf32>
    %95 = vector.shape_cast %94 : vector<1x1x32xf32> to vector<1x32xf32>
    %cst_42 = arith.constant dense<0.000000e+00> : vector<8xf32>
    %96 = vector.multi_reduction <add>, %91, %cst_42 [1] : vector<8x32xf32> to vector<8xf32>
    %97 = vector.shape_cast %96 : vector<8xf32> to vector<8x1xf32>
    %cst_43 = arith.constant 3.200000e+01 : f32
    %98 = vector.broadcast %cst_43 : f32 to vector<8x1xf32>
    %99 = arith.divf %97, %98 : vector<8x1xf32>
    %100 = vector.broadcast %99 : vector<8x1xf32> to vector<8x32xf32>
    %101 = arith.subf %91, %100 : vector<8x32xf32>
    %102 = arith.mulf %101, %101 : vector<8x32xf32>
    %cst_44 = arith.constant dense<0.000000e+00> : vector<8xf32>
    %103 = vector.multi_reduction <add>, %102, %cst_44 [1] : vector<8x32xf32> to vector<8xf32>
    %104 = vector.shape_cast %103 : vector<8xf32> to vector<8x1xf32>
    %cst_45 = arith.constant 3.200000e+01 : f32
    %105 = vector.broadcast %cst_45 : f32 to vector<8x1xf32>
    %106 = arith.divf %104, %105 : vector<8x1xf32>
    %cst_46 = arith.constant 9.99999974E-6 : f32
    %107 = vector.broadcast %cst_46 : f32 to vector<8x1xf32>
    %108 = arith.addf %106, %107 : vector<8x1xf32>
    %109 = math.rsqrt %108 : vector<8x1xf32>
    %110 = vector.broadcast %109 : vector<8x1xf32> to vector<8x32xf32>
    %111 = arith.mulf %101, %110 : vector<8x32xf32>
    %112 = vector.broadcast %93 : vector<1x32xf32> to vector<8x32xf32>
    %113 = arith.mulf %111, %112 : vector<8x32xf32>
    %114 = vector.broadcast %95 : vector<1x32xf32> to vector<8x32xf32>
    %115 = arith.addf %113, %114 : vector<8x32xf32>
    %c0_47 = arith.constant 0 : index
    %c0_48 = arith.constant 0 : index
    %c0_49 = arith.constant 0 : index
    %116 = vector.load %arg9[%c0_47, %c0_48, %c0_49] : memref<2x32x64xf32, #tpu.memory_space<vmem>>, vector<1x32x64xf32>
    %117 = vector.shape_cast %116 : vector<1x32x64xf32> to vector<32x64xf32>
    %cst_50 = arith.constant dense<0.000000e+00> : vector<8x64xf32>
    %118 = tpu.matmul %115, %117, %cst_50 {dimension_numbers = #tpu.dot_dimension_numbers<[1], [0], [0], [1], [0, 0, 1, 1], [], []>} : vector<8x32xf32>, vector<32x64xf32>, vector<8x64xf32> -> vector<8x64xf32>
    %c0_51 = arith.constant 0 : index
    %c1 = arith.constant 1 : index
    %c0_52 = arith.constant 0 : index
    %119 = vector.load %arg12[%c0_51, %c1, %c0_52] : memref<2x2x64xf32, #tpu.memory_space<vmem>>, vector<1x1x64xf32>
    %120 = vector.shape_cast %119 : vector<1x1x64xf32> to vector<1x64xf32>
    %121 = vector.broadcast %120 : vector<1x64xf32> to vector<8x64xf32>
    %122 = arith.addf %118, %121 : vector<8x64xf32>
    %cst_53 = arith.constant 0.000000e+00 : f32
    %123 = vector.broadcast %cst_53 : f32 to vector<8x64xf32>
    %124 = arith.maximumf %122, %123 : vector<8x64xf32>
    %c0_54 = arith.constant 0 : index
    %c0_55 = arith.constant 0 : index
    %c0_56 = arith.constant 0 : index
    %125 = vector.load %arg10[%c0_54, %c0_55, %c0_56] : memref<2x64x32xf32, #tpu.memory_space<vmem>>, vector<1x64x32xf32>
    %126 = vector.shape_cast %125 : vector<1x64x32xf32> to vector<64x32xf32>
    %cst_57 = arith.constant dense<0.000000e+00> : vector<8x32xf32>
    %127 = tpu.matmul %124, %126, %cst_57 {dimension_numbers = #tpu.dot_dimension_numbers<[1], [0], [0], [1], [0, 0, 1, 1], [], []>} : vector<8x64xf32>, vector<64x32xf32>, vector<8x32xf32> -> vector<8x32xf32>
    %c0_58 = arith.constant 0 : index
    %c7 = arith.constant 7 : index
    %c0_59 = arith.constant 0 : index
    %128 = vector.load %arg11[%c0_58, %c7, %c0_59] : memref<2x10x32xf32, #tpu.memory_space<vmem>>, vector<1x1x32xf32>
    %129 = vector.shape_cast %128 : vector<1x1x32xf32> to vector<1x32xf32>
    %130 = vector.broadcast %129 : vector<1x32xf32> to vector<8x32xf32>
    %131 = arith.addf %127, %130 : vector<8x32xf32>
    %132 = arith.addf %115, %131 : vector<8x32xf32>
    %c0_60 = arith.constant 0 : index
    %c8 = arith.constant 8 : index
    %c0_61 = arith.constant 0 : index
    %133 = vector.load %arg11[%c0_60, %c8, %c0_61] : memref<2x10x32xf32, #tpu.memory_space<vmem>>, vector<1x1x32xf32>
    %134 = vector.shape_cast %133 : vector<1x1x32xf32> to vector<1x32xf32>
    %c0_62 = arith.constant 0 : index
    %c9 = arith.constant 9 : index
    %c0_63 = arith.constant 0 : index
    %135 = vector.load %arg11[%c0_62, %c9, %c0_63] : memref<2x10x32xf32, #tpu.memory_space<vmem>>, vector<1x1x32xf32>
    %136 = vector.shape_cast %135 : vector<1x1x32xf32> to vector<1x32xf32>
    %cst_64 = arith.constant dense<0.000000e+00> : vector<8xf32>
    %137 = vector.multi_reduction <add>, %132, %cst_64 [1] : vector<8x32xf32> to vector<8xf32>
    %138 = vector.shape_cast %137 : vector<8xf32> to vector<8x1xf32>
    %cst_65 = arith.constant 3.200000e+01 : f32
    %139 = vector.broadcast %cst_65 : f32 to vector<8x1xf32>
    %140 = arith.divf %138, %139 : vector<8x1xf32>
    %141 = vector.broadcast %140 : vector<8x1xf32> to vector<8x32xf32>
    %142 = arith.subf %132, %141 : vector<8x32xf32>
    %143 = arith.mulf %142, %142 : vector<8x32xf32>
    %cst_66 = arith.constant dense<0.000000e+00> : vector<8xf32>
    %144 = vector.multi_reduction <add>, %143, %cst_66 [1] : vector<8x32xf32> to vector<8xf32>
    %145 = vector.shape_cast %144 : vector<8xf32> to vector<8x1xf32>
    %cst_67 = arith.constant 3.200000e+01 : f32
    %146 = vector.broadcast %cst_67 : f32 to vector<8x1xf32>
    %147 = arith.divf %145, %146 : vector<8x1xf32>
    %cst_68 = arith.constant 9.99999974E-6 : f32
    %148 = vector.broadcast %cst_68 : f32 to vector<8x1xf32>
    %149 = arith.addf %147, %148 : vector<8x1xf32>
    %150 = math.rsqrt %149 : vector<8x1xf32>
    %151 = vector.broadcast %150 : vector<8x1xf32> to vector<8x32xf32>
    %152 = arith.mulf %142, %151 : vector<8x32xf32>
    %153 = vector.broadcast %134 : vector<1x32xf32> to vector<8x32xf32>
    %154 = arith.mulf %152, %153 : vector<8x32xf32>
    %155 = vector.broadcast %136 : vector<1x32xf32> to vector<8x32xf32>
    %156 = arith.addf %154, %155 : vector<8x32xf32>
    %c0_69 = arith.constant 0 : index
    %c0_70 = arith.constant 0 : index
    %c0_71 = arith.constant 0 : index
    %157 = vector.load %arg3[%c0_69, %c0_70, %c0_71] : memref<1x32x96xf32, #tpu.memory_space<vmem>>, vector<1x32x96xf32>
    %158 = vector.shape_cast %157 : vector<1x32x96xf32> to vector<32x96xf32>
    %cst_72 = arith.constant dense<0.000000e+00> : vector<8x96xf32>
    %159 = tpu.matmul %156, %158, %cst_72 {dimension_numbers = #tpu.dot_dimension_numbers<[1], [0], [0], [1], [0, 0, 1, 1], [], []>} : vector<8x32xf32>, vector<32x96xf32>, vector<8x96xf32> -> vector<8x96xf32>
    %c0_73 = arith.constant 0 : index
    %c0_74 = arith.constant 0 : index
    %c0_75 = arith.constant 0 : index
    %160 = vector.load %arg4[%c0_73, %c0_74, %c0_75] : memref<1x1x96xf32, #tpu.memory_space<vmem>>, vector<1x1x96xf32>
    %161 = vector.shape_cast %160 : vector<1x1x96xf32> to vector<1x96xf32>
    %162 = vector.broadcast %161 : vector<1x96xf32> to vector<8x96xf32>
    %163 = arith.addf %159, %162 : vector<8x96xf32>
    %164 = vector.extract_strided_slice %163 {offsets = [0, 0], sizes = [8, 32], strides = [1, 1]} : vector<8x96xf32> to vector<8x32xf32>
    %165 = vector.extract_strided_slice %163 {offsets = [0, 32], sizes = [8, 32], strides = [1, 1]} : vector<8x96xf32> to vector<8x32xf32>
    %166 = vector.extract_strided_slice %163 {offsets = [0, 64], sizes = [8, 32], strides = [1, 1]} : vector<8x96xf32> to vector<8x32xf32>
    %c0_76 = arith.constant 0 : index
    %c0_77 = arith.constant 0 : index
    %c0_78 = arith.constant 0 : index
    %167 = vector.load %arg5[%c0_76, %c0_77, %c0_78] : memref<1x32x32xf32, #tpu.memory_space<vmem>>, vector<1x32x32xf32>
    %168 = vector.shape_cast %167 : vector<1x32x32xf32> to vector<32x32xf32>
    %c1_79 = arith.constant 1 : index
    %c0_80 = arith.constant 0 : index
    %c0_81 = arith.constant 0 : index
    %169 = vector.load %arg11[%c1_79, %c0_80, %c0_81] : memref<2x10x32xf32, #tpu.memory_space<vmem>>, vector<1x1x32xf32>
    %170 = vector.shape_cast %169 : vector<1x1x32xf32> to vector<1x32xf32>
    %171 = vector.extract_strided_slice %164 {offsets = [0, 0], sizes = [8, 8], strides = [1, 1]} : vector<8x32xf32> to vector<8x8xf32>
    %172 = vector.extract_strided_slice %165 {offsets = [0, 0], sizes = [8, 8], strides = [1, 1]} : vector<8x32xf32> to vector<8x8xf32>
    %173 = tpu.transpose %172, [1, 0] : vector<8x8xf32> -> vector<8x8xf32>
    %cst_82 = arith.constant dense<0.000000e+00> : vector<8x8xf32>
    %174 = tpu.matmul %171, %173, %cst_82 {dimension_numbers = #tpu.dot_dimension_numbers<[1], [0], [0], [1], [0, 0, 1, 1], [], []>} : vector<8x8xf32>, vector<8x8xf32>, vector<8x8xf32> -> vector<8x8xf32>
    %cst_83 = arith.constant dense<0xFF800000> : vector<8xf32>
    %175 = vector.multi_reduction <maximumf>, %174, %cst_83 [1] : vector<8x8xf32> to vector<8xf32>
    %176 = vector.shape_cast %175 : vector<8xf32> to vector<8x1xf32>
    %177 = vector.broadcast %176 : vector<8x1xf32> to vector<8x8xf32>
    %178 = arith.subf %174, %177 : vector<8x8xf32>
    %179 = math.exp %178 : vector<8x8xf32>
    %cst_84 = arith.constant dense<0.000000e+00> : vector<8xf32>
    %180 = vector.multi_reduction <add>, %179, %cst_84 [1] : vector<8x8xf32> to vector<8xf32>
    %181 = vector.shape_cast %180 : vector<8xf32> to vector<8x1xf32>
    %182 = tpu.reciprocal %181 {approx = true} : vector<8x1xf32> -> vector<8x1xf32>
    %183 = vector.broadcast %182 : vector<8x1xf32> to vector<8x8xf32>
    %184 = arith.mulf %179, %183 : vector<8x8xf32>
    %185 = vector.extract_strided_slice %166 {offsets = [0, 0], sizes = [8, 8], strides = [1, 1]} : vector<8x32xf32> to vector<8x8xf32>
    %cst_85 = arith.constant dense<0.000000e+00> : vector<8x8xf32>
    %186 = tpu.matmul %184, %185, %cst_85 {dimension_numbers = #tpu.dot_dimension_numbers<[1], [0], [0], [1], [0, 0, 1, 1], [], []>} : vector<8x8xf32>, vector<8x8xf32>, vector<8x8xf32> -> vector<8x8xf32>
    %187 = vector.extract_strided_slice %164 {offsets = [0, 8], sizes = [8, 8], strides = [1, 1]} : vector<8x32xf32> to vector<8x8xf32>
    %188 = vector.extract_strided_slice %165 {offsets = [0, 8], sizes = [8, 8], strides = [1, 1]} : vector<8x32xf32> to vector<8x8xf32>
    %189 = tpu.transpose %188, [1, 0] : vector<8x8xf32> -> vector<8x8xf32>
    %cst_86 = arith.constant dense<0.000000e+00> : vector<8x8xf32>
    %190 = tpu.matmul %187, %189, %cst_86 {dimension_numbers = #tpu.dot_dimension_numbers<[1], [0], [0], [1], [0, 0, 1, 1], [], []>} : vector<8x8xf32>, vector<8x8xf32>, vector<8x8xf32> -> vector<8x8xf32>
    %cst_87 = arith.constant dense<0xFF800000> : vector<8xf32>
    %191 = vector.multi_reduction <maximumf>, %190, %cst_87 [1] : vector<8x8xf32> to vector<8xf32>
    %192 = vector.shape_cast %191 : vector<8xf32> to vector<8x1xf32>
    %193 = vector.broadcast %192 : vector<8x1xf32> to vector<8x8xf32>
    %194 = arith.subf %190, %193 : vector<8x8xf32>
    %195 = math.exp %194 : vector<8x8xf32>
    %cst_88 = arith.constant dense<0.000000e+00> : vector<8xf32>
    %196 = vector.multi_reduction <add>, %195, %cst_88 [1] : vector<8x8xf32> to vector<8xf32>
    %197 = vector.shape_cast %196 : vector<8xf32> to vector<8x1xf32>
    %198 = tpu.reciprocal %197 {approx = true} : vector<8x1xf32> -> vector<8x1xf32>
    %199 = vector.broadcast %198 : vector<8x1xf32> to vector<8x8xf32>
    %200 = arith.mulf %195, %199 : vector<8x8xf32>
    %201 = vector.extract_strided_slice %166 {offsets = [0, 8], sizes = [8, 8], strides = [1, 1]} : vector<8x32xf32> to vector<8x8xf32>
    %cst_89 = arith.constant dense<0.000000e+00> : vector<8x8xf32>
    %202 = tpu.matmul %200, %201, %cst_89 {dimension_numbers = #tpu.dot_dimension_numbers<[1], [0], [0], [1], [0, 0, 1, 1], [], []>} : vector<8x8xf32>, vector<8x8xf32>, vector<8x8xf32> -> vector<8x8xf32>
    %203 = vector.extract_strided_slice %164 {offsets = [0, 16], sizes = [8, 8], strides = [1, 1]} : vector<8x32xf32> to vector<8x8xf32>
    %204 = vector.extract_strided_slice %165 {offsets = [0, 16], sizes = [8, 8], strides = [1, 1]} : vector<8x32xf32> to vector<8x8xf32>
    %205 = tpu.transpose %204, [1, 0] : vector<8x8xf32> -> vector<8x8xf32>
    %cst_90 = arith.constant dense<0.000000e+00> : vector<8x8xf32>
    %206 = tpu.matmul %203, %205, %cst_90 {dimension_numbers = #tpu.dot_dimension_numbers<[1], [0], [0], [1], [0, 0, 1, 1], [], []>} : vector<8x8xf32>, vector<8x8xf32>, vector<8x8xf32> -> vector<8x8xf32>
    %cst_91 = arith.constant dense<0xFF800000> : vector<8xf32>
    %207 = vector.multi_reduction <maximumf>, %206, %cst_91 [1] : vector<8x8xf32> to vector<8xf32>
    %208 = vector.shape_cast %207 : vector<8xf32> to vector<8x1xf32>
    %209 = vector.broadcast %208 : vector<8x1xf32> to vector<8x8xf32>
    %210 = arith.subf %206, %209 : vector<8x8xf32>
    %211 = math.exp %210 : vector<8x8xf32>
    %cst_92 = arith.constant dense<0.000000e+00> : vector<8xf32>
    %212 = vector.multi_reduction <add>, %211, %cst_92 [1] : vector<8x8xf32> to vector<8xf32>
    %213 = vector.shape_cast %212 : vector<8xf32> to vector<8x1xf32>
    %214 = tpu.reciprocal %213 {approx = true} : vector<8x1xf32> -> vector<8x1xf32>
    %215 = vector.broadcast %214 : vector<8x1xf32> to vector<8x8xf32>
    %216 = arith.mulf %211, %215 : vector<8x8xf32>
    %217 = vector.extract_strided_slice %166 {offsets = [0, 16], sizes = [8, 8], strides = [1, 1]} : vector<8x32xf32> to vector<8x8xf32>
    %cst_93 = arith.constant dense<0.000000e+00> : vector<8x8xf32>
    %218 = tpu.matmul %216, %217, %cst_93 {dimension_numbers = #tpu.dot_dimension_numbers<[1], [0], [0], [1], [0, 0, 1, 1], [], []>} : vector<8x8xf32>, vector<8x8xf32>, vector<8x8xf32> -> vector<8x8xf32>
    %219 = vector.extract_strided_slice %164 {offsets = [0, 24], sizes = [8, 8], strides = [1, 1]} : vector<8x32xf32> to vector<8x8xf32>
    %220 = vector.extract_strided_slice %165 {offsets = [0, 24], sizes = [8, 8], strides = [1, 1]} : vector<8x32xf32> to vector<8x8xf32>
    %221 = tpu.transpose %220, [1, 0] : vector<8x8xf32> -> vector<8x8xf32>
    %cst_94 = arith.constant dense<0.000000e+00> : vector<8x8xf32>
    %222 = tpu.matmul %219, %221, %cst_94 {dimension_numbers = #tpu.dot_dimension_numbers<[1], [0], [0], [1], [0, 0, 1, 1], [], []>} : vector<8x8xf32>, vector<8x8xf32>, vector<8x8xf32> -> vector<8x8xf32>
    %cst_95 = arith.constant dense<0xFF800000> : vector<8xf32>
    %223 = vector.multi_reduction <maximumf>, %222, %cst_95 [1] : vector<8x8xf32> to vector<8xf32>
    %224 = vector.shape_cast %223 : vector<8xf32> to vector<8x1xf32>
    %225 = vector.broadcast %224 : vector<8x1xf32> to vector<8x8xf32>
    %226 = arith.subf %222, %225 : vector<8x8xf32>
    %227 = math.exp %226 : vector<8x8xf32>
    %cst_96 = arith.constant dense<0.000000e+00> : vector<8xf32>
    %228 = vector.multi_reduction <add>, %227, %cst_96 [1] : vector<8x8xf32> to vector<8xf32>
    %229 = vector.shape_cast %228 : vector<8xf32> to vector<8x1xf32>
    %230 = tpu.reciprocal %229 {approx = true} : vector<8x1xf32> -> vector<8x1xf32>
    %231 = vector.broadcast %230 : vector<8x1xf32> to vector<8x8xf32>
    %232 = arith.mulf %227, %231 : vector<8x8xf32>
    %233 = vector.extract_strided_slice %166 {offsets = [0, 24], sizes = [8, 8], strides = [1, 1]} : vector<8x32xf32> to vector<8x8xf32>
    %cst_97 = arith.constant dense<0.000000e+00> : vector<8x8xf32>
    %234 = tpu.matmul %232, %233, %cst_97 {dimension_numbers = #tpu.dot_dimension_numbers<[1], [0], [0], [1], [0, 0, 1, 1], [], []>} : vector<8x8xf32>, vector<8x8xf32>, vector<8x8xf32> -> vector<8x8xf32>
    %235 = tpu.concatenate %186, %202, %218, %234 in 1 : vector<8x8xf32>, vector<8x8xf32>, vector<8x8xf32>, vector<8x8xf32> -> vector<8x32xf32>
    %cst_98 = arith.constant dense<0.000000e+00> : vector<8x32xf32>
    %236 = tpu.matmul %235, %168, %cst_98 {dimension_numbers = #tpu.dot_dimension_numbers<[1], [0], [0], [1], [0, 0, 1, 1], [], []>} : vector<8x32xf32>, vector<32x32xf32>, vector<8x32xf32> -> vector<8x32xf32>
    %237 = vector.broadcast %170 : vector<1x32xf32> to vector<8x32xf32>
    %238 = arith.addf %236, %237 : vector<8x32xf32>
    %239 = arith.addf %156, %238 : vector<8x32xf32>
    %c1_99 = arith.constant 1 : index
    %c1_100 = arith.constant 1 : index
    %c0_101 = arith.constant 0 : index
    %240 = vector.load %arg11[%c1_99, %c1_100, %c0_101] : memref<2x10x32xf32, #tpu.memory_space<vmem>>, vector<1x1x32xf32>
    %241 = vector.shape_cast %240 : vector<1x1x32xf32> to vector<1x32xf32>
    %c1_102 = arith.constant 1 : index
    %c2 = arith.constant 2 : index
    %c0_103 = arith.constant 0 : index
    %242 = vector.load %arg11[%c1_102, %c2, %c0_103] : memref<2x10x32xf32, #tpu.memory_space<vmem>>, vector<1x1x32xf32>
    %243 = vector.shape_cast %242 : vector<1x1x32xf32> to vector<1x32xf32>
    %cst_104 = arith.constant dense<0.000000e+00> : vector<8xf32>
    %244 = vector.multi_reduction <add>, %239, %cst_104 [1] : vector<8x32xf32> to vector<8xf32>
    %245 = vector.shape_cast %244 : vector<8xf32> to vector<8x1xf32>
    %cst_105 = arith.constant 3.200000e+01 : f32
    %246 = vector.broadcast %cst_105 : f32 to vector<8x1xf32>
    %247 = arith.divf %245, %246 : vector<8x1xf32>
    %248 = vector.broadcast %247 : vector<8x1xf32> to vector<8x32xf32>
    %249 = arith.subf %239, %248 : vector<8x32xf32>
    %250 = arith.mulf %249, %249 : vector<8x32xf32>
    %cst_106 = arith.constant dense<0.000000e+00> : vector<8xf32>
    %251 = vector.multi_reduction <add>, %250, %cst_106 [1] : vector<8x32xf32> to vector<8xf32>
    %252 = vector.shape_cast %251 : vector<8xf32> to vector<8x1xf32>
    %cst_107 = arith.constant 3.200000e+01 : f32
    %253 = vector.broadcast %cst_107 : f32 to vector<8x1xf32>
    %254 = arith.divf %252, %253 : vector<8x1xf32>
    %cst_108 = arith.constant 9.99999974E-6 : f32
    %255 = vector.broadcast %cst_108 : f32 to vector<8x1xf32>
    %256 = arith.addf %254, %255 : vector<8x1xf32>
    %257 = math.rsqrt %256 : vector<8x1xf32>
    %258 = vector.broadcast %257 : vector<8x1xf32> to vector<8x32xf32>
    %259 = arith.mulf %249, %258 : vector<8x32xf32>
    %260 = vector.broadcast %241 : vector<1x32xf32> to vector<8x32xf32>
    %261 = arith.mulf %259, %260 : vector<8x32xf32>
    %262 = vector.broadcast %243 : vector<1x32xf32> to vector<8x32xf32>
    %263 = arith.addf %261, %262 : vector<8x32xf32>
    %c1_109 = arith.constant 1 : index
    %c0_110 = arith.constant 0 : index
    %c0_111 = arith.constant 0 : index
    %264 = vector.load %arg6[%c1_109, %c0_110, %c0_111] : memref<2x32x32xf32, #tpu.memory_space<vmem>>, vector<1x32x32xf32>
    %265 = vector.shape_cast %264 : vector<1x32x32xf32> to vector<32x32xf32>
    %cst_112 = arith.constant dense<0.000000e+00> : vector<8x32xf32>
    %266 = tpu.matmul %263, %265, %cst_112 {dimension_numbers = #tpu.dot_dimension_numbers<[1], [0], [0], [1], [0, 0, 1, 1], [], []>} : vector<8x32xf32>, vector<32x32xf32>, vector<8x32xf32> -> vector<8x32xf32>
    %c1_113 = arith.constant 1 : index
    %c3_114 = arith.constant 3 : index
    %c0_115 = arith.constant 0 : index
    %267 = vector.load %arg11[%c1_113, %c3_114, %c0_115] : memref<2x10x32xf32, #tpu.memory_space<vmem>>, vector<1x1x32xf32>
    %268 = vector.shape_cast %267 : vector<1x1x32xf32> to vector<1x32xf32>
    %269 = vector.broadcast %268 : vector<1x32xf32> to vector<8x32xf32>
    %270 = arith.addf %266, %269 : vector<8x32xf32>
    %c1_116 = arith.constant 1 : index
    %c0_117 = arith.constant 0 : index
    %c0_118 = arith.constant 0 : index
    %271 = vector.load %arg7[%c1_116, %c0_117, %c0_118] : memref<2x3x64xf32, #tpu.memory_space<vmem>>, vector<1x3x64xf32>
    %272 = vector.shape_cast %271 : vector<1x3x64xf32> to vector<3x64xf32>
    %cst_119 = arith.constant dense<0.000000e+00> : vector<16x64xf32>
    %273 = tpu.matmul %1, %272, %cst_119 {dimension_numbers = #tpu.dot_dimension_numbers<[1], [0], [0], [1], [0, 0, 1, 1], [], []>} : vector<16x3xf32>, vector<3x64xf32>, vector<16x64xf32> -> vector<16x64xf32>
    %c1_120 = arith.constant 1 : index
    %c0_121 = arith.constant 0 : index
    %c0_122 = arith.constant 0 : index
    %274 = vector.load %arg12[%c1_120, %c0_121, %c0_122] : memref<2x2x64xf32, #tpu.memory_space<vmem>>, vector<1x1x64xf32>
    %275 = vector.shape_cast %274 : vector<1x1x64xf32> to vector<1x64xf32>
    %276 = vector.broadcast %275 : vector<1x64xf32> to vector<16x64xf32>
    %277 = arith.addf %273, %276 : vector<16x64xf32>
    %278 = vector.extract_strided_slice %277 {offsets = [0, 0], sizes = [16, 32], strides = [1, 1]} : vector<16x64xf32> to vector<16x32xf32>
    %279 = vector.extract_strided_slice %277 {offsets = [0, 32], sizes = [16, 32], strides = [1, 1]} : vector<16x64xf32> to vector<16x32xf32>
    %c1_123 = arith.constant 1 : index
    %c0_124 = arith.constant 0 : index
    %c0_125 = arith.constant 0 : index
    %280 = vector.load %arg8[%c1_123, %c0_124, %c0_125] : memref<2x32x32xf32, #tpu.memory_space<vmem>>, vector<1x32x32xf32>
    %281 = vector.shape_cast %280 : vector<1x32x32xf32> to vector<32x32xf32>
    %c1_126 = arith.constant 1 : index
    %c4_127 = arith.constant 4 : index
    %c0_128 = arith.constant 0 : index
    %282 = vector.load %arg11[%c1_126, %c4_127, %c0_128] : memref<2x10x32xf32, #tpu.memory_space<vmem>>, vector<1x1x32xf32>
    %283 = vector.shape_cast %282 : vector<1x1x32xf32> to vector<1x32xf32>
    %284 = vector.extract_strided_slice %270 {offsets = [0, 0], sizes = [8, 8], strides = [1, 1]} : vector<8x32xf32> to vector<8x8xf32>
    %285 = vector.extract_strided_slice %278 {offsets = [0, 0], sizes = [16, 8], strides = [1, 1]} : vector<16x32xf32> to vector<16x8xf32>
    %286 = tpu.transpose %285, [1, 0] : vector<16x8xf32> -> vector<8x16xf32>
    %cst_129 = arith.constant dense<0.000000e+00> : vector<8x16xf32>
    %287 = tpu.matmul %284, %286, %cst_129 {dimension_numbers = #tpu.dot_dimension_numbers<[1], [0], [0], [1], [0, 0, 1, 1], [], []>} : vector<8x8xf32>, vector<8x16xf32>, vector<8x16xf32> -> vector<8x16xf32>
    %cst_130 = arith.constant dense<0xFF800000> : vector<8xf32>
    %288 = vector.multi_reduction <maximumf>, %287, %cst_130 [1] : vector<8x16xf32> to vector<8xf32>
    %289 = vector.shape_cast %288 : vector<8xf32> to vector<8x1xf32>
    %290 = vector.broadcast %289 : vector<8x1xf32> to vector<8x16xf32>
    %291 = arith.subf %287, %290 : vector<8x16xf32>
    %292 = math.exp %291 : vector<8x16xf32>
    %cst_131 = arith.constant dense<0.000000e+00> : vector<8xf32>
    %293 = vector.multi_reduction <add>, %292, %cst_131 [1] : vector<8x16xf32> to vector<8xf32>
    %294 = vector.shape_cast %293 : vector<8xf32> to vector<8x1xf32>
    %295 = tpu.reciprocal %294 {approx = true} : vector<8x1xf32> -> vector<8x1xf32>
    %296 = vector.broadcast %295 : vector<8x1xf32> to vector<8x16xf32>
    %297 = arith.mulf %292, %296 : vector<8x16xf32>
    %298 = vector.extract_strided_slice %279 {offsets = [0, 0], sizes = [16, 8], strides = [1, 1]} : vector<16x32xf32> to vector<16x8xf32>
    %cst_132 = arith.constant dense<0.000000e+00> : vector<8x8xf32>
    %299 = tpu.matmul %297, %298, %cst_132 {dimension_numbers = #tpu.dot_dimension_numbers<[1], [0], [0], [1], [0, 0, 1, 1], [], []>} : vector<8x16xf32>, vector<16x8xf32>, vector<8x8xf32> -> vector<8x8xf32>
    %300 = vector.extract_strided_slice %270 {offsets = [0, 8], sizes = [8, 8], strides = [1, 1]} : vector<8x32xf32> to vector<8x8xf32>
    %301 = vector.extract_strided_slice %278 {offsets = [0, 8], sizes = [16, 8], strides = [1, 1]} : vector<16x32xf32> to vector<16x8xf32>
    %302 = tpu.transpose %301, [1, 0] : vector<16x8xf32> -> vector<8x16xf32>
    %cst_133 = arith.constant dense<0.000000e+00> : vector<8x16xf32>
    %303 = tpu.matmul %300, %302, %cst_133 {dimension_numbers = #tpu.dot_dimension_numbers<[1], [0], [0], [1], [0, 0, 1, 1], [], []>} : vector<8x8xf32>, vector<8x16xf32>, vector<8x16xf32> -> vector<8x16xf32>
    %cst_134 = arith.constant dense<0xFF800000> : vector<8xf32>
    %304 = vector.multi_reduction <maximumf>, %303, %cst_134 [1] : vector<8x16xf32> to vector<8xf32>
    %305 = vector.shape_cast %304 : vector<8xf32> to vector<8x1xf32>
    %306 = vector.broadcast %305 : vector<8x1xf32> to vector<8x16xf32>
    %307 = arith.subf %303, %306 : vector<8x16xf32>
    %308 = math.exp %307 : vector<8x16xf32>
    %cst_135 = arith.constant dense<0.000000e+00> : vector<8xf32>
    %309 = vector.multi_reduction <add>, %308, %cst_135 [1] : vector<8x16xf32> to vector<8xf32>
    %310 = vector.shape_cast %309 : vector<8xf32> to vector<8x1xf32>
    %311 = tpu.reciprocal %310 {approx = true} : vector<8x1xf32> -> vector<8x1xf32>
    %312 = vector.broadcast %311 : vector<8x1xf32> to vector<8x16xf32>
    %313 = arith.mulf %308, %312 : vector<8x16xf32>
    %314 = vector.extract_strided_slice %279 {offsets = [0, 8], sizes = [16, 8], strides = [1, 1]} : vector<16x32xf32> to vector<16x8xf32>
    %cst_136 = arith.constant dense<0.000000e+00> : vector<8x8xf32>
    %315 = tpu.matmul %313, %314, %cst_136 {dimension_numbers = #tpu.dot_dimension_numbers<[1], [0], [0], [1], [0, 0, 1, 1], [], []>} : vector<8x16xf32>, vector<16x8xf32>, vector<8x8xf32> -> vector<8x8xf32>
    %316 = vector.extract_strided_slice %270 {offsets = [0, 16], sizes = [8, 8], strides = [1, 1]} : vector<8x32xf32> to vector<8x8xf32>
    %317 = vector.extract_strided_slice %278 {offsets = [0, 16], sizes = [16, 8], strides = [1, 1]} : vector<16x32xf32> to vector<16x8xf32>
    %318 = tpu.transpose %317, [1, 0] : vector<16x8xf32> -> vector<8x16xf32>
    %cst_137 = arith.constant dense<0.000000e+00> : vector<8x16xf32>
    %319 = tpu.matmul %316, %318, %cst_137 {dimension_numbers = #tpu.dot_dimension_numbers<[1], [0], [0], [1], [0, 0, 1, 1], [], []>} : vector<8x8xf32>, vector<8x16xf32>, vector<8x16xf32> -> vector<8x16xf32>
    %cst_138 = arith.constant dense<0xFF800000> : vector<8xf32>
    %320 = vector.multi_reduction <maximumf>, %319, %cst_138 [1] : vector<8x16xf32> to vector<8xf32>
    %321 = vector.shape_cast %320 : vector<8xf32> to vector<8x1xf32>
    %322 = vector.broadcast %321 : vector<8x1xf32> to vector<8x16xf32>
    %323 = arith.subf %319, %322 : vector<8x16xf32>
    %324 = math.exp %323 : vector<8x16xf32>
    %cst_139 = arith.constant dense<0.000000e+00> : vector<8xf32>
    %325 = vector.multi_reduction <add>, %324, %cst_139 [1] : vector<8x16xf32> to vector<8xf32>
    %326 = vector.shape_cast %325 : vector<8xf32> to vector<8x1xf32>
    %327 = tpu.reciprocal %326 {approx = true} : vector<8x1xf32> -> vector<8x1xf32>
    %328 = vector.broadcast %327 : vector<8x1xf32> to vector<8x16xf32>
    %329 = arith.mulf %324, %328 : vector<8x16xf32>
    %330 = vector.extract_strided_slice %279 {offsets = [0, 16], sizes = [16, 8], strides = [1, 1]} : vector<16x32xf32> to vector<16x8xf32>
    %cst_140 = arith.constant dense<0.000000e+00> : vector<8x8xf32>
    %331 = tpu.matmul %329, %330, %cst_140 {dimension_numbers = #tpu.dot_dimension_numbers<[1], [0], [0], [1], [0, 0, 1, 1], [], []>} : vector<8x16xf32>, vector<16x8xf32>, vector<8x8xf32> -> vector<8x8xf32>
    %332 = vector.extract_strided_slice %270 {offsets = [0, 24], sizes = [8, 8], strides = [1, 1]} : vector<8x32xf32> to vector<8x8xf32>
    %333 = vector.extract_strided_slice %278 {offsets = [0, 24], sizes = [16, 8], strides = [1, 1]} : vector<16x32xf32> to vector<16x8xf32>
    %334 = tpu.transpose %333, [1, 0] : vector<16x8xf32> -> vector<8x16xf32>
    %cst_141 = arith.constant dense<0.000000e+00> : vector<8x16xf32>
    %335 = tpu.matmul %332, %334, %cst_141 {dimension_numbers = #tpu.dot_dimension_numbers<[1], [0], [0], [1], [0, 0, 1, 1], [], []>} : vector<8x8xf32>, vector<8x16xf32>, vector<8x16xf32> -> vector<8x16xf32>
    %cst_142 = arith.constant dense<0xFF800000> : vector<8xf32>
    %336 = vector.multi_reduction <maximumf>, %335, %cst_142 [1] : vector<8x16xf32> to vector<8xf32>
    %337 = vector.shape_cast %336 : vector<8xf32> to vector<8x1xf32>
    %338 = vector.broadcast %337 : vector<8x1xf32> to vector<8x16xf32>
    %339 = arith.subf %335, %338 : vector<8x16xf32>
    %340 = math.exp %339 : vector<8x16xf32>
    %cst_143 = arith.constant dense<0.000000e+00> : vector<8xf32>
    %341 = vector.multi_reduction <add>, %340, %cst_143 [1] : vector<8x16xf32> to vector<8xf32>
    %342 = vector.shape_cast %341 : vector<8xf32> to vector<8x1xf32>
    %343 = tpu.reciprocal %342 {approx = true} : vector<8x1xf32> -> vector<8x1xf32>
    %344 = vector.broadcast %343 : vector<8x1xf32> to vector<8x16xf32>
    %345 = arith.mulf %340, %344 : vector<8x16xf32>
    %346 = vector.extract_strided_slice %279 {offsets = [0, 24], sizes = [16, 8], strides = [1, 1]} : vector<16x32xf32> to vector<16x8xf32>
    %cst_144 = arith.constant dense<0.000000e+00> : vector<8x8xf32>
    %347 = tpu.matmul %345, %346, %cst_144 {dimension_numbers = #tpu.dot_dimension_numbers<[1], [0], [0], [1], [0, 0, 1, 1], [], []>} : vector<8x16xf32>, vector<16x8xf32>, vector<8x8xf32> -> vector<8x8xf32>
    %348 = tpu.concatenate %299, %315, %331, %347 in 1 : vector<8x8xf32>, vector<8x8xf32>, vector<8x8xf32>, vector<8x8xf32> -> vector<8x32xf32>
    %cst_145 = arith.constant dense<0.000000e+00> : vector<8x32xf32>
    %349 = tpu.matmul %348, %281, %cst_145 {dimension_numbers = #tpu.dot_dimension_numbers<[1], [0], [0], [1], [0, 0, 1, 1], [], []>} : vector<8x32xf32>, vector<32x32xf32>, vector<8x32xf32> -> vector<8x32xf32>
    %350 = vector.broadcast %283 : vector<1x32xf32> to vector<8x32xf32>
    %351 = arith.addf %349, %350 : vector<8x32xf32>
    %352 = arith.addf %263, %351 : vector<8x32xf32>
    %c1_146 = arith.constant 1 : index
    %c5_147 = arith.constant 5 : index
    %c0_148 = arith.constant 0 : index
    %353 = vector.load %arg11[%c1_146, %c5_147, %c0_148] : memref<2x10x32xf32, #tpu.memory_space<vmem>>, vector<1x1x32xf32>
    %354 = vector.shape_cast %353 : vector<1x1x32xf32> to vector<1x32xf32>
    %c1_149 = arith.constant 1 : index
    %c6_150 = arith.constant 6 : index
    %c0_151 = arith.constant 0 : index
    %355 = vector.load %arg11[%c1_149, %c6_150, %c0_151] : memref<2x10x32xf32, #tpu.memory_space<vmem>>, vector<1x1x32xf32>
    %356 = vector.shape_cast %355 : vector<1x1x32xf32> to vector<1x32xf32>
    %cst_152 = arith.constant dense<0.000000e+00> : vector<8xf32>
    %357 = vector.multi_reduction <add>, %352, %cst_152 [1] : vector<8x32xf32> to vector<8xf32>
    %358 = vector.shape_cast %357 : vector<8xf32> to vector<8x1xf32>
    %cst_153 = arith.constant 3.200000e+01 : f32
    %359 = vector.broadcast %cst_153 : f32 to vector<8x1xf32>
    %360 = arith.divf %358, %359 : vector<8x1xf32>
    %361 = vector.broadcast %360 : vector<8x1xf32> to vector<8x32xf32>
    %362 = arith.subf %352, %361 : vector<8x32xf32>
    %363 = arith.mulf %362, %362 : vector<8x32xf32>
    %cst_154 = arith.constant dense<0.000000e+00> : vector<8xf32>
    %364 = vector.multi_reduction <add>, %363, %cst_154 [1] : vector<8x32xf32> to vector<8xf32>
    %365 = vector.shape_cast %364 : vector<8xf32> to vector<8x1xf32>
    %cst_155 = arith.constant 3.200000e+01 : f32
    %366 = vector.broadcast %cst_155 : f32 to vector<8x1xf32>
    %367 = arith.divf %365, %366 : vector<8x1xf32>
    %cst_156 = arith.constant 9.99999974E-6 : f32
    %368 = vector.broadcast %cst_156 : f32 to vector<8x1xf32>
    %369 = arith.addf %367, %368 : vector<8x1xf32>
    %370 = math.rsqrt %369 : vector<8x1xf32>
    %371 = vector.broadcast %370 : vector<8x1xf32> to vector<8x32xf32>
    %372 = arith.mulf %362, %371 : vector<8x32xf32>
    %373 = vector.broadcast %354 : vector<1x32xf32> to vector<8x32xf32>
    %374 = arith.mulf %372, %373 : vector<8x32xf32>
    %375 = vector.broadcast %356 : vector<1x32xf32> to vector<8x32xf32>
    %376 = arith.addf %374, %375 : vector<8x32xf32>
    %c1_157 = arith.constant 1 : index
    %c0_158 = arith.constant 0 : index
    %c0_159 = arith.constant 0 : index
    %377 = vector.load %arg9[%c1_157, %c0_158, %c0_159] : memref<2x32x64xf32, #tpu.memory_space<vmem>>, vector<1x32x64xf32>
    %378 = vector.shape_cast %377 : vector<1x32x64xf32> to vector<32x64xf32>
    %cst_160 = arith.constant dense<0.000000e+00> : vector<8x64xf32>
    %379 = tpu.matmul %376, %378, %cst_160 {dimension_numbers = #tpu.dot_dimension_numbers<[1], [0], [0], [1], [0, 0, 1, 1], [], []>} : vector<8x32xf32>, vector<32x64xf32>, vector<8x64xf32> -> vector<8x64xf32>
    %c1_161 = arith.constant 1 : index
    %c1_162 = arith.constant 1 : index
    %c0_163 = arith.constant 0 : index
    %380 = vector.load %arg12[%c1_161, %c1_162, %c0_163] : memref<2x2x64xf32, #tpu.memory_space<vmem>>, vector<1x1x64xf32>
    %381 = vector.shape_cast %380 : vector<1x1x64xf32> to vector<1x64xf32>
    %382 = vector.broadcast %381 : vector<1x64xf32> to vector<8x64xf32>
    %383 = arith.addf %379, %382 : vector<8x64xf32>
    %cst_164 = arith.constant 0.000000e+00 : f32
    %384 = vector.broadcast %cst_164 : f32 to vector<8x64xf32>
    %385 = arith.maximumf %383, %384 : vector<8x64xf32>
    %c1_165 = arith.constant 1 : index
    %c0_166 = arith.constant 0 : index
    %c0_167 = arith.constant 0 : index
    %386 = vector.load %arg10[%c1_165, %c0_166, %c0_167] : memref<2x64x32xf32, #tpu.memory_space<vmem>>, vector<1x64x32xf32>
    %387 = vector.shape_cast %386 : vector<1x64x32xf32> to vector<64x32xf32>
    %cst_168 = arith.constant dense<0.000000e+00> : vector<8x32xf32>
    %388 = tpu.matmul %385, %387, %cst_168 {dimension_numbers = #tpu.dot_dimension_numbers<[1], [0], [0], [1], [0, 0, 1, 1], [], []>} : vector<8x64xf32>, vector<64x32xf32>, vector<8x32xf32> -> vector<8x32xf32>
    %c1_169 = arith.constant 1 : index
    %c7_170 = arith.constant 7 : index
    %c0_171 = arith.constant 0 : index
    %389 = vector.load %arg11[%c1_169, %c7_170, %c0_171] : memref<2x10x32xf32, #tpu.memory_space<vmem>>, vector<1x1x32xf32>
    %390 = vector.shape_cast %389 : vector<1x1x32xf32> to vector<1x32xf32>
    %391 = vector.broadcast %390 : vector<1x32xf32> to vector<8x32xf32>
    %392 = arith.addf %388, %391 : vector<8x32xf32>
    %393 = arith.addf %376, %392 : vector<8x32xf32>
    %cst_172 = arith.constant dense<0.000000e+00> : vector<8xf32>
    %394 = vector.multi_reduction <add>, %393, %cst_172 [1] : vector<8x32xf32> to vector<8xf32>
    %395 = vector.shape_cast %394 : vector<8xf32> to vector<8x1xf32>
    %cst_173 = arith.constant 3.200000e+01 : f32
    %396 = vector.broadcast %cst_173 : f32 to vector<8x1xf32>
    %397 = arith.divf %395, %396 : vector<8x1xf32>
    %398 = vector.broadcast %397 : vector<8x1xf32> to vector<8x32xf32>
    %399 = arith.subf %393, %398 : vector<8x32xf32>
    %400 = arith.mulf %399, %399 : vector<8x32xf32>
    %cst_174 = arith.constant dense<0.000000e+00> : vector<8xf32>
    %401 = vector.multi_reduction <add>, %400, %cst_174 [1] : vector<8x32xf32> to vector<8xf32>
    %402 = vector.shape_cast %401 : vector<8xf32> to vector<8x1xf32>
    %cst_175 = arith.constant 3.200000e+01 : f32
    %403 = vector.broadcast %cst_175 : f32 to vector<8x1xf32>
    %404 = arith.divf %402, %403 : vector<8x1xf32>
    %cst_176 = arith.constant 9.99999974E-6 : f32
    %405 = vector.broadcast %cst_176 : f32 to vector<8x1xf32>
    %406 = arith.addf %404, %405 : vector<8x1xf32>
    %407 = math.rsqrt %406 : vector<8x1xf32>
    %408 = vector.broadcast %407 : vector<8x1xf32> to vector<8x32xf32>
    %409 = arith.mulf %399, %408 : vector<8x32xf32>
    %c0_177 = arith.constant 0 : index
    %c0_178 = arith.constant 0 : index
    %410 = vector.load %arg13[%c0_177, %c0_178] : memref<32x12xf32, #tpu.memory_space<vmem>>, vector<32x12xf32>
    %cst_179 = arith.constant dense<0.000000e+00> : vector<8x12xf32>
    %411 = tpu.matmul %409, %410, %cst_179 {dimension_numbers = #tpu.dot_dimension_numbers<[1], [0], [0], [1], [0, 0, 1, 1], [], []>} : vector<8x32xf32>, vector<32x12xf32>, vector<8x12xf32> -> vector<8x12xf32>
    %c0_180 = arith.constant 0 : index
    %c0_181 = arith.constant 0 : index
    %412 = vector.load %arg14[%c0_180, %c0_181] : memref<1x12xf32, #tpu.memory_space<vmem>>, vector<1x12xf32>
    %413 = vector.broadcast %412 : vector<1x12xf32> to vector<8x12xf32>
    %414 = arith.addf %411, %413 : vector<8x12xf32>
    %c0_182 = arith.constant 0 : index
    %c0_183 = arith.constant 0 : index
    %c0_184 = arith.constant 0 : index
    %415 = vector.load %arg15[%c0_182, %c0_183, %c0_184] : memref<1x8x12xf32, #tpu.memory_space<vmem>>, vector<1x8x12xf32>
    %416 = vector.shape_cast %415 : vector<1x8x12xf32> to vector<8x12xf32>
    %417 = vector.shape_cast %414 : vector<8x12xf32> to vector<1x8x12xf32>
    tpu.vector_store %arg15[%c0_182, %c0_183, %c0_184], %417 {strides = array<i32>} : memref<1x8x12xf32, #tpu.memory_space<vmem>>, vector<1x8x12xf32>,
    return
  }
  func.func @transform_0(%arg0: i32) -> (i32, i32, i32) {
    %c0_i32 = arith.constant 0 : i32
    %c0_i32_0 = arith.constant 0 : i32
    %c0_i32_1 = arith.constant 0 : i32
    return %arg0, %c0_i32, %c0_i32_0 : i32, i32, i32
  }
  func.func @transform_1(%arg0: i32) -> (i32, i32) {
    %c0_i32 = arith.constant 0 : i32
    %c0_i32_0 = arith.constant 0 : i32
    %c0_i32_1 = arith.constant 0 : i32
    return %c0_i32, %c0_i32_0 : i32, i32
  }
  func.func @transform_2(%arg0: i32) -> (i32, i32, i32) {
    %c0_i32 = arith.constant 0 : i32
    %c0_i32_0 = arith.constant 0 : i32
    %c0_i32_1 = arith.constant 0 : i32
    %c0_i32_2 = arith.constant 0 : i32
    return %c0_i32, %c0_i32_0, %c0_i32_1 : i32, i32, i32
  }
  func.func @transform_3(%arg0: i32) -> (i32, i32, i32) {
    %c0_i32 = arith.constant 0 : i32
    %c0_i32_0 = arith.constant 0 : i32
    %c0_i32_1 = arith.constant 0 : i32
    %c0_i32_2 = arith.constant 0 : i32
    return %c0_i32, %c0_i32_0, %c0_i32_1 : i32, i32, i32
  }
  func.func @transform_4(%arg0: i32) -> (i32, i32, i32) {
    %c0_i32 = arith.constant 0 : i32
    %c0_i32_0 = arith.constant 0 : i32
    %c0_i32_1 = arith.constant 0 : i32
    %c0_i32_2 = arith.constant 0 : i32
    return %c0_i32, %c0_i32_0, %c0_i32_1 : i32, i32, i32
  }
  func.func @transform_5(%arg0: i32) -> (i32, i32, i32) {
    %c0_i32 = arith.constant 0 : i32
    %c0_i32_0 = arith.constant 0 : i32
    %c0_i32_1 = arith.constant 0 : i32
    %c0_i32_2 = arith.constant 0 : i32
    return %c0_i32, %c0_i32_0, %c0_i32_1 : i32, i32, i32
  }
  func.func @transform_6(%arg0: i32) -> (i32, i32, i32) {
    %c0_i32 = arith.constant 0 : i32
    %c0_i32_0 = arith.constant 0 : i32
    %c0_i32_1 = arith.constant 0 : i32
    %c0_i32_2 = arith.constant 0 : i32
    return %c0_i32, %c0_i32_0, %c0_i32_1 : i32, i32, i32
  }
  func.func @transform_7(%arg0: i32) -> (i32, i32, i32) {
    %c0_i32 = arith.constant 0 : i32
    %c0_i32_0 = arith.constant 0 : i32
    %c0_i32_1 = arith.constant 0 : i32
    %c0_i32_2 = arith.constant 0 : i32
    return %c0_i32, %c0_i32_0, %c0_i32_1 : i32, i32, i32
  }
  func.func @transform_8(%arg0: i32) -> (i32, i32, i32) {
    %c0_i32 = arith.constant 0 : i32
    %c0_i32_0 = arith.constant 0 : i32
    %c0_i32_1 = arith.constant 0 : i32
    %c0_i32_2 = arith.constant 0 : i32
    return %c0_i32, %c0_i32_0, %c0_i32_1 : i32, i32, i32
  }
  func.func @transform_9(%arg0: i32) -> (i32, i32, i32) {
    %c0_i32 = arith.constant 0 : i32
    %c0_i32_0 = arith.constant 0 : i32
    %c0_i32_1 = arith.constant 0 : i32
    %c0_i32_2 = arith.constant 0 : i32
    return %c0_i32, %c0_i32_0, %c0_i32_1 : i32, i32, i32
  }
  func.func @transform_10(%arg0: i32) -> (i32, i32, i32) {
    %c0_i32 = arith.constant 0 : i32
    %c0_i32_0 = arith.constant 0 : i32
    %c0_i32_1 = arith.constant 0 : i32
    %c0_i32_2 = arith.constant 0 : i32
    return %c0_i32, %c0_i32_0, %c0_i32_1 : i32, i32, i32
  }
  func.func @transform_11(%arg0: i32) -> (i32, i32, i32) {
    %c0_i32 = arith.constant 0 : i32
    %c0_i32_0 = arith.constant 0 : i32
    %c0_i32_1 = arith.constant 0 : i32
    %c0_i32_2 = arith.constant 0 : i32
    return %c0_i32, %c0_i32_0, %c0_i32_1 : i32, i32, i32
  }
  func.func @transform_12(%arg0: i32) -> (i32, i32) {
    %c0_i32 = arith.constant 0 : i32
    %c0_i32_0 = arith.constant 0 : i32
    %c0_i32_1 = arith.constant 0 : i32
    return %c0_i32, %c0_i32_0 : i32, i32
  }
  func.func @transform_13(%arg0: i32) -> (i32, i32) {
    %c0_i32 = arith.constant 0 : i32
    %c0_i32_0 = arith.constant 0 : i32
    %c0_i32_1 = arith.constant 0 : i32
    return %c0_i32, %c0_i32_0 : i32, i32
  }
  func.func @transform_14(%arg0: i32) -> (i32, i32, i32) {
    %c0_i32 = arith.constant 0 : i32
    %c0_i32_0 = arith.constant 0 : i32
    %c0_i32_1 = arith.constant 0 : i32
    return %arg0, %c0_i32, %c0_i32_0 : i32, i32, i32
  }
}

</mosaic_0001>

<llo_original>
// kernel: tpu_custom_call.1
$region0: #{tpu_custom_call.1}
  #allocation0 [shape = 'u32[]', space=smem, size = 0x4, offset = 0x4, fixed_abs, tag = 'smem constant byte address 0x4 - core index']
  #allocation1 [shape = 'u32[144,128]{1,0:T(1,128)}', space=vmem, size = 0x12000, scoped, tag = 'internal scratch']
  %s0 = inlined_call_operand.vmem [shape: f32[2,16,3], index: 0, kind: input, shape index: {}]
  %s1 = inlined_call_operand.hbm [shape: f32[8,32], index: 1, kind: input, shape index: {}]
  %s2 = inlined_call_operand.vmem [shape: f32[1,32,96], index: 2, kind: input, shape index: {}]
  %s3 = inlined_call_operand.hbm [shape: f32[1,1,96], index: 3, kind: input, shape index: {}]
  %s4 = inlined_call_operand.vmem [shape: f32[1,32,32], index: 4, kind: input, shape index: {}]
  %s5 = inlined_call_operand.vmem [shape: f32[2,32,32], index: 5, kind: input, shape index: {}]
  %s6 = inlined_call_operand.vmem [shape: f32[2,3,64], index: 6, kind: input, shape index: {}]
  %s7 = inlined_call_operand.vmem [shape: f32[2,32,32], index: 7, kind: input, shape index: {}]
  %s8 = inlined_call_operand.vmem [shape: f32[2,32,64], index: 8, kind: input, shape index: {}]
  %s9 = inlined_call_operand.vmem [shape: f32[2,64,32], index: 9, kind: input, shape index: {}]
  %s10 = inlined_call_operand.vmem [shape: f32[2,10,32], index: 10, kind: input, shape index: {}]
  %s11 = inlined_call_operand.vmem [shape: f32[2,2,64], index: 11, kind: input, shape index: {}]
  %s12 = inlined_call_operand.vmem [shape: f32[32,12], index: 12, kind: input, shape index: {}]
  %s13 = inlined_call_operand.vmem [shape: f32[1,12], index: 13, kind: input, shape index: {}]
  %s14 = inlined_call_operand.hbm [shape: f32[2,8,12], index: 14, kind: output, shape index: {}]
  %s15 = sld [smem:[#allocation0]]
  $region97: #{tpu_custom_call.1} parent=0
    _
  %s17 = ssub.s32 1, %s15
  %s18 = scalar_select 0, %s17, %s15
  $region1: #{tpu_custom_call.1} parent=0
    #allocation2 [shape = 'u8[4096]{0}', space=vmem, size = 0x1000, scoped, tag = 'input window, operand 1, single buffered']
    #allocation3 [shape = 's32[2]{0}', space=sflag, size = 0x8, scoped, tag = 'scoped memory for tpu_custom_call.1']
    #allocation4 [shape = 's32[2]{0}', space=sflag, size = 0x8, scoped, tag = 'scoped memory for tpu_custom_call.1']
    #allocation5 [shape = 'u8[512]{0}', space=vmem, size = 0x400, scoped, tag = 'input window, operand 3, single buffered']
    #allocation6 [shape = 's32[1]{0}', space=sflag, size = 0x4, scoped, tag = 'scoped memory for tpu_custom_call.1']
    #allocation7 [shape = 'u8[8192]{0}', space=vmem, size = 0x2000, scoped, tag = 'output window, operand 0']
    %19 = vsyncpa [#allocation3], 0
    %20 = vsyncpa [#allocation6], 0
    %21 = vsyncpa [#allocation4], 0
    %s22 = scalar_lea.sflag [#allocation4], 1
    %23 = vsyncpa %s22, 0
    loop: start=0, step=1, limit=4
    $region2: #{tpu_custom_call.1} parent=1 // loop_pre_header
      _
    $region3: #{tpu_custom_call.1} parent=1 // loop_header
      %s25 = sphi 0, %s29
      %p26 = scmp.ge.s32.totalorder %s25, 4
      %s35 = sphi 0, %s37
      %s38 = sphi 0, %s35
      %s39 = sphi 0, %s38
      %s55 = sphi 0, %s39
      %s59 = sphi 0, %s59
      %s61 = sphi 0, %s59
      %s62 = sphi 0, %s61
      %s76 = sphi 0, %s62
      %s80 = sphi 0, %s80
      %s82 = sphi 0, %s80
      %s83 = sphi 0, %s82
      %s97 = sphi 0, %s83
      %s101 = sphi 0, %s101
      %s103 = sphi 0, %s101
      %s104 = sphi 0, %s103
      %s118 = sphi 0, %s104
      %s122 = sphi 0, %s122
      %s124 = sphi 0, %s122
      %s125 = sphi 0, %s124
      %s139 = sphi 0, %s125
      %s143 = sphi 0, %s143
      %s145 = sphi 0, %s143
      %s146 = sphi 0, %s145
      %s160 = sphi 0, %s146
      %s164 = sphi 0, %s164
      %s166 = sphi 0, %s164
      %s167 = sphi 0, %s166
      %s181 = sphi 0, %s167
      %s185 = sphi 0, %s185
      %s187 = sphi 0, %s185
      %s188 = sphi 0, %s187
      %s202 = sphi 0, %s188
      %s206 = sphi 0, %s206
      %s208 = sphi 0, %s206
      %s209 = sphi 0, %s208
      %s223 = sphi 0, %s209
      %s227 = sphi 0, %s227
      %s229 = sphi 0, %s227
      %s230 = sphi 0, %s229
      %s244 = sphi 0, %s230
      %s248 = sphi 0, %s248
      %s250 = sphi 0, %s248
      %s251 = sphi 0, %s250
      %s265 = sphi 0, %s251
      %s269 = sphi 0, %s269
      %s271 = sphi 0, %s269
      %s272 = sphi 0, %s271
      %s286 = sphi 0, %s272
      %s290 = sphi 0, %s290
      %s292 = sphi 0, %s290
      %s293 = sphi 0, %s292
      %s307 = sphi 0, %s293
      %s311 = sphi 0, %s311
      %s313 = sphi 0, %s311
      %s314 = sphi 0, %s313
      %s328 = sphi 0, %s314
      %s334 = sphi 0, %s336
      %s337 = sphi 0, %s334
      %s338 = sphi 0, %s337
      %s354 = sphi 0, %s338
    $region4: #{tpu_custom_call.1} parent=1 // loop_header_branch
      %28 = sbr.rel (%p26) target = $region8
    $region5: #{tpu_custom_call.1} parent=1 // loop_body
      %s30 = ssub.s32 %s25, 1
      %s31 = ssub.s32 %s25, 2
      %s32 = sadd.s32 %s25, 1
      %s33 = ssub.s32 %s25, %s32
      %p34 = scmp.eq.s32.totalorder %s33, 0
      %s36 = sadd.s32 %s35, 1
      %s37 = scalar_select %p34, %s35, %s36
      %p40 = pneg %p34
      %p41 = scmp.eq.s32.totalorder %s25, 1
      %p42 = por %p40, %p41
      %p43 = scmp.ne.s32.totalorder %s35, %s38
      %p44 = scmp.eq.s32.totalorder %s25, 0
      %p45 = por %p43, %p44
      %p46 = scmp.ne.s32.totalorder %s35, %s38
      %p47 = scmp.eq.s32.totalorder %s30, 1
      %p48 = por %p46, %p47
      %p49 = scmp.ne.s32.totalorder %s38, %s39
      %p50 = scmp.eq.s32.totalorder %s30, 0
      %p51 = por %p49, %p50
      %p52 = scmp.ne.s32.totalorder %s38, %s39
      %p53 = scmp.eq.s32.totalorder %s31, 1
      %p54 = por %p52, %p53
      %p56 = scmp.ne.s32.totalorder %s39, %s55
      %p57 = scmp.eq.s32.totalorder %s31, 0
      %p58 = por %p56, %p57
      %s60 = sadd.s32 %s59, 1
      %p63 = scmp.eq.s32.totalorder %s25, 1
      %p64 = scmp.ne.s32.totalorder %s59, %s61
      %p65 = scmp.eq.s32.totalorder %s25, 0
      %p66 = por %p64, %p65
      %p67 = scmp.ne.s32.totalorder %s59, %s61
      %p68 = scmp.eq.s32.totalorder %s30, 1
      %p69 = por %p67, %p68
      %p70 = scmp.ne.s32.totalorder %s61, %s62
      %p71 = scmp.eq.s32.totalorder %s30, 0
      %p72 = por %p70, %p71
      %p73 = scmp.ne.s32.totalorder %s61, %s62
      %p74 = scmp.eq.s32.totalorder %s31, 1
      %p75 = por %p73, %p74
      %p77 = scmp.ne.s32.totalorder %s62, %s76
      %p78 = scmp.eq.s32.totalorder %s31, 0
      %p79 = por %p77, %p78
      %s81 = sadd.s32 %s80, 1
      %p84 = scmp.eq.s32.totalorder %s25, 1
      %p85 = scmp.ne.s32.totalorder %s80, %s82
      %p86 = scmp.eq.s32.totalorder %s25, 0
      %p87 = por %p85, %p86
      %p88 = scmp.ne.s32.totalorder %s80, %s82
      %p89 = scmp.eq.s32.totalorder %s30, 1
      %p90 = por %p88, %p89
      %p91 = scmp.ne.s32.totalorder %s82, %s83
      %p92 = scmp.eq.s32.totalorder %s30, 0
      %p93 = por %p91, %p92
      %p94 = scmp.ne.s32.totalorder %s82, %s83
      %p95 = scmp.eq.s32.totalorder %s31, 1
      %p96 = por %p94, %p95
      %p98 = scmp.ne.s32.totalorder %s83, %s97
      %p99 = scmp.eq.s32.totalorder %s31, 0
      %p100 = por %p98, %p99
      %s102 = sadd.s32 %s101, 1
      %p105 = scmp.eq.s32.totalorder %s25, 1
      %p106 = scmp.ne.s32.totalorder %s101, %s103
      %p107 = scmp.eq.s32.totalorder %s25, 0
      %p108 = por %p106, %p107
      %p109 = scmp.ne.s32.totalorder %s101, %s103
      %p110 = scmp.eq.s32.totalorder %s30, 1
      %p111 = por %p109, %p110
      %p112 = scmp.ne.s32.totalorder %s103, %s104
      %p113 = scmp.eq.s32.totalorder %s30, 0
      %p114 = por %p112, %p113
      %p115 = scmp.ne.s32.totalorder %s103, %s104
      %p116 = scmp.eq.s32.totalorder %s31, 1
      %p117 = por %p115, %p116
      %p119 = scmp.ne.s32.totalorder %s104, %s118
      %p120 = scmp.eq.s32.totalorder %s31, 0
      %p121 = por %p119, %p120
      %s123 = sadd.s32 %s122, 1
      %p126 = scmp.eq.s32.totalorder %s25, 1
      %p127 = scmp.ne.s32.totalorder %s122, %s124
      %p128 = scmp.eq.s32.totalorder %s25, 0
      %p129 = por %p127, %p128
      %p130 = scmp.ne.s32.totalorder %s122, %s124
      %p131 = scmp.eq.s32.totalorder %s30, 1
      %p132 = por %p130, %p131
      %p133 = scmp.ne.s32.totalorder %s124, %s125
      %p134 = scmp.eq.s32.totalorder %s30, 0
      %p135 = por %p133, %p134
      %p136 = scmp.ne.s32.totalorder %s124, %s125
      %p137 = scmp.eq.s32.totalorder %s31, 1
      %p138 = por %p136, %p137
      %p140 = scmp.ne.s32.totalorder %s125, %s139
      %p141 = scmp.eq.s32.totalorder %s31, 0
      %p142 = por %p140, %p141
      %s144 = sadd.s32 %s143, 1
      %p147 = scmp.eq.s32.totalorder %s25, 1
      %p148 = scmp.ne.s32.totalorder %s143, %s145
      %p149 = scmp.eq.s32.totalorder %s25, 0
      %p150 = por %p148, %p149
      %p151 = scmp.ne.s32.totalorder %s143, %s145
      %p152 = scmp.eq.s32.totalorder %s30, 1
      %p153 = por %p151, %p152
      %p154 = scmp.ne.s32.totalorder %s145, %s146
      %p155 = scmp.eq.s32.totalorder %s30, 0
      %p156 = por %p154, %p155
      %p157 = scmp.ne.s32.totalorder %s145, %s146
      %p158 = scmp.eq.s32.totalorder %s31, 1
      %p159 = por %p157, %p158
      %p161 = scmp.ne.s32.totalorder %s146, %s160
      %p162 = scmp.eq.s32.totalorder %s31, 0
      %p163 = por %p161, %p162
      %s165 = sadd.s32 %s164, 1
      %p168 = scmp.eq.s32.totalorder %s25, 1
      %p169 = scmp.ne.s32.totalorder %s164, %s166
      %p170 = scmp.eq.s32.totalorder %s25, 0
      %p171 = por %p169, %p170
      %p172 = scmp.ne.s32.totalorder %s164, %s166
      %p173 = scmp.eq.s32.totalorder %s30, 1
      %p174 = por %p172, %p173
      %p175 = scmp.ne.s32.totalorder %s166, %s167
      %p176 = scmp.eq.s32.totalorder %s30, 0
      %p177 = por %p175, %p176
      %p178 = scmp.ne.s32.totalorder %s166, %s167
      %p179 = scmp.eq.s32.totalorder %s31, 1
      %p180 = por %p178, %p179
      %p182 = scmp.ne.s32.totalorder %s167, %s181
      %p183 = scmp.eq.s32.totalorder %s31, 0
      %p184 = por %p182, %p183
      %s186 = sadd.s32 %s185, 1
      %p189 = scmp.eq.s32.totalorder %s25, 1
      %p190 = scmp.ne.s32.totalorder %s185, %s187
      %p191 = scmp.eq.s32.totalorder %s25, 0
      %p192 = por %p190, %p191
      %p193 = scmp.ne.s32.totalorder %s185, %s187
      %p194 = scmp.eq.s32.totalorder %s30, 1
      %p195 = por %p193, %p194
      %p196 = scmp.ne.s32.totalorder %s187, %s188
      %p197 = scmp.eq.s32.totalorder %s30, 0
      %p198 = por %p196, %p197
      %p199 = scmp.ne.s32.totalorder %s187, %s188
      %p200 = scmp.eq.s32.totalorder %s31, 1
      %p201 = por %p199, %p200
      %p203 = scmp.ne.s32.totalorder %s188, %s202
      %p204 = scmp.eq.s32.totalorder %s31, 0
      %p205 = por %p203, %p204
      %s207 = sadd.s32 %s206, 1
      %p210 = scmp.eq.s32.totalorder %s25, 1
      %p211 = scmp.ne.s32.totalorder %s206, %s208
      %p212 = scmp.eq.s32.totalorder %s25, 0
      %p213 = por %p211, %p212
      %p214 = scmp.ne.s32.totalorder %s206, %s208
      %p215 = scmp.eq.s32.totalorder %s30, 1
      %p216 = por %p214, %p215
      %p217 = scmp.ne.s32.totalorder %s208, %s209
      %p218 = scmp.eq.s32.totalorder %s30, 0
      %p219 = por %p217, %p218
      %p220 = scmp.ne.s32.totalorder %s208, %s209
      %p221 = scmp.eq.s32.totalorder %s31, 1
      %p222 = por %p220, %p221
      %p224 = scmp.ne.s32.totalorder %s209, %s223
      %p225 = scmp.eq.s32.totalorder %s31, 0
      %p226 = por %p224, %p225
      %s228 = sadd.s32 %s227, 1
      %p231 = scmp.eq.s32.totalorder %s25, 1
      %p232 = scmp.ne.s32.totalorder %s227, %s229
      %p233 = scmp.eq.s32.totalorder %s25, 0
      %p234 = por %p232, %p233
      %p235 = scmp.ne.s32.totalorder %s227, %s229
      %p236 = scmp.eq.s32.totalorder %s30, 1
      %p237 = por %p235, %p236
      %p238 = scmp.ne.s32.totalorder %s229, %s230
      %p239 = scmp.eq.s32.totalorder %s30, 0
      %p240 = por %p238, %p239
      %p241 = scmp.ne.s32.totalorder %s229, %s230
      %p242 = scmp.eq.s32.totalorder %s31, 1
      %p243 = por %p241, %p242
      %p245 = scmp.ne.s32.totalorder %s230, %s244
      %p246 = scmp.eq.s32.totalorder %s31, 0
      %p247 = por %p245, %p246
      %s249 = sadd.s32 %s248, 1
      %p252 = scmp.eq.s32.totalorder %s25, 1
      %p253 = scmp.ne.s32.totalorder %s248, %s250
      %p254 = scmp.eq.s32.totalorder %s25, 0
      %p255 = por %p253, %p254
      %p256 = scmp.ne.s32.totalorder %s248, %s250
      %p257 = scmp.eq.s32.totalorder %s30, 1
      %p258 = por %p256, %p257
      %p259 = scmp.ne.s32.totalorder %s250, %s251
      %p260 = scmp.eq.s32.totalorder %s30, 0
      %p261 = por %p259, %p260
      %p262 = scmp.ne.s32.totalorder %s250, %s251
      %p263 = scmp.eq.s32.totalorder %s31, 1
      %p264 = por %p262, %p263
      %p266 = scmp.ne.s32.totalorder %s251, %s265
      %p267 = scmp.eq.s32.totalorder %s31, 0
      %p268 = por %p266, %p267
      %s270 = sadd.s32 %s269, 1
      %p273 = scmp.eq.s32.totalorder %s25, 1
      %p274 = scmp.ne.s32.totalorder %s269, %s271
      %p275 = scmp.eq.s32.totalorder %s25, 0
      %p276 = por %p274, %p275
      %p277 = scmp.ne.s32.totalorder %s269, %s271
      %p278 = scmp.eq.s32.totalorder %s30, 1
      %p279 = por %p277, %p278
      %p280 = scmp.ne.s32.totalorder %s271, %s272
      %p281 = scmp.eq.s32.totalorder %s30, 0
      %p282 = por %p280, %p281
      %p283 = scmp.ne.s32.totalorder %s271, %s272
      %p284 = scmp.eq.s32.totalorder %s31, 1
      %p285 = por %p283, %p284
      %p287 = scmp.ne.s32.totalorder %s272, %s286
      %p288 = scmp.eq.s32.totalorder %s31, 0
      %p289 = por %p287, %p288
      %s291 = sadd.s32 %s290, 1
      %p294 = scmp.eq.s32.totalorder %s25, 1
      %p295 = scmp.ne.s32.totalorder %s290, %s292
      %p296 = scmp.eq.s32.totalorder %s25, 0
      %p297 = por %p295, %p296
      %p298 = scmp.ne.s32.totalorder %s290, %s292
      %p299 = scmp.eq.s32.totalorder %s30, 1
      %p300 = por %p298, %p299
      %p301 = scmp.ne.s32.totalorder %s292, %s293
      %p302 = scmp.eq.s32.totalorder %s30, 0
      %p303 = por %p301, %p302
      %p304 = scmp.ne.s32.totalorder %s292, %s293
      %p305 = scmp.eq.s32.totalorder %s31, 1
      %p306 = por %p304, %p305
      %p308 = scmp.ne.s32.totalorder %s293, %s307
      %p309 = scmp.eq.s32.totalorder %s31, 0
      %p310 = por %p308, %p309
      %s312 = sadd.s32 %s311, 1
      %p315 = scmp.eq.s32.totalorder %s25, 1
      %p316 = scmp.ne.s32.totalorder %s311, %s313
      %p317 = scmp.eq.s32.totalorder %s25, 0
      %p318 = por %p316, %p317
      %p319 = scmp.ne.s32.totalorder %s311, %s313
      %p320 = scmp.eq.s32.totalorder %s30, 1
      %p321 = por %p319, %p320
      %p322 = scmp.ne.s32.totalorder %s313, %s314
      %p323 = scmp.eq.s32.totalorder %s30, 0
      %p324 = por %p322, %p323
      %p325 = scmp.ne.s32.totalorder %s313, %s314
      %p326 = scmp.eq.s32.totalorder %s31, 1
      %p327 = por %p325, %p326
      %p329 = scmp.ne.s32.totalorder %s314, %s328
      %p330 = scmp.eq.s32.totalorder %s31, 0
      %p331 = por %p329, %p330
      %s332 = ssub.s32 %s25, %s32
      %p333 = scmp.eq.s32.totalorder %s332, 0
      %s335 = sadd.s32 %s334, 1
      %s336 = scalar_select %p333, %s334, %s335
      %p339 = pneg %p333
      %p340 = scmp.eq.s32.totalorder %s25, 1
      %p341 = por %p339, %p340
      %p342 = scmp.ne.s32.totalorder %s334, %s337
      %p343 = scmp.eq.s32.totalorder %s25, 0
      %p344 = por %p342, %p343
      %p345 = scmp.ne.s32.totalorder %s334, %s337
      %p346 = scmp.eq.s32.totalorder %s30, 1
      %p347 = por %p345, %p346
      %p348 = scmp.ne.s32.totalorder %s337, %s338
      %p349 = scmp.eq.s32.totalorder %s30, 0
      %p350 = por %p348, %p349
      %p351 = scmp.ne.s32.totalorder %s337, %s338
      %p352 = scmp.eq.s32.totalorder %s31, 1
      %p353 = por %p351, %p352
      %p355 = scmp.ne.s32.totalorder %s338, %s354
      %p356 = scmp.eq.s32.totalorder %s31, 0
      %p357 = por %p355, %p356
      %p358 = scmp.le.s32.totalorder 1, %s25
      %p359 = scmp.lt.s32.totalorder %s25, 3
      %p360 = pnand %p358, %p359
      %p361 = pneg %p360
      // Predicated region
      $region9: #{tpu_custom_call.1} parent=5 // pred_check
        _
      $region10: #{tpu_custom_call.1} parent=5 // pred_check_branch
        %363 = sbr.rel (%p360) target = $region12
      $region11: #{tpu_custom_call.1} parent=5 // pred_region
        %s364 = ssub.s32 %s25, 1
        // Predicated region
        $region13: #{tpu_custom_call.1} parent=11 // pred_check
          %p365 = pneg %p72
        $region14: #{tpu_custom_call.1} parent=11 // pred_check_branch
          %367 = sbr.rel (%p365) target = $region16
        $region15: #{tpu_custom_call.1} parent=11 // pred_region
          %s369 = ssub.s32 128, 128
          %370 = vsyncadd [#allocation3], %s369
          %s372 = sshll.u32 [#allocation2], 4
          %s373 = int_to_ptr.vmem [resolvable:$true] %s372
          %375 = dma.hbm_to_vmem [thread:$0]  %s1, 128, %s373, [#allocation3]
        $region16: #{tpu_custom_call.1} parent=11 // pred_fallthru
          _
        // Predicated region
        $region17: #{tpu_custom_call.1} parent=11 // pred_check
          %p376 = pneg %p93
        $region18: #{tpu_custom_call.1} parent=11 // pred_check_branch
          %378 = sbr.rel (%p376) target = $region20
        $region19: #{tpu_custom_call.1} parent=11 // pred_region
          _
        $region20: #{tpu_custom_call.1} parent=11 // pred_fallthru
          _
        // Predicated region
        $region21: #{tpu_custom_call.1} parent=11 // pred_check
          %p379 = pneg %p114
        $region22: #{tpu_custom_call.1} parent=11 // pred_check_branch
          %381 = sbr.rel (%p379) target = $region24
        $region23: #{tpu_custom_call.1} parent=11 // pred_region
          %s383 = ssub.s32 16, 16
          %384 = vsyncadd [#allocation6], %s383
          %s386 = sshll.u32 [#allocation5], 4
          %s387 = int_to_ptr.vmem [resolvable:$true] %s386
          %389 = dma.hbm_to_vmem [thread:$0]  %s3, 16, %s387, [#allocation6]
        $region24: #{tpu_custom_call.1} parent=11 // pred_fallthru
          _
        // Predicated region
        $region25: #{tpu_custom_call.1} parent=11 // pred_check
          %p390 = pneg %p135
        $region26: #{tpu_custom_call.1} parent=11 // pred_check_branch
          %392 = sbr.rel (%p390) target = $region28
        $region27: #{tpu_custom_call.1} parent=11 // pred_region
          _
        $region28: #{tpu_custom_call.1} parent=11 // pred_fallthru
          _
        // Predicated region
        $region29: #{tpu_custom_call.1} parent=11 // pred_check
          %p393 = pneg %p156
        $region30: #{tpu_custom_call.1} parent=11 // pred_check_branch
          %395 = sbr.rel (%p393) target = $region32
        $region31: #{tpu_custom_call.1} parent=11 // pred_region
          _
        $region32: #{tpu_custom_call.1} parent=11 // pred_fallthru
          _
        // Predicated region
        $region33: #{tpu_custom_call.1} parent=11 // pred_check
          %p396 = pneg %p177
        $region34: #{tpu_custom_call.1} parent=11 // pred_check_branch
          %398 = sbr.rel (%p396) target = $region36
        $region35: #{tpu_custom_call.1} parent=11 // pred_region
          _
        $region36: #{tpu_custom_call.1} parent=11 // pred_fallthru
          _
        // Predicated region
        $region37: #{tpu_custom_call.1} parent=11 // pred_check
          %p399 = pneg %p198
        $region38: #{tpu_custom_call.1} parent=11 // pred_check_branch
          %401 = sbr.rel (%p399) target = $region40
        $region39: #{tpu_custom_call.1} parent=11 // pred_region
          _
        $region40: #{tpu_custom_call.1} parent=11 // pred_fallthru
          _
        // Predicated region
        $region41: #{tpu_custom_call.1} parent=11 // pred_check
          %p402 = pneg %p219
        $region42: #{tpu_custom_call.1} parent=11 // pred_check_branch
          %404 = sbr.rel (%p402) target = $region44
        $region43: #{tpu_custom_call.1} parent=11 // pred_region
          _
        $region44: #{tpu_custom_call.1} parent=11 // pred_fallthru
          _
        // Predicated region
        $region45: #{tpu_custom_call.1} parent=11 // pred_check
          %p405 = pneg %p240
        $region46: #{tpu_custom_call.1} parent=11 // pred_check_branch
          %407 = sbr.rel (%p405) target = $region48
        $region47: #{tpu_custom_call.1} parent=11 // pred_region
          _
        $region48: #{tpu_custom_call.1} parent=11 // pred_fallthru
          _
        // Predicated region
        $region49: #{tpu_custom_call.1} parent=11 // pred_check
          %p408 = pneg %p261
        $region50: #{tpu_custom_call.1} parent=11 // pred_check_branch
          %410 = sbr.rel (%p408) target = $region52
        $region51: #{tpu_custom_call.1} parent=11 // pred_region
          _
        $region52: #{tpu_custom_call.1} parent=11 // pred_fallthru
          _
        // Predicated region
        $region53: #{tpu_custom_call.1} parent=11 // pred_check
          %p411 = pneg %p282
        $region54: #{tpu_custom_call.1} parent=11 // pred_check_branch
          %413 = sbr.rel (%p411) target = $region56
        $region55: #{tpu_custom_call.1} parent=11 // pred_region
          _
        $region56: #{tpu_custom_call.1} parent=11 // pred_fallthru
          _
        // Predicated region
        $region57: #{tpu_custom_call.1} parent=11 // pred_check
          %p414 = pneg %p303
        $region58: #{tpu_custom_call.1} parent=11 // pred_check_branch
          %416 = sbr.rel (%p414) target = $region60
        $region59: #{tpu_custom_call.1} parent=11 // pred_region
          _
        $region60: #{tpu_custom_call.1} parent=11 // pred_fallthru
          _
        // Predicated region
        $region61: #{tpu_custom_call.1} parent=11 // pred_check
          %p417 = pneg %p324
        $region62: #{tpu_custom_call.1} parent=11 // pred_check_branch
          %419 = sbr.rel (%p417) target = $region64
        $region63: #{tpu_custom_call.1} parent=11 // pred_region
          _
        $region64: #{tpu_custom_call.1} parent=11 // pred_fallthru
          _
      $region12: #{tpu_custom_call.1} parent=5 // pred_fallthru
        _
      %p420 = scmp.lt.s32.totalorder %s25, 2
      // Predicated region
      $region65: #{tpu_custom_call.1} parent=5 // pred_check
        %p421 = pneg %p420
      $region66: #{tpu_custom_call.1} parent=5 // pred_check_branch
        %423 = sbr.rel (%p421) target = $region68
      $region67: #{tpu_custom_call.1} parent=5 // pred_region
        // Predicated region
        $region69: #{tpu_custom_call.1} parent=67 // pred_check
          %p424 = pneg %p45
        $region70: #{tpu_custom_call.1} parent=67 // pred_check_branch
          %426 = sbr.rel (%p424) target = $region72
        $region71: #{tpu_custom_call.1} parent=67 // pred_region
          %p427 = scmp.lt.s32.totalorder %s25, 1
          %s428 = scalar_select %p427, %s25, 1
          %s429 = smul.addr %s428, 2
          %s430 = smul.addr %s429, 8
          %s431 = scalar_lea.vmem %s0, %s430
        $region72: #{tpu_custom_call.1} parent=67 // pred_fallthru
          _
      $region68: #{tpu_custom_call.1} parent=5 // pred_fallthru
        _
      %p432 = scmp.le.s32.totalorder 1, %s25
      %p433 = scmp.lt.s32.totalorder %s25, 3
      %p434 = pnand %p432, %p433
      %p435 = pneg %p434
      // Predicated region
      $region73: #{tpu_custom_call.1} parent=5 // pred_check
        _
      $region74: #{tpu_custom_call.1} parent=5 // pred_check_branch
        %437 = sbr.rel (%p434) target = $region76
      $region75: #{tpu_custom_call.1} parent=5 // pred_region
        %s438 = ssub.s32 %s25, 1
        // Predicated region
        $region77: #{tpu_custom_call.1} parent=75 // pred_check
          %p439 = pneg %p72
        $region78: #{tpu_custom_call.1} parent=75 // pred_check_branch
          %441 = sbr.rel (%p439) target = $region80
        $region79: #{tpu_custom_call.1} parent=75 // pred_region
          %442 = dma.done [#allocation3], 128
        $region80: #{tpu_custom_call.1} parent=75 // pred_fallthru
          _
        // Predicated region
        $region81: #{tpu_custom_call.1} parent=75 // pred_check
          %p443 = pneg %p114
        $region82: #{tpu_custom_call.1} parent=75 // pred_check_branch
          %445 = sbr.rel (%p443) target = $region84
        $region83: #{tpu_custom_call.1} parent=75 // pred_region
          %446 = dma.done [#allocation6], 16
        $region84: #{tpu_custom_call.1} parent=75 // pred_fallthru
          _
        %p447 = scmp.lt.s32.totalorder %s30, 1
        %s448 = scalar_select %p447, %s30, 1
        %s449 = smul.addr %s448, 2
        %s450 = smul.addr %s449, 8
        %s451 = scalar_lea.vmem %s0, %s450
        %p452 = pneg %p51
        %p453 = pneg %p48
        %p454 = pneg %p72
        %p455 = pneg %p69
        %p456 = pneg %p93
        %p457 = pneg %p90
        %p458 = pneg %p114
        %p459 = pneg %p111
        %p460 = pneg %p135
        %p461 = pneg %p132
        %p462 = pneg %p156
        %p463 = pneg %p153
        %p464 = pneg %p177
        %p465 = pneg %p174
        %p466 = pneg %p198
        %p467 = pneg %p195
        %p468 = pneg %p219
        %p469 = pneg %p216
        %p470 = pneg %p240
        %p471 = pneg %p237
        %p472 = pneg %p261
        %p473 = pneg %p258
        %p474 = pneg %p282
        %p475 = pneg %p279
        %p476 = pneg %p303
        %p477 = pneg %p300
        %p478 = pneg %p324
        %p479 = pneg %p321
        %p480 = pneg %p350
        %p481 = pneg %p347
        %s482 = sand.u32 %s337, 1
        %s483 = scalar_lea.sflag [#allocation4], %s482
        %s484 = sand.u32 %s337, 1
        %s485 = smul.addr %s484, 8
        %s486 = scalar_lea.vmem [#allocation7], %s485
        %p487 = scmp.lt.s32.totalorder %s30, 1
        %s488 = scalar_select %p487, %s30, 1
        %s489 = smul.addr %s488, 2
        %s490 = smul.addr %s489, 8
        %s491 = scalar_lea.vmem %s0, %s490
        %v492 = vld [vmem:[%s491] sm:$0xff]
        %v493 = vld [vmem:[%s491 + $0x8] sm:$0xff]
        %v494 = vld [vmem:[#allocation2] sm:$0xff]
        %v495 = vld [vmem:[%s5] sm:$0xff]
        %v496 = vld [vmem:[%s5 + $0x8] sm:$0xff]
        %v497 = vld [vmem:[%s5 + $0x10] sm:$0xff]
        %v498 = vld [vmem:[%s5 + $0x18] sm:$0xff]
        %v499 = vld [vmem:[%s10 + $0x3] sm:$0x1]
        %v500 = vlaneseq
        %v501 = vshrl.u32 %v500, 7
        %v502 = vsub.s32 0, %v501
        %v503 = vrot.slane %v499, %v502
        %vm504 = vcmask 261120
        %v506 = vsel %vm504, %v494, 0
        %508 = vmatprep.subr.mxu0 0.0
        %509 = vmatpush1.msra.mxu0 %v495
        %510 = vmatprep.subr.mxu0 0.0
        %511 = vmatpush1.msra.mxu0 %v496
        %512 = vmatprep.subr.mxu0 0.0
        %513 = vmatpush1.msra.mxu0 %v497
        %514 = vmatprep.subr.mxu0 0.0
        %515 = vmatpush1.msra.mxu0 %v498
        %516 = vmatprep.subr.mxu0 0.0
        %517 = vmatpush1.msra.mxu0 0.0
        %518 = vmatprep.subr.mxu0 0.0
        %519 = vmatpush1.msra.mxu0 0.0
        %520 = vmatprep.subr.mxu0 0.0
        %521 = vmatpush1.msra.mxu0 0.0
        %522 = vmatprep.subr.mxu0 0.0
        %523 = vmatpush1.msra.mxu0 0.0
        %524 = vmatprep.subr.mxu0 0.0
        %525 = vmatpush1.msra.mxu0 0.0
        %526 = vmatprep.subr.mxu0 0.0
        %527 = vmatpush1.msra.mxu0 0.0
        %528 = vmatprep.subr.mxu0 0.0
        %529 = vmatpush1.msra.mxu0 0.0
        %530 = vmatprep.subr.mxu0 0.0
        %531 = vmatpush1.msra.mxu0 0.0
        %532 = vmatprep.subr.mxu0 0.0
        %533 = vmatpush1.msra.mxu0 0.0
        %534 = vmatprep.subr.mxu0 0.0
        %535 = vmatpush1.msra.mxu0 0.0
        %536 = vmatprep.subr.mxu0 0.0
        %537 = vmatpush1.msra.mxu0 0.0
        %538 = vmatprep.subr.mxu0 0.0
        %539 = vmatpush1.msra.mxu0 0.0
        %540 = vmatprep.subr.mxu0 0.0
        %541 = vmatpush1.msra.mxu0 0.0
        %542 = vmatprep.subr.mxu0 0.0
        %543 = vmatpush1.msra.mxu0 0.0
        %544 = vmatprep.subr.mxu0 0.0
        %545 = vmatpush1.msra.mxu0 0.0
        %546 = vmatprep.subr.mxu0 0.0
        %547 = vmatpush1.msra.mxu0 0.0
        %548 = vmatprep.subr.mxu0 0.0
        %549 = vmatpush1.msra.mxu0 0.0
        %550 = vmatprep.subr.mxu0 0.0
        %551 = vmatpush1.msra.mxu0 0.0
        %552 = vmatprep.subr.mxu0 0.0
        %553 = vmatpush1.msra.mxu0 0.0
        %554 = vmatprep.subr.mxu0 0.0
        %555 = vmatpush1.msra.mxu0 0.0
        %556 = vmatprep.subr.mxu0 0.0
        %557 = vmatpush1.msra.mxu0 0.0
        %558 = vmatprep.subr.mxu0 0.0
        %559 = vmatpush1.msra.mxu0 0.0
        %560 = vmatprep.subr.mxu0 0.0
        %561 = vmatpush1.msra.mxu0 0.0
        %562 = vmatprep.subr.mxu0 0.0
        %563 = vmatpush1.msra.mxu0 0.0
        %564 = vmatprep.subr.mxu0 0.0
        %565 = vmatpush1.msra.mxu0 0.0
        %566 = vmatprep.subr.mxu0 0.0
        %567 = vmatpush1.msra.mxu0 0.0
        %568 = vmatprep.subr.mxu0 0.0
        %569 = vmatpush1.msra.mxu0 0.0
        %570 = vmatprep.subr.mxu0 0.0
        %571 = vmatpush1.msra.mxu0 0.0
        %572 = vmatprep.mubr.f32.mxu0 0.0
        %573 = vmatmul.mubr.f32.gmra.mrb[0].mxu0 %v506
        %v574 = vpop.f32.mrb[0].mxu0
        %v575 = vadd.f32 %v503, %v574
        %v576 = vpop.f32.mrb[0].mxu0
        %577 = vdwg.mxu0
        %v578 = vld [vmem:[%s6] sm:$0x7]
        %v579 = vld [vmem:[%s11] sm:$0x1]
        %v580 = vlaneseq
        %v581 = vshrl.u32 %v580, 7
        %v582 = vsub.s32 0, %v581
        %v583 = vrot.slane %v579, %v582
        %vm584 = vcmask 23552
        %v586 = vsel %vm584, %v492, 0
        %v589 = vsel %vm584, %v493, 0
        %vm591 = vcmask 1042432
        %v593 = vsel %vm591, %v578, 0
        %595 = vmatprep.subr.mxu0 0.0
        %596 = vmatpush1.msra.mxu0 %v593
        %597 = vmatprep.subr.mxu0 0.0
        %598 = vmatpush1.msra.mxu0 0.0
        %599 = vmatprep.subr.mxu0 0.0
        %600 = vmatpush1.msra.mxu0 0.0
        %601 = vmatprep.subr.mxu0 0.0
        %602 = vmatpush1.msra.mxu0 0.0
        %603 = vmatprep.subr.mxu0 0.0
        %604 = vmatpush1.msra.mxu0 0.0
        %605 = vmatprep.subr.mxu0 0.0
        %606 = vmatpush1.msra.mxu0 0.0
        %607 = vmatprep.subr.mxu0 0.0
        %608 = vmatpush1.msra.mxu0 0.0
        %609 = vmatprep.subr.mxu0 0.0
        %610 = vmatpush1.msra.mxu0 0.0
        %611 = vmatprep.subr.mxu0 0.0
        %612 = vmatpush1.msra.mxu0 0.0
        %613 = vmatprep.subr.mxu0 0.0
        %614 = vmatpush1.msra.mxu0 0.0
        %615 = vmatprep.subr.mxu0 0.0
        %616 = vmatpush1.msra.mxu0 0.0
        %617 = vmatprep.subr.mxu0 0.0
        %618 = vmatpush1.msra.mxu0 0.0
        %619 = vmatprep.subr.mxu0 0.0
        %620 = vmatpush1.msra.mxu0 0.0
        %621 = vmatprep.subr.mxu0 0.0
        %622 = vmatpush1.msra.mxu0 0.0
        %623 = vmatprep.subr.mxu0 0.0
        %624 = vmatpush1.msra.mxu0 0.0
        %625 = vmatprep.subr.mxu0 0.0
        %626 = vmatpush1.msra.mxu0 0.0
        %627 = vmatprep.subr.mxu0 0.0
        %628 = vmatpush1.msra.mxu0 0.0
        %629 = vmatprep.subr.mxu0 0.0
        %630 = vmatpush1.msra.mxu0 0.0
        %631 = vmatprep.subr.mxu0 0.0
        %632 = vmatpush1.msra.mxu0 0.0
        %633 = vmatprep.subr.mxu0 0.0
        %634 = vmatpush1.msra.mxu0 0.0
        %635 = vmatprep.subr.mxu0 0.0
        %636 = vmatpush1.msra.mxu0 0.0
        %637 = vmatprep.subr.mxu0 0.0
        %638 = vmatpush1.msra.mxu0 0.0
        %639 = vmatprep.subr.mxu0 0.0
        %640 = vmatpush1.msra.mxu0 0.0
        %641 = vmatprep.subr.mxu0 0.0
        %642 = vmatpush1.msra.mxu0 0.0
        %643 = vmatprep.subr.mxu0 0.0
        %644 = vmatpush1.msra.mxu0 0.0
        %645 = vmatprep.subr.mxu0 0.0
        %646 = vmatpush1.msra.mxu0 0.0
        %647 = vmatprep.subr.mxu0 0.0
        %648 = vmatpush1.msra.mxu0 0.0
        %649 = vmatprep.subr.mxu0 0.0
        %650 = vmatpush1.msra.mxu0 0.0
        %651 = vmatprep.subr.mxu0 0.0
        %652 = vmatpush1.msra.mxu0 0.0
        %653 = vmatprep.subr.mxu0 0.0
        %654 = vmatpush1.msra.mxu0 0.0
        %655 = vmatprep.subr.mxu0 0.0
        %656 = vmatpush1.msra.mxu0 0.0
        %657 = vmatprep.subr.mxu0 0.0
        %658 = vmatpush1.msra.mxu0 0.0
        %659 = vmatprep.mubr.f32.mxu0 0.0
        %660 = vmatmul.mubr.f32.gmra.mrb[0].mxu0 %v586
        %v661 = vpop.f32.mrb[0].mxu0
        %v662 = vadd.f32 %v583, %v661
        %v663 = vpop.f32.mrb[0].mxu0
        %664 = vmatprep.mubr.f32.mxu0 0.0
        %665 = vmatmul.mubr.f32.gmra.mrb[0].mxu0 %v589
        %v666 = vpop.f32.mrb[0].mxu0
        %v667 = vadd.f32 %v583, %v666
        %v668 = vpop.f32.mrb[0].mxu0
        %669 = vdwg.mxu0
        %v670 = vld [vmem:[%s7] sm:$0xff]
        %v671 = vld [vmem:[%s7 + $0x8] sm:$0xff]
        %v672 = vld [vmem:[%s7 + $0x10] sm:$0xff]
        %v673 = vld [vmem:[%s7 + $0x18] sm:$0xff]
        %v674 = vld [vmem:[%s10 + $0x4] sm:$0x1]
        %vm675 = vcmask 64512
        %v677 = vsel %vm675, %v575, 0
        %v680 = vsel %vm675, %v662, 0
        %v683 = vsel %vm675, %v667, 0
        %685 = vmatprep.subr.mxu0 0.0
        %686 = vmatpush1.xpose.msra.mxu0 %v680
        %687 = vmatprep.subr.mxu0 0.0
        %688 = vmatpush1.xpose.msra.mxu0 %v683
        %689 = vmatprep.subr.mxu0 0.0
        %690 = vmatpush1.xpose.msra.mxu0 0.0
        %691 = vmatprep.subr.mxu0 0.0
        %692 = vmatpush1.xpose.msra.mxu0 0.0
        %693 = vmatprep.subr.mxu0 0.0
        %694 = vmatpush1.xpose.msra.mxu0 0.0
        %695 = vmatprep.subr.mxu0 0.0
        %696 = vmatpush1.xpose.msra.mxu0 0.0
        %697 = vmatprep.subr.mxu0 0.0
        %698 = vmatpush1.xpose.msra.mxu0 0.0
        %699 = vmatprep.subr.mxu0 0.0
        %700 = vmatpush1.xpose.msra.mxu0 0.0
        %701 = vmatprep.subr.mxu0 0.0
        %702 = vmatpush1.xpose.msra.mxu0 0.0
        %703 = vmatprep.subr.mxu0 0.0
        %704 = vmatpush1.xpose.msra.mxu0 0.0
        %705 = vmatprep.subr.mxu0 0.0
        %706 = vmatpush1.xpose.msra.mxu0 0.0
        %707 = vmatprep.subr.mxu0 0.0
        %708 = vmatpush1.xpose.msra.mxu0 0.0
        %709 = vmatprep.subr.mxu0 0.0
        %710 = vmatpush1.xpose.msra.mxu0 0.0
        %711 = vmatprep.subr.mxu0 0.0
        %712 = vmatpush1.xpose.msra.mxu0 0.0
        %713 = vmatprep.subr.mxu0 0.0
        %714 = vmatpush1.xpose.msra.mxu0 0.0
        %715 = vmatprep.subr.mxu0 0.0
        %716 = vmatpush1.xpose.msra.mxu0 0.0
        %717 = vmatprep.subr.mxu0 0.0
        %718 = vmatpush1.xpose.msra.mxu0 0.0
        %719 = vmatprep.subr.mxu0 0.0
        %720 = vmatpush1.xpose.msra.mxu0 0.0
        %721 = vmatprep.subr.mxu0 0.0
        %722 = vmatpush1.xpose.msra.mxu0 0.0
        %723 = vmatprep.subr.mxu0 0.0
        %724 = vmatpush1.xpose.msra.mxu0 0.0
        %725 = vmatprep.subr.mxu0 0.0
        %726 = vmatpush1.xpose.msra.mxu0 0.0
        %727 = vmatprep.subr.mxu0 0.0
        %728 = vmatpush1.xpose.msra.mxu0 0.0
        %729 = vmatprep.subr.mxu0 0.0
        %730 = vmatpush1.xpose.msra.mxu0 0.0
        %731 = vmatprep.subr.mxu0 0.0
        %732 = vmatpush1.xpose.msra.mxu0 0.0
        %733 = vmatprep.subr.mxu0 0.0
        %734 = vmatpush1.xpose.msra.mxu0 0.0
        %735 = vmatprep.subr.mxu0 0.0
        %736 = vmatpush1.xpose.msra.mxu0 0.0
        %737 = vmatprep.subr.mxu0 0.0
        %738 = vmatpush1.xpose.msra.mxu0 0.0
        %739 = vmatprep.subr.mxu0 0.0
        %740 = vmatpush1.xpose.msra.mxu0 0.0
        %741 = vmatprep.subr.mxu0 0.0
        %742 = vmatpush1.xpose.msra.mxu0 0.0
        %743 = vmatprep.subr.mxu0 0.0
        %744 = vmatpush1.xpose.msra.mxu0 0.0
        %745 = vmatprep.subr.mxu0 0.0
        %746 = vmatpush1.xpose.msra.mxu0 0.0
        %747 = vmatprep.subr.mxu0 0.0
        %748 = vmatpush1.xpose.msra.mxu0 0.0
        %749 = vmatprep.mubr.f32.mxu0 0.0
        %750 = vmatmul.mubr.f32.gmra.mrb[0].mxu0 %v677
        %v751 = vpop.f32.mrb[0].mxu0
        %v752 = vadd.f32 0.0, %v751
        %v753 = vpop.f32.mrb[0].mxu0
        %754 = vdwg.mxu0
        %vm755 = vcmask 130048
        %v756 = vsel %vm755, %v752, -inf
        %757 = vmax.xlane.f32.xlu0 %v756
        %v758 = vpop.xlane.xlu0 %757
        %v759 = vsub.f32 %v752, %v758
        %v760 = vmul.f32 %v759, 1.442695
        %v761 = vpow.pop %v760
        %v762 = vsel %vm755, %v761, 0.0
        %763 = vadd.xlane.f32.xlu0 %v762
        %v764 = vpop.xlane.xlu0 %763
        %v765 = vrcp.pop %v764
        %v766 = vmul.f32 %v761, %v765
        %767 = vrot.lane.b32.xlu0 %v662, 96
        %v768 = vpop.permute.xlu0 %767
        %769 = vrot.lane.b32.xlu0 %v667, 96
        %v770 = vpop.permute.xlu0 %769
        %v774 = vsel %vm755, %v766, 0
        %776 = vmatprep.subr.mxu0 0.0
        %777 = vmatpush1.msra.mxu0 %v768
        %778 = vmatprep.subr.mxu0 0.0
        %779 = vmatpush1.msra.mxu0 %v770
        %780 = vmatprep.subr.mxu0 0.0
        %781 = vmatpush1.msra.mxu0 0.0
        %782 = vmatprep.subr.mxu0 0.0
        %783 = vmatpush1.msra.mxu0 0.0
        %784 = vmatprep.subr.mxu0 0.0
        %785 = vmatpush1.msra.mxu0 0.0
        %786 = vmatprep.subr.mxu0 0.0
        %787 = vmatpush1.msra.mxu0 0.0
        %788 = vmatprep.subr.mxu0 0.0
        %789 = vmatpush1.msra.mxu0 0.0
        %790 = vmatprep.subr.mxu0 0.0
        %791 = vmatpush1.msra.mxu0 0.0
        %792 = vmatprep.subr.mxu0 0.0
        %793 = vmatpush1.msra.mxu0 0.0
        %794 = vmatprep.subr.mxu0 0.0
        %795 = vmatpush1.msra.mxu0 0.0
        %796 = vmatprep.subr.mxu0 0.0
        %797 = vmatpush1.msra.mxu0 0.0
        %798 = vmatprep.subr.mxu0 0.0
        %799 = vmatpush1.msra.mxu0 0.0
        %800 = vmatprep.subr.mxu0 0.0
        %801 = vmatpush1.msra.mxu0 0.0
        %802 = vmatprep.subr.mxu0 0.0
        %803 = vmatpush1.msra.mxu0 0.0
        %804 = vmatprep.subr.mxu0 0.0
        %805 = vmatpush1.msra.mxu0 0.0
        %806 = vmatprep.subr.mxu0 0.0
        %807 = vmatpush1.msra.mxu0 0.0
        %808 = vmatprep.subr.mxu0 0.0
        %809 = vmatpush1.msra.mxu0 0.0
        %810 = vmatprep.subr.mxu0 0.0
        %811 = vmatpush1.msra.mxu0 0.0
        %812 = vmatprep.subr.mxu0 0.0
        %813 = vmatpush1.msra.mxu0 0.0
        %814 = vmatprep.subr.mxu0 0.0
        %815 = vmatpush1.msra.mxu0 0.0
        %816 = vmatprep.subr.mxu0 0.0
        %817 = vmatpush1.msra.mxu0 0.0
        %818 = vmatprep.subr.mxu0 0.0
        %819 = vmatpush1.msra.mxu0 0.0
        %820 = vmatprep.subr.mxu0 0.0
        %821 = vmatpush1.msra.mxu0 0.0
        %822 = vmatprep.subr.mxu0 0.0
        %823 = vmatpush1.msra.mxu0 0.0
        %824 = vmatprep.subr.mxu0 0.0
        %825 = vmatpush1.msra.mxu0 0.0
        %826 = vmatprep.subr.mxu0 0.0
        %827 = vmatpush1.msra.mxu0 0.0
        %828 = vmatprep.subr.mxu0 0.0
        %829 = vmatpush1.msra.mxu0 0.0
        %830 = vmatprep.subr.mxu0 0.0
        %831 = vmatpush1.msra.mxu0 0.0
        %832 = vmatprep.subr.mxu0 0.0
        %833 = vmatpush1.msra.mxu0 0.0
        %834 = vmatprep.subr.mxu0 0.0
        %835 = vmatpush1.msra.mxu0 0.0
        %836 = vmatprep.subr.mxu0 0.0
        %837 = vmatpush1.msra.mxu0 0.0
        %838 = vmatprep.subr.mxu0 0.0
        %839 = vmatpush1.msra.mxu0 0.0
        %840 = vmatprep.mubr.f32.mxu0 0.0
        %841 = vmatmul.mubr.f32.gmra.mrb[0].mxu0 %v774
        %v842 = vpop.f32.mrb[0].mxu0
        %v843 = vadd.f32 0.0, %v842
        %v844 = vpop.f32.mrb[0].mxu0
        %845 = vdwg.mxu0
        %846 = vrot.lane.b32.xlu0 %v575, 120
        %v847 = vpop.permute.xlu0 %846
        %848 = vrot.lane.b32.xlu0 %v662, 120
        %v849 = vpop.permute.xlu0 %848
        %850 = vrot.lane.b32.xlu0 %v667, 120
        %v851 = vpop.permute.xlu0 %850
        %v852 = vsel %vm675, %v847, 0
        %v854 = vsel %vm675, %v849, 0
        %v856 = vsel %vm675, %v851, 0
        %858 = vmatprep.subr.mxu0 0.0
        %859 = vmatpush1.xpose.msra.mxu0 %v854
        %860 = vmatprep.subr.mxu0 0.0
        %861 = vmatpush1.xpose.msra.mxu0 %v856
        %862 = vmatprep.subr.mxu0 0.0
        %863 = vmatpush1.xpose.msra.mxu0 0.0
        %864 = vmatprep.subr.mxu0 0.0
        %865 = vmatpush1.xpose.msra.mxu0 0.0
        %866 = vmatprep.subr.mxu0 0.0
        %867 = vmatpush1.xpose.msra.mxu0 0.0
        %868 = vmatprep.subr.mxu0 0.0
        %869 = vmatpush1.xpose.msra.mxu0 0.0
        %870 = vmatprep.subr.mxu0 0.0
        %871 = vmatpush1.xpose.msra.mxu0 0.0
        %872 = vmatprep.subr.mxu0 0.0
        %873 = vmatpush1.xpose.msra.mxu0 0.0
        %874 = vmatprep.subr.mxu0 0.0
        %875 = vmatpush1.xpose.msra.mxu0 0.0
        %876 = vmatprep.subr.mxu0 0.0
        %877 = vmatpush1.xpose.msra.mxu0 0.0
        %878 = vmatprep.subr.mxu0 0.0
        %879 = vmatpush1.xpose.msra.mxu0 0.0
        %880 = vmatprep.subr.mxu0 0.0
        %881 = vmatpush1.xpose.msra.mxu0 0.0
        %882 = vmatprep.subr.mxu0 0.0
        %883 = vmatpush1.xpose.msra.mxu0 0.0
        %884 = vmatprep.subr.mxu0 0.0
        %885 = vmatpush1.xpose.msra.mxu0 0.0
        %886 = vmatprep.subr.mxu0 0.0
        %887 = vmatpush1.xpose.msra.mxu0 0.0
        %888 = vmatprep.subr.mxu0 0.0
        %889 = vmatpush1.xpose.msra.mxu0 0.0
        %890 = vmatprep.subr.mxu0 0.0
        %891 = vmatpush1.xpose.msra.mxu0 0.0
        %892 = vmatprep.subr.mxu0 0.0
        %893 = vmatpush1.xpose.msra.mxu0 0.0
        %894 = vmatprep.subr.mxu0 0.0
        %895 = vmatpush1.xpose.msra.mxu0 0.0
        %896 = vmatprep.subr.mxu0 0.0
        %897 = vmatpush1.xpose.msra.mxu0 0.0
        %898 = vmatprep.subr.mxu0 0.0
        %899 = vmatpush1.xpose.msra.mxu0 0.0
        %900 = vmatprep.subr.mxu0 0.0
        %901 = vmatpush1.xpose.msra.mxu0 0.0
        %902 = vmatprep.subr.mxu0 0.0
        %903 = vmatpush1.xpose.msra.mxu0 0.0
        %904 = vmatprep.subr.mxu0 0.0
        %905 = vmatpush1.xpose.msra.mxu0 0.0
        %906 = vmatprep.subr.mxu0 0.0
        %907 = vmatpush1.xpose.msra.mxu0 0.0
        %908 = vmatprep.subr.mxu0 0.0
        %909 = vmatpush1.xpose.msra.mxu0 0.0
        %910 = vmatprep.subr.mxu0 0.0
        %911 = vmatpush1.xpose.msra.mxu0 0.0
        %912 = vmatprep.subr.mxu0 0.0
        %913 = vmatpush1.xpose.msra.mxu0 0.0
        %914 = vmatprep.subr.mxu0 0.0
        %915 = vmatpush1.xpose.msra.mxu0 0.0
        %916 = vmatprep.subr.mxu0 0.0
        %917 = vmatpush1.xpose.msra.mxu0 0.0
        %918 = vmatprep.subr.mxu0 0.0
        %919 = vmatpush1.xpose.msra.mxu0 0.0
        %920 = vmatprep.subr.mxu0 0.0
        %921 = vmatpush1.xpose.msra.mxu0 0.0
        %922 = vmatprep.mubr.f32.mxu0 0.0
        %923 = vmatmul.mubr.f32.gmra.mrb[0].mxu0 %v852
        %v924 = vpop.f32.mrb[0].mxu0
        %v925 = vadd.f32 0.0, %v924
        %v926 = vpop.f32.mrb[0].mxu0
        %927 = vdwg.mxu0
        %v928 = vsel %vm755, %v925, -inf
        %929 = vmax.xlane.f32.xlu0 %v928
        %v930 = vpop.xlane.xlu0 %929
        %v931 = vsub.f32 %v925, %v930
        %v932 = vmul.f32 %v931, 1.442695
        %v933 = vpow.pop %v932
        %v934 = vsel %vm755, %v933, 0.0
        %935 = vadd.xlane.f32.xlu0 %v934
        %v936 = vpop.xlane.xlu0 %935
        %v937 = vrcp.pop %v936
        %v938 = vmul.f32 %v933, %v937
        %939 = vrot.lane.b32.xlu0 %v662, 88
        %v940 = vpop.permute.xlu0 %939
        %941 = vrot.lane.b32.xlu0 %v667, 88
        %v942 = vpop.permute.xlu0 %941
        %v946 = vsel %vm755, %v938, 0
        %948 = vmatprep.subr.mxu0 0.0
        %949 = vmatpush1.msra.mxu0 %v940
        %950 = vmatprep.subr.mxu0 0.0
        %951 = vmatpush1.msra.mxu0 %v942
        %952 = vmatprep.subr.mxu0 0.0
        %953 = vmatpush1.msra.mxu0 0.0
        %954 = vmatprep.subr.mxu0 0.0
        %955 = vmatpush1.msra.mxu0 0.0
        %956 = vmatprep.subr.mxu0 0.0
        %957 = vmatpush1.msra.mxu0 0.0
        %958 = vmatprep.subr.mxu0 0.0
        %959 = vmatpush1.msra.mxu0 0.0
        %960 = vmatprep.subr.mxu0 0.0
        %961 = vmatpush1.msra.mxu0 0.0
        %962 = vmatprep.subr.mxu0 0.0
        %963 = vmatpush1.msra.mxu0 0.0
        %964 = vmatprep.subr.mxu0 0.0
        %965 = vmatpush1.msra.mxu0 0.0
        %966 = vmatprep.subr.mxu0 0.0
        %967 = vmatpush1.msra.mxu0 0.0
        %968 = vmatprep.subr.mxu0 0.0
        %969 = vmatpush1.msra.mxu0 0.0
        %970 = vmatprep.subr.mxu0 0.0
        %971 = vmatpush1.msra.mxu0 0.0
        %972 = vmatprep.subr.mxu0 0.0
        %973 = vmatpush1.msra.mxu0 0.0
        %974 = vmatprep.subr.mxu0 0.0
        %975 = vmatpush1.msra.mxu0 0.0
        %976 = vmatprep.subr.mxu0 0.0
        %977 = vmatpush1.msra.mxu0 0.0
        %978 = vmatprep.subr.mxu0 0.0
        %979 = vmatpush1.msra.mxu0 0.0
        %980 = vmatprep.subr.mxu0 0.0
        %981 = vmatpush1.msra.mxu0 0.0
        %982 = vmatprep.subr.mxu0 0.0
        %983 = vmatpush1.msra.mxu0 0.0
        %984 = vmatprep.subr.mxu0 0.0
        %985 = vmatpush1.msra.mxu0 0.0
        %986 = vmatprep.subr.mxu0 0.0
        %987 = vmatpush1.msra.mxu0 0.0
        %988 = vmatprep.subr.mxu0 0.0
        %989 = vmatpush1.msra.mxu0 0.0
        %990 = vmatprep.subr.mxu0 0.0
        %991 = vmatpush1.msra.mxu0 0.0
        %992 = vmatprep.subr.mxu0 0.0
        %993 = vmatpush1.msra.mxu0 0.0
        %994 = vmatprep.subr.mxu0 0.0
        %995 = vmatpush1.msra.mxu0 0.0
        %996 = vmatprep.subr.mxu0 0.0
        %997 = vmatpush1.msra.mxu0 0.0
        %998 = vmatprep.subr.mxu0 0.0
        %999 = vmatpush1.msra.mxu0 0.0
        %1000 = vmatprep.subr.mxu0 0.0
        %1001 = vmatpush1.msra.mxu0 0.0
        %1002 = vmatprep.subr.mxu0 0.0
        %1003 = vmatpush1.msra.mxu0 0.0
        %1004 = vmatprep.subr.mxu0 0.0
        %1005 = vmatpush1.msra.mxu0 0.0
        %1006 = vmatprep.subr.mxu0 0.0
        %1007 = vmatpush1.msra.mxu0 0.0
        %1008 = vmatprep.subr.mxu0 0.0
        %1009 = vmatpush1.msra.mxu0 0.0
        %1010 = vmatprep.subr.mxu0 0.0
        %1011 = vmatpush1.msra.mxu0 0.0
        %1012 = vmatprep.mubr.f32.mxu0 0.0
        %1013 = vmatmul.mubr.f32.gmra.mrb[0].mxu0 %v946
        %v1014 = vpop.f32.mrb[0].mxu0
        %v1015 = vadd.f32 0.0, %v1014
        %v1016 = vpop.f32.mrb[0].mxu0
        %1017 = vdwg.mxu0
        %1018 = vrot.lane.b32.xlu0 %v575, 112
        %v1019 = vpop.permute.xlu0 %1018
        %1020 = vrot.lane.b32.xlu0 %v662, 112
        %v1021 = vpop.permute.xlu0 %1020
        %1022 = vrot.lane.b32.xlu0 %v667, 112
        %v1023 = vpop.permute.xlu0 %1022
        %v1024 = vsel %vm675, %v1019, 0
        %v1026 = vsel %vm675, %v1021, 0
        %v1028 = vsel %vm675, %v1023, 0
        %1030 = vmatprep.subr.mxu0 0.0
        %1031 = vmatpush1.xpose.msra.mxu0 %v1026
        %1032 = vmatprep.subr.mxu0 0.0
        %1033 = vmatpush1.xpose.msra.mxu0 %v1028
        %1034 = vmatprep.subr.mxu0 0.0
        %1035 = vmatpush1.xpose.msra.mxu0 0.0
        %1036 = vmatprep.subr.mxu0 0.0
        %1037 = vmatpush1.xpose.msra.mxu0 0.0
        %1038 = vmatprep.subr.mxu0 0.0
        %1039 = vmatpush1.xpose.msra.mxu0 0.0
        %1040 = vmatprep.subr.mxu0 0.0
        %1041 = vmatpush1.xpose.msra.mxu0 0.0
        %1042 = vmatprep.subr.mxu0 0.0
        %1043 = vmatpush1.xpose.msra.mxu0 0.0
        %1044 = vmatprep.subr.mxu0 0.0
        %1045 = vmatpush1.xpose.msra.mxu0 0.0
        %1046 = vmatprep.subr.mxu0 0.0
        %1047 = vmatpush1.xpose.msra.mxu0 0.0
        %1048 = vmatprep.subr.mxu0 0.0
        %1049 = vmatpush1.xpose.msra.mxu0 0.0
        %1050 = vmatprep.subr.mxu0 0.0
        %1051 = vmatpush1.xpose.msra.mxu0 0.0
        %1052 = vmatprep.subr.mxu0 0.0
        %1053 = vmatpush1.xpose.msra.mxu0 0.0
        %1054 = vmatprep.subr.mxu0 0.0
        %1055 = vmatpush1.xpose.msra.mxu0 0.0
        %1056 = vmatprep.subr.mxu0 0.0
        %1057 = vmatpush1.xpose.msra.mxu0 0.0
        %1058 = vmatprep.subr.mxu0 0.0
        %1059 = vmatpush1.xpose.msra.mxu0 0.0
        %1060 = vmatprep.subr.mxu0 0.0
        %1061 = vmatpush1.xpose.msra.mxu0 0.0
        %1062 = vmatprep.subr.mxu0 0.0
        %1063 = vmatpush1.xpose.msra.mxu0 0.0
        %1064 = vmatprep.subr.mxu0 0.0
        %1065 = vmatpush1.xpose.msra.mxu0 0.0
        %1066 = vmatprep.subr.mxu0 0.0
        %1067 = vmatpush1.xpose.msra.mxu0 0.0
        %1068 = vmatprep.subr.mxu0 0.0
        %1069 = vmatpush1.xpose.msra.mxu0 0.0
        %1070 = vmatprep.subr.mxu0 0.0
        %1071 = vmatpush1.xpose.msra.mxu0 0.0
        %1072 = vmatprep.subr.mxu0 0.0
        %1073 = vmatpush1.xpose.msra.mxu0 0.0
        %1074 = vmatprep.subr.mxu0 0.0
        %1075 = vmatpush1.xpose.msra.mxu0 0.0
        %1076 = vmatprep.subr.mxu0 0.0
        %1077 = vmatpush1.xpose.msra.mxu0 0.0
        %1078 = vmatprep.subr.mxu0 0.0
        %1079 = vmatpush1.xpose.msra.mxu0 0.0
        %1080 = vmatprep.subr.mxu0 0.0
        %1081 = vmatpush1.xpose.msra.mxu0 0.0
        %1082 = vmatprep.subr.mxu0 0.0
        %1083 = vmatpush1.xpose.msra.mxu0 0.0
        %1084 = vmatprep.subr.mxu0 0.0
        %1085 = vmatpush1.xpose.msra.mxu0 0.0
        %1086 = vmatprep.subr.mxu0 0.0
        %1087 = vmatpush1.xpose.msra.mxu0 0.0
        %1088 = vmatprep.subr.mxu0 0.0
        %1089 = vmatpush1.xpose.msra.mxu0 0.0
        %1090 = vmatprep.subr.mxu0 0.0
        %1091 = vmatpush1.xpose.msra.mxu0 0.0
        %1092 = vmatprep.subr.mxu0 0.0
        %1093 = vmatpush1.xpose.msra.mxu0 0.0
        %1094 = vmatprep.mubr.f32.mxu0 0.0
        %1095 = vmatmul.mubr.f32.gmra.mrb[0].mxu0 %v1024
        %v1096 = vpop.f32.mrb[0].mxu0
        %v1097 = vadd.f32 0.0, %v1096
        %v1098 = vpop.f32.mrb[0].mxu0
        %1099 = vdwg.mxu0
        %v1100 = vsel %vm755, %v1097, -inf
        %1101 = vmax.xlane.f32.xlu0 %v1100
        %v1102 = vpop.xlane.xlu0 %1101
        %v1103 = vsub.f32 %v1097, %v1102
        %v1104 = vmul.f32 %v1103, 1.442695
        %v1105 = vpow.pop %v1104
        %v1106 = vsel %vm755, %v1105, 0.0
        %1107 = vadd.xlane.f32.xlu0 %v1106
        %v1108 = vpop.xlane.xlu0 %1107
        %v1109 = vrcp.pop %v1108
        %v1110 = vmul.f32 %v1105, %v1109
        %1111 = vrot.lane.b32.xlu0 %v662, 80
        %v1112 = vpop.permute.xlu0 %1111
        %1113 = vrot.lane.b32.xlu0 %v667, 80
        %v1114 = vpop.permute.xlu0 %1113
        %v1118 = vsel %vm755, %v1110, 0
        %1120 = vmatprep.subr.mxu0 0.0
        %1121 = vmatpush1.msra.mxu0 %v1112
        %1122 = vmatprep.subr.mxu0 0.0
        %1123 = vmatpush1.msra.mxu0 %v1114
        %1124 = vmatprep.subr.mxu0 0.0
        %1125 = vmatpush1.msra.mxu0 0.0
        %1126 = vmatprep.subr.mxu0 0.0
        %1127 = vmatpush1.msra.mxu0 0.0
        %1128 = vmatprep.subr.mxu0 0.0
        %1129 = vmatpush1.msra.mxu0 0.0
        %1130 = vmatprep.subr.mxu0 0.0
        %1131 = vmatpush1.msra.mxu0 0.0
        %1132 = vmatprep.subr.mxu0 0.0
        %1133 = vmatpush1.msra.mxu0 0.0
        %1134 = vmatprep.subr.mxu0 0.0
        %1135 = vmatpush1.msra.mxu0 0.0
        %1136 = vmatprep.subr.mxu0 0.0
        %1137 = vmatpush1.msra.mxu0 0.0
        %1138 = vmatprep.subr.mxu0 0.0
        %1139 = vmatpush1.msra.mxu0 0.0
        %1140 = vmatprep.subr.mxu0 0.0
        %1141 = vmatpush1.msra.mxu0 0.0
        %1142 = vmatprep.subr.mxu0 0.0
        %1143 = vmatpush1.msra.mxu0 0.0
        %1144 = vmatprep.subr.mxu0 0.0
        %1145 = vmatpush1.msra.mxu0 0.0
        %1146 = vmatprep.subr.mxu0 0.0
        %1147 = vmatpush1.msra.mxu0 0.0
        %1148 = vmatprep.subr.mxu0 0.0
        %1149 = vmatpush1.msra.mxu0 0.0
        %1150 = vmatprep.subr.mxu0 0.0
        %1151 = vmatpush1.msra.mxu0 0.0
        %1152 = vmatprep.subr.mxu0 0.0
        %1153 = vmatpush1.msra.mxu0 0.0
        %1154 = vmatprep.subr.mxu0 0.0
        %1155 = vmatpush1.msra.mxu0 0.0
        %1156 = vmatprep.subr.mxu0 0.0
        %1157 = vmatpush1.msra.mxu0 0.0
        %1158 = vmatprep.subr.mxu0 0.0
        %1159 = vmatpush1.msra.mxu0 0.0
        %1160 = vmatprep.subr.mxu0 0.0
        %1161 = vmatpush1.msra.mxu0 0.0
        %1162 = vmatprep.subr.mxu0 0.0
        %1163 = vmatpush1.msra.mxu0 0.0
        %1164 = vmatprep.subr.mxu0 0.0
        %1165 = vmatpush1.msra.mxu0 0.0
        %1166 = vmatprep.subr.mxu0 0.0
        %1167 = vmatpush1.msra.mxu0 0.0
        %1168 = vmatprep.subr.mxu0 0.0
        %1169 = vmatpush1.msra.mxu0 0.0
        %1170 = vmatprep.subr.mxu0 0.0
        %1171 = vmatpush1.msra.mxu0 0.0
        %1172 = vmatprep.subr.mxu0 0.0
        %1173 = vmatpush1.msra.mxu0 0.0
        %1174 = vmatprep.subr.mxu0 0.0
        %1175 = vmatpush1.msra.mxu0 0.0
        %1176 = vmatprep.subr.mxu0 0.0
        %1177 = vmatpush1.msra.mxu0 0.0
        %1178 = vmatprep.subr.mxu0 0.0
        %1179 = vmatpush1.msra.mxu0 0.0
        %1180 = vmatprep.subr.mxu0 0.0
        %1181 = vmatpush1.msra.mxu0 0.0
        %1182 = vmatprep.subr.mxu0 0.0
        %1183 = vmatpush1.msra.mxu0 0.0
        %1184 = vmatprep.mubr.f32.mxu0 0.0
        %1185 = vmatmul.mubr.f32.gmra.mrb[0].mxu0 %v1118
        %v1186 = vpop.f32.mrb[0].mxu0
        %v1187 = vadd.f32 0.0, %v1186
        %v1188 = vpop.f32.mrb[0].mxu0
        %1189 = vdwg.mxu0
        %1190 = vrot.lane.b32.xlu0 %v575, 104
        %v1191 = vpop.permute.xlu0 %1190
        %1192 = vrot.lane.b32.xlu0 %v662, 104
        %v1193 = vpop.permute.xlu0 %1192
        %1194 = vrot.lane.b32.xlu0 %v667, 104
        %v1195 = vpop.permute.xlu0 %1194
        %v1196 = vsel %vm675, %v1191, 0
        %v1198 = vsel %vm675, %v1193, 0
        %v1200 = vsel %vm675, %v1195, 0
        %1202 = vmatprep.subr.mxu0 0.0
        %1203 = vmatpush1.xpose.msra.mxu0 %v1198
        %1204 = vmatprep.subr.mxu0 0.0
        %1205 = vmatpush1.xpose.msra.mxu0 %v1200
        %1206 = vmatprep.subr.mxu0 0.0
        %1207 = vmatpush1.xpose.msra.mxu0 0.0
        %1208 = vmatprep.subr.mxu0 0.0
        %1209 = vmatpush1.xpose.msra.mxu0 0.0
        %1210 = vmatprep.subr.mxu0 0.0
        %1211 = vmatpush1.xpose.msra.mxu0 0.0
        %1212 = vmatprep.subr.mxu0 0.0
        %1213 = vmatpush1.xpose.msra.mxu0 0.0
        %1214 = vmatprep.subr.mxu0 0.0
        %1215 = vmatpush1.xpose.msra.mxu0 0.0
        %1216 = vmatprep.subr.mxu0 0.0
        %1217 = vmatpush1.xpose.msra.mxu0 0.0
        %1218 = vmatprep.subr.mxu0 0.0
        %1219 = vmatpush1.xpose.msra.mxu0 0.0
        %1220 = vmatprep.subr.mxu0 0.0
        %1221 = vmatpush1.xpose.msra.mxu0 0.0
        %1222 = vmatprep.subr.mxu0 0.0
        %1223 = vmatpush1.xpose.msra.mxu0 0.0
        %1224 = vmatprep.subr.mxu0 0.0
        %1225 = vmatpush1.xpose.msra.mxu0 0.0
        %1226 = vmatprep.subr.mxu0 0.0
        %1227 = vmatpush1.xpose.msra.mxu0 0.0
        %1228 = vmatprep.subr.mxu0 0.0
        %1229 = vmatpush1.xpose.msra.mxu0 0.0
        %1230 = vmatprep.subr.mxu0 0.0
        %1231 = vmatpush1.xpose.msra.mxu0 0.0
        %1232 = vmatprep.subr.mxu0 0.0
        %1233 = vmatpush1.xpose.msra.mxu0 0.0
        %1234 = vmatprep.subr.mxu0 0.0
        %1235 = vmatpush1.xpose.msra.mxu0 0.0
        %1236 = vmatprep.subr.mxu0 0.0
        %1237 = vmatpush1.xpose.msra.mxu0 0.0
        %1238 = vmatprep.subr.mxu0 0.0
        %1239 = vmatpush1.xpose.msra.mxu0 0.0
        %1240 = vmatprep.subr.mxu0 0.0
        %1241 = vmatpush1.xpose.msra.mxu0 0.0
        %1242 = vmatprep.subr.mxu0 0.0
        %1243 = vmatpush1.xpose.msra.mxu0 0.0
        %1244 = vmatprep.subr.mxu0 0.0
        %1245 = vmatpush1.xpose.msra.mxu0 0.0
        %1246 = vmatprep.subr.mxu0 0.0
        %1247 = vmatpush1.xpose.msra.mxu0 0.0
        %1248 = vmatprep.subr.mxu0 0.0
        %1249 = vmatpush1.xpose.msra.mxu0 0.0
        %1250 = vmatprep.subr.mxu0 0.0
        %1251 = vmatpush1.xpose.msra.mxu0 0.0
        %1252 = vmatprep.subr.mxu0 0.0
        %1253 = vmatpush1.xpose.msra.mxu0 0.0
        %1254 = vmatprep.subr.mxu0 0.0
        %1255 = vmatpush1.xpose.msra.mxu0 0.0
        %1256 = vmatprep.subr.mxu0 0.0
        %1257 = vmatpush1.xpose.msra.mxu0 0.0
        %1258 = vmatprep.subr.mxu0 0.0
        %1259 = vmatpush1.xpose.msra.mxu0 0.0
        %1260 = vmatprep.subr.mxu0 0.0
        %1261 = vmatpush1.xpose.msra.mxu0 0.0
        %1262 = vmatprep.subr.mxu0 0.0
        %1263 = vmatpush1.xpose.msra.mxu0 0.0
        %1264 = vmatprep.subr.mxu0 0.0
        %1265 = vmatpush1.xpose.msra.mxu0 0.0
        %1266 = vmatprep.mubr.f32.mxu0 0.0
        %1267 = vmatmul.mubr.f32.gmra.mrb[0].mxu0 %v1196
        %v1268 = vpop.f32.mrb[0].mxu0
        %v1269 = vadd.f32 0.0, %v1268
        %v1270 = vpop.f32.mrb[0].mxu0
        %1271 = vdwg.mxu0
        %v1272 = vsel %vm755, %v1269, -inf
        %1273 = vmax.xlane.f32.xlu0 %v1272
        %v1274 = vpop.xlane.xlu0 %1273
        %v1275 = vsub.f32 %v1269, %v1274
        %v1276 = vmul.f32 %v1275, 1.442695
        %v1277 = vpow.pop %v1276
        %v1278 = vsel %vm755, %v1277, 0.0
        %1279 = vadd.xlane.f32.xlu0 %v1278
        %v1280 = vpop.xlane.xlu0 %1279
        %v1281 = vrcp.pop %v1280
        %v1282 = vmul.f32 %v1277, %v1281
        %1283 = vrot.lane.b32.xlu0 %v662, 72
        %v1284 = vpop.permute.xlu0 %1283
        %1285 = vrot.lane.b32.xlu0 %v667, 72
        %v1286 = vpop.permute.xlu0 %1285
        %v1290 = vsel %vm755, %v1282, 0
        %1292 = vmatprep.subr.mxu0 0.0
        %1293 = vmatpush1.msra.mxu0 %v1284
        %1294 = vmatprep.subr.mxu0 0.0
        %1295 = vmatpush1.msra.mxu0 %v1286
        %1296 = vmatprep.subr.mxu0 0.0
        %1297 = vmatpush1.msra.mxu0 0.0
        %1298 = vmatprep.subr.mxu0 0.0
        %1299 = vmatpush1.msra.mxu0 0.0
        %1300 = vmatprep.subr.mxu0 0.0
        %1301 = vmatpush1.msra.mxu0 0.0
        %1302 = vmatprep.subr.mxu0 0.0
        %1303 = vmatpush1.msra.mxu0 0.0
        %1304 = vmatprep.subr.mxu0 0.0
        %1305 = vmatpush1.msra.mxu0 0.0
        %1306 = vmatprep.subr.mxu0 0.0
        %1307 = vmatpush1.msra.mxu0 0.0
        %1308 = vmatprep.subr.mxu0 0.0
        %1309 = vmatpush1.msra.mxu0 0.0
        %1310 = vmatprep.subr.mxu0 0.0
        %1311 = vmatpush1.msra.mxu0 0.0
        %1312 = vmatprep.subr.mxu0 0.0
        %1313 = vmatpush1.msra.mxu0 0.0
        %1314 = vmatprep.subr.mxu0 0.0
        %1315 = vmatpush1.msra.mxu0 0.0
        %1316 = vmatprep.subr.mxu0 0.0
        %1317 = vmatpush1.msra.mxu0 0.0
        %1318 = vmatprep.subr.mxu0 0.0
        %1319 = vmatpush1.msra.mxu0 0.0
        %1320 = vmatprep.subr.mxu0 0.0
        %1321 = vmatpush1.msra.mxu0 0.0
        %1322 = vmatprep.subr.mxu0 0.0
        %1323 = vmatpush1.msra.mxu0 0.0
        %1324 = vmatprep.subr.mxu0 0.0
        %1325 = vmatpush1.msra.mxu0 0.0
        %1326 = vmatprep.subr.mxu0 0.0
        %1327 = vmatpush1.msra.mxu0 0.0
        %1328 = vmatprep.subr.mxu0 0.0
        %1329 = vmatpush1.msra.mxu0 0.0
        %1330 = vmatprep.subr.mxu0 0.0
        %1331 = vmatpush1.msra.mxu0 0.0
        %1332 = vmatprep.subr.mxu0 0.0
        %1333 = vmatpush1.msra.mxu0 0.0
        %1334 = vmatprep.subr.mxu0 0.0
        %1335 = vmatpush1.msra.mxu0 0.0
        %1336 = vmatprep.subr.mxu0 0.0
        %1337 = vmatpush1.msra.mxu0 0.0
        %1338 = vmatprep.subr.mxu0 0.0
        %1339 = vmatpush1.msra.mxu0 0.0
        %1340 = vmatprep.subr.mxu0 0.0
        %1341 = vmatpush1.msra.mxu0 0.0
        %1342 = vmatprep.subr.mxu0 0.0
        %1343 = vmatpush1.msra.mxu0 0.0
        %1344 = vmatprep.subr.mxu0 0.0
        %1345 = vmatpush1.msra.mxu0 0.0
        %1346 = vmatprep.subr.mxu0 0.0
        %1347 = vmatpush1.msra.mxu0 0.0
        %1348 = vmatprep.subr.mxu0 0.0
        %1349 = vmatpush1.msra.mxu0 0.0
        %1350 = vmatprep.subr.mxu0 0.0
        %1351 = vmatpush1.msra.mxu0 0.0
        %1352 = vmatprep.subr.mxu0 0.0
        %1353 = vmatpush1.msra.mxu0 0.0
        %1354 = vmatprep.subr.mxu0 0.0
        %1355 = vmatpush1.msra.mxu0 0.0
        %1356 = vmatprep.mubr.f32.mxu0 0.0
        %1357 = vmatmul.mubr.f32.gmra.mrb[0].mxu0 %v1290
        %v1358 = vpop.f32.mrb[0].mxu0
        %v1359 = vadd.f32 0.0, %v1358
        %v1360 = vpop.f32.mrb[0].mxu0
        %1361 = vdwg.mxu0
        %1363 = vrot.lane.b32.xlu0 %v1015, 8
        %v1364 = vpop.permute.xlu0 %1363
        %1367 = vrot.lane.b32.xlu0 %v1187, 16
        %v1368 = vpop.permute.xlu0 %1367
        %1371 = vrot.lane.b32.xlu0 %v1359, 24
        %v1372 = vpop.permute.xlu0 %1371
        %v1374 = vsel %vm675, %v843, %v1364
        %v1375 = vsel %vm755, %v1374, %v1368
        %vm1376 = vcmask 195584
        %v1377 = vsel %vm1376, %v1375, %v1372
        %v1378 = vlaneseq
        %v1379 = vshrl.u32 %v1378, 7
        %v1380 = vsub.s32 0, %v1379
        %v1381 = vrot.slane %v674, %v1380
        %v1383 = vsel %vm504, %v1377, 0
        %1385 = vmatprep.subr.mxu0 0.0
        %1386 = vmatpush1.msra.mxu0 %v670
        %1387 = vmatprep.subr.mxu0 0.0
        %1388 = vmatpush1.msra.mxu0 %v671
        %1389 = vmatprep.subr.mxu0 0.0
        %1390 = vmatpush1.msra.mxu0 %v672
        %1391 = vmatprep.subr.mxu0 0.0
        %1392 = vmatpush1.msra.mxu0 %v673
        %1393 = vmatprep.subr.mxu0 0.0
        %1394 = vmatpush1.msra.mxu0 0.0
        %1395 = vmatprep.subr.mxu0 0.0
        %1396 = vmatpush1.msra.mxu0 0.0
        %1397 = vmatprep.subr.mxu0 0.0
        %1398 = vmatpush1.msra.mxu0 0.0
        %1399 = vmatprep.subr.mxu0 0.0
        %1400 = vmatpush1.msra.mxu0 0.0
        %1401 = vmatprep.subr.mxu0 0.0
        %1402 = vmatpush1.msra.mxu0 0.0
        %1403 = vmatprep.subr.mxu0 0.0
        %1404 = vmatpush1.msra.mxu0 0.0
        %1405 = vmatprep.subr.mxu0 0.0
        %1406 = vmatpush1.msra.mxu0 0.0
        %1407 = vmatprep.subr.mxu0 0.0
        %1408 = vmatpush1.msra.mxu0 0.0
        %1409 = vmatprep.subr.mxu0 0.0
        %1410 = vmatpush1.msra.mxu0 0.0
        %1411 = vmatprep.subr.mxu0 0.0
        %1412 = vmatpush1.msra.mxu0 0.0
        %1413 = vmatprep.subr.mxu0 0.0
        %1414 = vmatpush1.msra.mxu0 0.0
        %1415 = vmatprep.subr.mxu0 0.0
        %1416 = vmatpush1.msra.mxu0 0.0
        %1417 = vmatprep.subr.mxu0 0.0
        %1418 = vmatpush1.msra.mxu0 0.0
        %1419 = vmatprep.subr.mxu0 0.0
        %1420 = vmatpush1.msra.mxu0 0.0
        %1421 = vmatprep.subr.mxu0 0.0
        %1422 = vmatpush1.msra.mxu0 0.0
        %1423 = vmatprep.subr.mxu0 0.0
        %1424 = vmatpush1.msra.mxu0 0.0
        %1425 = vmatprep.subr.mxu0 0.0
        %1426 = vmatpush1.msra.mxu0 0.0
        %1427 = vmatprep.subr.mxu0 0.0
        %1428 = vmatpush1.msra.mxu0 0.0
        %1429 = vmatprep.subr.mxu0 0.0
        %1430 = vmatpush1.msra.mxu0 0.0
        %1431 = vmatprep.subr.mxu0 0.0
        %1432 = vmatpush1.msra.mxu0 0.0
        %1433 = vmatprep.subr.mxu0 0.0
        %1434 = vmatpush1.msra.mxu0 0.0
        %1435 = vmatprep.subr.mxu0 0.0
        %1436 = vmatpush1.msra.mxu0 0.0
        %1437 = vmatprep.subr.mxu0 0.0
        %1438 = vmatpush1.msra.mxu0 0.0
        %1439 = vmatprep.subr.mxu0 0.0
        %1440 = vmatpush1.msra.mxu0 0.0
        %1441 = vmatprep.subr.mxu0 0.0
        %1442 = vmatpush1.msra.mxu0 0.0
        %1443 = vmatprep.subr.mxu0 0.0
        %1444 = vmatpush1.msra.mxu0 0.0
        %1445 = vmatprep.subr.mxu0 0.0
        %1446 = vmatpush1.msra.mxu0 0.0
        %1447 = vmatprep.subr.mxu0 0.0
        %1448 = vmatpush1.msra.mxu0 0.0
        %1449 = vmatprep.mubr.f32.mxu0 0.0
        %1450 = vmatmul.mubr.f32.gmra.mrb[0].mxu0 %v1383
        %v1451 = vpop.f32.mrb[0].mxu0
        %v1452 = vadd.f32 %v1381, %v1451
        %v1453 = vpop.f32.mrb[0].mxu0
        %1454 = vdwg.mxu0
        %v1455 = vadd.f32 %v494, %v1452
        %v1456 = vld [vmem:[%s10 + $0x5] sm:$0x1]
        %v1457 = vld [vmem:[%s10 + $0x6] sm:$0x1]
        %v1458 = vsel %vm504, %v1455, 0.0
        %1459 = vadd.xlane.f32.xlu0 %v1458
        %v1460 = vpop.xlane.xlu0 %1459
        %v1461 = vrcp.pop 32.0
        %v1462 = vmul.f32 %v1460, %v1461
        %v1463 = vsub.f32 %v1455, %v1462
        %v1464 = vmul.f32 %v1463, %v1463
        %v1465 = vsel %vm504, %v1464, 0.0
        %1466 = vadd.xlane.f32.xlu0 %v1465
        %v1467 = vpop.xlane.xlu0 %1466
        %v1468 = vmul.f32 %v1467, %v1461
        %v1469 = vadd.f32 %v1468, 1e-05
        %v1470 = vrsqrt.pop %v1469
        %v1471 = vmul.f32 %v1463, %v1470
        %v1472 = vlaneseq
        %v1473 = vshrl.u32 %v1472, 7
        %v1474 = vsub.s32 0, %v1473
        %v1475 = vrot.slane %v1456, %v1474
        %v1476 = vmul.f32 %v1471, %v1475
        %v1477 = vlaneseq
        %v1478 = vshrl.u32 %v1477, 7
        %v1479 = vsub.s32 0, %v1478
        %v1480 = vrot.slane %v1457, %v1479
        %v1481 = vadd.f32 %v1476, %v1480
        %v1482 = vld [vmem:[%s8] sm:$0xff]
        %v1483 = vld [vmem:[%s8 + $0x8] sm:$0xff]
        %v1484 = vld [vmem:[%s8 + $0x10] sm:$0xff]
        %v1485 = vld [vmem:[%s8 + $0x18] sm:$0xff]
        %v1486 = vld [vmem:[%s11 + $0x1] sm:$0x1]
        %v1487 = vlaneseq
        %v1488 = vshrl.u32 %v1487, 7
        %v1489 = vsub.s32 0, %v1488
        %v1490 = vrot.slane %v1486, %v1489
        %v1492 = vsel %vm504, %v1481, 0
        %1494 = vmatprep.subr.mxu0 0.0
        %1495 = vmatpush1.msra.mxu0 %v1482
        %1496 = vmatprep.subr.mxu0 0.0
        %1497 = vmatpush1.msra.mxu0 %v1483
        %1498 = vmatprep.subr.mxu0 0.0
        %1499 = vmatpush1.msra.mxu0 %v1484
        %1500 = vmatprep.subr.mxu0 0.0
        %1501 = vmatpush1.msra.mxu0 %v1485
        %1502 = vmatprep.subr.mxu0 0.0
        %1503 = vmatpush1.msra.mxu0 0.0
        %1504 = vmatprep.subr.mxu0 0.0
        %1505 = vmatpush1.msra.mxu0 0.0
        %1506 = vmatprep.subr.mxu0 0.0
        %1507 = vmatpush1.msra.mxu0 0.0
        %1508 = vmatprep.subr.mxu0 0.0
        %1509 = vmatpush1.msra.mxu0 0.0
        %1510 = vmatprep.subr.mxu0 0.0
        %1511 = vmatpush1.msra.mxu0 0.0
        %1512 = vmatprep.subr.mxu0 0.0
        %1513 = vmatpush1.msra.mxu0 0.0
        %1514 = vmatprep.subr.mxu0 0.0
        %1515 = vmatpush1.msra.mxu0 0.0
        %1516 = vmatprep.subr.mxu0 0.0
        %1517 = vmatpush1.msra.mxu0 0.0
        %1518 = vmatprep.subr.mxu0 0.0
        %1519 = vmatpush1.msra.mxu0 0.0
        %1520 = vmatprep.subr.mxu0 0.0
        %1521 = vmatpush1.msra.mxu0 0.0
        %1522 = vmatprep.subr.mxu0 0.0
        %1523 = vmatpush1.msra.mxu0 0.0
        %1524 = vmatprep.subr.mxu0 0.0
        %1525 = vmatpush1.msra.mxu0 0.0
        %1526 = vmatprep.subr.mxu0 0.0
        %1527 = vmatpush1.msra.mxu0 0.0
        %1528 = vmatprep.subr.mxu0 0.0
        %1529 = vmatpush1.msra.mxu0 0.0
        %1530 = vmatprep.subr.mxu0 0.0
        %1531 = vmatpush1.msra.mxu0 0.0
        %1532 = vmatprep.subr.mxu0 0.0
        %1533 = vmatpush1.msra.mxu0 0.0
        %1534 = vmatprep.subr.mxu0 0.0
        %1535 = vmatpush1.msra.mxu0 0.0
        %1536 = vmatprep.subr.mxu0 0.0
        %1537 = vmatpush1.msra.mxu0 0.0
        %1538 = vmatprep.subr.mxu0 0.0
        %1539 = vmatpush1.msra.mxu0 0.0
        %1540 = vmatprep.subr.mxu0 0.0
        %1541 = vmatpush1.msra.mxu0 0.0
        %1542 = vmatprep.subr.mxu0 0.0
        %1543 = vmatpush1.msra.mxu0 0.0
        %1544 = vmatprep.subr.mxu0 0.0
        %1545 = vmatpush1.msra.mxu0 0.0
        %1546 = vmatprep.subr.mxu0 0.0
        %1547 = vmatpush1.msra.mxu0 0.0
        %1548 = vmatprep.subr.mxu0 0.0
        %1549 = vmatpush1.msra.mxu0 0.0
        %1550 = vmatprep.subr.mxu0 0.0
        %1551 = vmatpush1.msra.mxu0 0.0
        %1552 = vmatprep.subr.mxu0 0.0
        %1553 = vmatpush1.msra.mxu0 0.0
        %1554 = vmatprep.subr.mxu0 0.0
        %1555 = vmatpush1.msra.mxu0 0.0
        %1556 = vmatprep.subr.mxu0 0.0
        %1557 = vmatpush1.msra.mxu0 0.0
        %1558 = vmatprep.mubr.f32.mxu0 0.0
        %1559 = vmatmul.mubr.f32.gmra.mrb[0].mxu0 %v1492
        %v1560 = vpop.f32.mrb[0].mxu0
        %v1561 = vadd.f32 %v1490, %v1560
        %v1562 = vpop.f32.mrb[0].mxu0
        %1563 = vdwg.mxu0
        %v1564 = vmax.f32 %v1561, 0.0
        %v1565 = vld [vmem:[%s9] sm:$0xff]
        %v1566 = vld [vmem:[%s9 + $0x8] sm:$0xff]
        %v1567 = vld [vmem:[%s9 + $0x10] sm:$0xff]
        %v1568 = vld [vmem:[%s9 + $0x18] sm:$0xff]
        %v1569 = vld [vmem:[%s9 + $0x20] sm:$0xff]
        %v1570 = vld [vmem:[%s9 + $0x28] sm:$0xff]
        %v1571 = vld [vmem:[%s9 + $0x30] sm:$0xff]
        %v1572 = vld [vmem:[%s9 + $0x38] sm:$0xff]
        %v1573 = vld [vmem:[%s10 + $0x7] sm:$0x1]
        %v1574 = vlaneseq
        %v1575 = vshrl.u32 %v1574, 7
        %v1576 = vsub.s32 0, %v1575
        %v1577 = vrot.slane %v1573, %v1576
        %vm1578 = vcmask 523264
        %v1580 = vsel %vm1578, %v1564, 0
        %1582 = vmatprep.subr.mxu0 0.0
        %1583 = vmatpush1.msra.mxu0 %v1565
        %1584 = vmatprep.subr.mxu0 0.0
        %1585 = vmatpush1.msra.mxu0 %v1566
        %1586 = vmatprep.subr.mxu0 0.0
        %1587 = vmatpush1.msra.mxu0 %v1567
        %1588 = vmatprep.subr.mxu0 0.0
        %1589 = vmatpush1.msra.mxu0 %v1568
        %1590 = vmatprep.subr.mxu0 0.0
        %1591 = vmatpush1.msra.mxu0 %v1569
        %1592 = vmatprep.subr.mxu0 0.0
        %1593 = vmatpush1.msra.mxu0 %v1570
        %1594 = vmatprep.subr.mxu0 0.0
        %1595 = vmatpush1.msra.mxu0 %v1571
        %1596 = vmatprep.subr.mxu0 0.0
        %1597 = vmatpush1.msra.mxu0 %v1572
        %1598 = vmatprep.subr.mxu0 0.0
        %1599 = vmatpush1.msra.mxu0 0.0
        %1600 = vmatprep.subr.mxu0 0.0
        %1601 = vmatpush1.msra.mxu0 0.0
        %1602 = vmatprep.subr.mxu0 0.0
        %1603 = vmatpush1.msra.mxu0 0.0
        %1604 = vmatprep.subr.mxu0 0.0
        %1605 = vmatpush1.msra.mxu0 0.0
        %1606 = vmatprep.subr.mxu0 0.0
        %1607 = vmatpush1.msra.mxu0 0.0
        %1608 = vmatprep.subr.mxu0 0.0
        %1609 = vmatpush1.msra.mxu0 0.0
        %1610 = vmatprep.subr.mxu0 0.0
        %1611 = vmatpush1.msra.mxu0 0.0
        %1612 = vmatprep.subr.mxu0 0.0
        %1613 = vmatpush1.msra.mxu0 0.0
        %1614 = vmatprep.subr.mxu0 0.0
        %1615 = vmatpush1.msra.mxu0 0.0
        %1616 = vmatprep.subr.mxu0 0.0
        %1617 = vmatpush1.msra.mxu0 0.0
        %1618 = vmatprep.subr.mxu0 0.0
        %1619 = vmatpush1.msra.mxu0 0.0
        %1620 = vmatprep.subr.mxu0 0.0
        %1621 = vmatpush1.msra.mxu0 0.0
        %1622 = vmatprep.subr.mxu0 0.0
        %1623 = vmatpush1.msra.mxu0 0.0
        %1624 = vmatprep.subr.mxu0 0.0
        %1625 = vmatpush1.msra.mxu0 0.0
        %1626 = vmatprep.subr.mxu0 0.0
        %1627 = vmatpush1.msra.mxu0 0.0
        %1628 = vmatprep.subr.mxu0 0.0
        %1629 = vmatpush1.msra.mxu0 0.0
        %1630 = vmatprep.subr.mxu0 0.0
        %1631 = vmatpush1.msra.mxu0 0.0
        %1632 = vmatprep.subr.mxu0 0.0
        %1633 = vmatpush1.msra.mxu0 0.0
        %1634 = vmatprep.subr.mxu0 0.0
        %1635 = vmatpush1.msra.mxu0 0.0
        %1636 = vmatprep.subr.mxu0 0.0
        %1637 = vmatpush1.msra.mxu0 0.0
        %1638 = vmatprep.subr.mxu0 0.0
        %1639 = vmatpush1.msra.mxu0 0.0
        %1640 = vmatprep.subr.mxu0 0.0
        %1641 = vmatpush1.msra.mxu0 0.0
        %1642 = vmatprep.subr.mxu0 0.0
        %1643 = vmatpush1.msra.mxu0 0.0
        %1644 = vmatprep.subr.mxu0 0.0
        %1645 = vmatpush1.msra.mxu0 0.0
        %1646 = vmatprep.mubr.f32.mxu0 0.0
        %1647 = vmatmul.mubr.f32.gmra.mrb[0].mxu0 %v1580
        %v1648 = vpop.f32.mrb[0].mxu0
        %v1649 = vadd.f32 %v1577, %v1648
        %v1650 = vpop.f32.mrb[0].mxu0
        %1651 = vdwg.mxu0
        %v1652 = vadd.f32 %v1481, %v1649
        %v1653 = vld [vmem:[%s10 + $0x8] sm:$0x1]
        %v1654 = vld [vmem:[%s10 + $0x9] sm:$0x1]
        %v1655 = vsel %vm504, %v1652, 0.0
        %1656 = vadd.xlane.f32.xlu0 %v1655
        %v1657 = vpop.xlane.xlu0 %1656
        %v1658 = vmul.f32 %v1657, %v1461
        %v1659 = vsub.f32 %v1652, %v1658
        %v1660 = vmul.f32 %v1659, %v1659
        %v1661 = vsel %vm504, %v1660, 0.0
        %1662 = vadd.xlane.f32.xlu0 %v1661
        %v1663 = vpop.xlane.xlu0 %1662
        %v1664 = vmul.f32 %v1663, %v1461
        %v1665 = vadd.f32 %v1664, 1e-05
        %v1666 = vrsqrt.pop %v1665
        %v1667 = vmul.f32 %v1659, %v1666
        %v1668 = vlaneseq
        %v1669 = vshrl.u32 %v1668, 7
        %v1670 = vsub.s32 0, %v1669
        %v1671 = vrot.slane %v1653, %v1670
        %v1672 = vmul.f32 %v1667, %v1671
        %v1673 = vlaneseq
        %v1674 = vshrl.u32 %v1673, 7
        %v1675 = vsub.s32 0, %v1674
        %v1676 = vrot.slane %v1654, %v1675
        %v1677 = vadd.f32 %v1672, %v1676
        %v1678 = vld [vmem:[%s2] sm:$0xff]
        %v1679 = vld [vmem:[%s2 + $0x8] sm:$0xff]
        %v1680 = vld [vmem:[%s2 + $0x10] sm:$0xff]
        %v1681 = vld [vmem:[%s2 + $0x18] sm:$0xff]
        %v1682 = vld [vmem:[#allocation5] sm:$0x1]
        %v1684 = vlaneseq
        %v1685 = vshrl.u32 %v1684, 7
        %v1686 = vsub.s32 0, %v1685
        %v1687 = vrot.slane %v1682, %v1686
        %v1690 = vsel %vm504, %v1677, 0
        %1692 = vmatprep.subr.mxu0 0.0
        %1693 = vmatpush1.msra.mxu0 %v1678
        %1694 = vmatprep.subr.mxu0 0.0
        %1695 = vmatpush1.msra.mxu0 %v1679
        %1696 = vmatprep.subr.mxu0 0.0
        %1697 = vmatpush1.msra.mxu0 %v1680
        %1698 = vmatprep.subr.mxu0 0.0
        %1699 = vmatpush1.msra.mxu0 %v1681
        %1700 = vmatprep.subr.mxu0 0.0
        %1701 = vmatpush1.msra.mxu0 0.0
        %1702 = vmatprep.subr.mxu0 0.0
        %1703 = vmatpush1.msra.mxu0 0.0
        %1704 = vmatprep.subr.mxu0 0.0
        %1705 = vmatpush1.msra.mxu0 0.0
        %1706 = vmatprep.subr.mxu0 0.0
        %1707 = vmatpush1.msra.mxu0 0.0
        %1708 = vmatprep.subr.mxu0 0.0
        %1709 = vmatpush1.msra.mxu0 0.0
        %1710 = vmatprep.subr.mxu0 0.0
        %1711 = vmatpush1.msra.mxu0 0.0
        %1712 = vmatprep.subr.mxu0 0.0
        %1713 = vmatpush1.msra.mxu0 0.0
        %1714 = vmatprep.subr.mxu0 0.0
        %1715 = vmatpush1.msra.mxu0 0.0
        %1716 = vmatprep.subr.mxu0 0.0
        %1717 = vmatpush1.msra.mxu0 0.0
        %1718 = vmatprep.subr.mxu0 0.0
        %1719 = vmatpush1.msra.mxu0 0.0
        %1720 = vmatprep.subr.mxu0 0.0
        %1721 = vmatpush1.msra.mxu0 0.0
        %1722 = vmatprep.subr.mxu0 0.0
        %1723 = vmatpush1.msra.mxu0 0.0
        %1724 = vmatprep.subr.mxu0 0.0
        %1725 = vmatpush1.msra.mxu0 0.0
        %1726 = vmatprep.subr.mxu0 0.0
        %1727 = vmatpush1.msra.mxu0 0.0
        %1728 = vmatprep.subr.mxu0 0.0
        %1729 = vmatpush1.msra.mxu0 0.0
        %1730 = vmatprep.subr.mxu0 0.0
        %1731 = vmatpush1.msra.mxu0 0.0
        %1732 = vmatprep.subr.mxu0 0.0
        %1733 = vmatpush1.msra.mxu0 0.0
        %1734 = vmatprep.subr.mxu0 0.0
        %1735 = vmatpush1.msra.mxu0 0.0
        %1736 = vmatprep.subr.mxu0 0.0
        %1737 = vmatpush1.msra.mxu0 0.0
        %1738 = vmatprep.subr.mxu0 0.0
        %1739 = vmatpush1.msra.mxu0 0.0
        %1740 = vmatprep.subr.mxu0 0.0
        %1741 = vmatpush1.msra.mxu0 0.0
        %1742 = vmatprep.subr.mxu0 0.0
        %1743 = vmatpush1.msra.mxu0 0.0
        %1744 = vmatprep.subr.mxu0 0.0
        %1745 = vmatpush1.msra.mxu0 0.0
        %1746 = vmatprep.subr.mxu0 0.0
        %1747 = vmatpush1.msra.mxu0 0.0
        %1748 = vmatprep.subr.mxu0 0.0
        %1749 = vmatpush1.msra.mxu0 0.0
        %1750 = vmatprep.subr.mxu0 0.0
        %1751 = vmatpush1.msra.mxu0 0.0
        %1752 = vmatprep.subr.mxu0 0.0
        %1753 = vmatpush1.msra.mxu0 0.0
        %1754 = vmatprep.subr.mxu0 0.0
        %1755 = vmatpush1.msra.mxu0 0.0
        %1756 = vmatprep.mubr.f32.mxu0 0.0
        %1757 = vmatmul.mubr.f32.gmra.mrb[0].mxu0 %v1690
        %v1758 = vpop.f32.mrb[0].mxu0
        %v1759 = vadd.f32 %v1687, %v1758
        %v1760 = vpop.f32.mrb[0].mxu0
        %1761 = vdwg.mxu0
        %v1762 = vld [vmem:[%s4] sm:$0xff]
        %v1763 = vld [vmem:[%s4 + $0x8] sm:$0xff]
        %v1764 = vld [vmem:[%s4 + $0x10] sm:$0xff]
        %v1765 = vld [vmem:[%s4 + $0x18] sm:$0xff]
        %s1766 = scalar_lea.vmem %s10, 16
        %v1767 = vld [vmem:[%s1766] sm:$0x1]
        %1769 = vrot.lane.b32.xlu0 %v1759, 96
        %v1770 = vpop.permute.xlu0 %1769
        %v1771 = vsel %vm675, %v1759, 0
        %v1773 = vsel %vm675, %v1770, 0
        %1775 = vmatprep.subr.mxu0 0.0
        %1776 = vmatpush1.xpose.msra.mxu0 %v1773
        %1777 = vmatprep.subr.mxu0 0.0
        %1778 = vmatpush1.xpose.msra.mxu0 0.0
        %1779 = vmatprep.subr.mxu0 0.0
        %1780 = vmatpush1.xpose.msra.mxu0 0.0
        %1781 = vmatprep.subr.mxu0 0.0
        %1782 = vmatpush1.xpose.msra.mxu0 0.0
        %1783 = vmatprep.subr.mxu0 0.0
        %1784 = vmatpush1.xpose.msra.mxu0 0.0
        %1785 = vmatprep.subr.mxu0 0.0
        %1786 = vmatpush1.xpose.msra.mxu0 0.0
        %1787 = vmatprep.subr.mxu0 0.0
        %1788 = vmatpush1.xpose.msra.mxu0 0.0
        %1789 = vmatprep.subr.mxu0 0.0
        %1790 = vmatpush1.xpose.msra.mxu0 0.0
        %1791 = vmatprep.subr.mxu0 0.0
        %1792 = vmatpush1.xpose.msra.mxu0 0.0
        %1793 = vmatprep.subr.mxu0 0.0
        %1794 = vmatpush1.xpose.msra.mxu0 0.0
        %1795 = vmatprep.subr.mxu0 0.0
        %1796 = vmatpush1.xpose.msra.mxu0 0.0
        %1797 = vmatprep.subr.mxu0 0.0
        %1798 = vmatpush1.xpose.msra.mxu0 0.0
        %1799 = vmatprep.subr.mxu0 0.0
        %1800 = vmatpush1.xpose.msra.mxu0 0.0
        %1801 = vmatprep.subr.mxu0 0.0
        %1802 = vmatpush1.xpose.msra.mxu0 0.0
        %1803 = vmatprep.subr.mxu0 0.0
        %1804 = vmatpush1.xpose.msra.mxu0 0.0
        %1805 = vmatprep.subr.mxu0 0.0
        %1806 = vmatpush1.xpose.msra.mxu0 0.0
        %1807 = vmatprep.subr.mxu0 0.0
        %1808 = vmatpush1.xpose.msra.mxu0 0.0
        %1809 = vmatprep.subr.mxu0 0.0
        %1810 = vmatpush1.xpose.msra.mxu0 0.0
        %1811 = vmatprep.subr.mxu0 0.0
        %1812 = vmatpush1.xpose.msra.mxu0 0.0
        %1813 = vmatprep.subr.mxu0 0.0
        %1814 = vmatpush1.xpose.msra.mxu0 0.0
        %1815 = vmatprep.subr.mxu0 0.0
        %1816 = vmatpush1.xpose.msra.mxu0 0.0
        %1817 = vmatprep.subr.mxu0 0.0
        %1818 = vmatpush1.xpose.msra.mxu0 0.0
        %1819 = vmatprep.subr.mxu0 0.0
        %1820 = vmatpush1.xpose.msra.mxu0 0.0
        %1821 = vmatprep.subr.mxu0 0.0
        %1822 = vmatpush1.xpose.msra.mxu0 0.0
        %1823 = vmatprep.subr.mxu0 0.0
        %1824 = vmatpush1.xpose.msra.mxu0 0.0
        %1825 = vmatprep.subr.mxu0 0.0
        %1826 = vmatpush1.xpose.msra.mxu0 0.0
        %1827 = vmatprep.subr.mxu0 0.0
        %1828 = vmatpush1.xpose.msra.mxu0 0.0
        %1829 = vmatprep.subr.mxu0 0.0
        %1830 = vmatpush1.xpose.msra.mxu0 0.0
        %1831 = vmatprep.subr.mxu0 0.0
        %1832 = vmatpush1.xpose.msra.mxu0 0.0
        %1833 = vmatprep.subr.mxu0 0.0
        %1834 = vmatpush1.xpose.msra.mxu0 0.0
        %1835 = vmatprep.subr.mxu0 0.0
        %1836 = vmatpush1.xpose.msra.mxu0 0.0
        %1837 = vmatprep.subr.mxu0 0.0
        %1838 = vmatpush1.xpose.msra.mxu0 0.0
        %1839 = vmatprep.mubr.f32.mxu0 0.0
        %1840 = vmatmul.mubr.f32.gmra.mrb[0].mxu0 %v1771
        %v1841 = vpop.f32.mrb[0].mxu0
        %v1842 = vadd.f32 0.0, %v1841
        %v1843 = vpop.f32.mrb[0].mxu0
        %1844 = vdwg.mxu0
        %v1845 = vsel %vm675, %v1842, -inf
        %1846 = vmax.xlane.f32.xlu0 %v1845
        %v1847 = vpop.xlane.xlu0 %1846
        %v1848 = vsub.f32 %v1842, %v1847
        %v1849 = vmul.f32 %v1848, 1.442695
        %v1850 = vpow.pop %v1849
        %v1851 = vsel %vm675, %v1850, 0.0
        %1852 = vadd.xlane.f32.xlu0 %v1851
        %v1853 = vpop.xlane.xlu0 %1852
        %v1854 = vrcp.pop %v1853
        %v1855 = vmul.f32 %v1850, %v1854
        %1856 = vrot.lane.b32.xlu0 %v1759, 64
        %v1857 = vpop.permute.xlu0 %1856
        %v1860 = vsel %vm675, %v1855, 0
        %1862 = vmatprep.subr.mxu0 0.0
        %1863 = vmatpush1.msra.mxu0 %v1857
        %1864 = vmatprep.subr.mxu0 0.0
        %1865 = vmatpush1.msra.mxu0 0.0
        %1866 = vmatprep.subr.mxu0 0.0
        %1867 = vmatpush1.msra.mxu0 0.0
        %1868 = vmatprep.subr.mxu0 0.0
        %1869 = vmatpush1.msra.mxu0 0.0
        %1870 = vmatprep.subr.mxu0 0.0
        %1871 = vmatpush1.msra.mxu0 0.0
        %1872 = vmatprep.subr.mxu0 0.0
        %1873 = vmatpush1.msra.mxu0 0.0
        %1874 = vmatprep.subr.mxu0 0.0
        %1875 = vmatpush1.msra.mxu0 0.0
        %1876 = vmatprep.subr.mxu0 0.0
        %1877 = vmatpush1.msra.mxu0 0.0
        %1878 = vmatprep.subr.mxu0 0.0
        %1879 = vmatpush1.msra.mxu0 0.0
        %1880 = vmatprep.subr.mxu0 0.0
        %1881 = vmatpush1.msra.mxu0 0.0
        %1882 = vmatprep.subr.mxu0 0.0
        %1883 = vmatpush1.msra.mxu0 0.0
        %1884 = vmatprep.subr.mxu0 0.0
        %1885 = vmatpush1.msra.mxu0 0.0
        %1886 = vmatprep.subr.mxu0 0.0
        %1887 = vmatpush1.msra.mxu0 0.0
        %1888 = vmatprep.subr.mxu0 0.0
        %1889 = vmatpush1.msra.mxu0 0.0
        %1890 = vmatprep.subr.mxu0 0.0
        %1891 = vmatpush1.msra.mxu0 0.0
        %1892 = vmatprep.subr.mxu0 0.0
        %1893 = vmatpush1.msra.mxu0 0.0
        %1894 = vmatprep.subr.mxu0 0.0
        %1895 = vmatpush1.msra.mxu0 0.0
        %1896 = vmatprep.subr.mxu0 0.0
        %1897 = vmatpush1.msra.mxu0 0.0
        %1898 = vmatprep.subr.mxu0 0.0
        %1899 = vmatpush1.msra.mxu0 0.0
        %1900 = vmatprep.subr.mxu0 0.0
        %1901 = vmatpush1.msra.mxu0 0.0
        %1902 = vmatprep.subr.mxu0 0.0
        %1903 = vmatpush1.msra.mxu0 0.0
        %1904 = vmatprep.subr.mxu0 0.0
        %1905 = vmatpush1.msra.mxu0 0.0
        %1906 = vmatprep.subr.mxu0 0.0
        %1907 = vmatpush1.msra.mxu0 0.0
        %1908 = vmatprep.subr.mxu0 0.0
        %1909 = vmatpush1.msra.mxu0 0.0
        %1910 = vmatprep.subr.mxu0 0.0
        %1911 = vmatpush1.msra.mxu0 0.0
        %1912 = vmatprep.subr.mxu0 0.0
        %1913 = vmatpush1.msra.mxu0 0.0
        %1914 = vmatprep.subr.mxu0 0.0
        %1915 = vmatpush1.msra.mxu0 0.0
        %1916 = vmatprep.subr.mxu0 0.0
        %1917 = vmatpush1.msra.mxu0 0.0
        %1918 = vmatprep.subr.mxu0 0.0
        %1919 = vmatpush1.msra.mxu0 0.0
        %1920 = vmatprep.subr.mxu0 0.0
        %1921 = vmatpush1.msra.mxu0 0.0
        %1922 = vmatprep.subr.mxu0 0.0
        %1923 = vmatpush1.msra.mxu0 0.0
        %1924 = vmatprep.subr.mxu0 0.0
        %1925 = vmatpush1.msra.mxu0 0.0
        %1926 = vmatprep.mubr.f32.mxu0 0.0
        %1927 = vmatmul.mubr.f32.gmra.mrb[0].mxu0 %v1860
        %v1928 = vpop.f32.mrb[0].mxu0
        %v1929 = vadd.f32 0.0, %v1928
        %v1930 = vpop.f32.mrb[0].mxu0
        %1931 = vdwg.mxu0
        %1932 = vrot.lane.b32.xlu0 %v1759, 120
        %v1933 = vpop.permute.xlu0 %1932
        %1934 = vrot.lane.b32.xlu0 %v1759, 88
        %v1935 = vpop.permute.xlu0 %1934
        %v1936 = vsel %vm675, %v1933, 0
        %v1938 = vsel %vm675, %v1935, 0
        %1940 = vmatprep.subr.mxu0 0.0
        %1941 = vmatpush1.xpose.msra.mxu0 %v1938
        %1942 = vmatprep.subr.mxu0 0.0
        %1943 = vmatpush1.xpose.msra.mxu0 0.0
        %1944 = vmatprep.subr.mxu0 0.0
        %1945 = vmatpush1.xpose.msra.mxu0 0.0
        %1946 = vmatprep.subr.mxu0 0.0
        %1947 = vmatpush1.xpose.msra.mxu0 0.0
        %1948 = vmatprep.subr.mxu0 0.0
        %1949 = vmatpush1.xpose.msra.mxu0 0.0
        %1950 = vmatprep.subr.mxu0 0.0
        %1951 = vmatpush1.xpose.msra.mxu0 0.0
        %1952 = vmatprep.subr.mxu0 0.0
        %1953 = vmatpush1.xpose.msra.mxu0 0.0
        %1954 = vmatprep.subr.mxu0 0.0
        %1955 = vmatpush1.xpose.msra.mxu0 0.0
        %1956 = vmatprep.subr.mxu0 0.0
        %1957 = vmatpush1.xpose.msra.mxu0 0.0
        %1958 = vmatprep.subr.mxu0 0.0
        %1959 = vmatpush1.xpose.msra.mxu0 0.0
        %1960 = vmatprep.subr.mxu0 0.0
        %1961 = vmatpush1.xpose.msra.mxu0 0.0
        %1962 = vmatprep.subr.mxu0 0.0
        %1963 = vmatpush1.xpose.msra.mxu0 0.0
        %1964 = vmatprep.subr.mxu0 0.0
        %1965 = vmatpush1.xpose.msra.mxu0 0.0
        %1966 = vmatprep.subr.mxu0 0.0
        %1967 = vmatpush1.xpose.msra.mxu0 0.0
        %1968 = vmatprep.subr.mxu0 0.0
        %1969 = vmatpush1.xpose.msra.mxu0 0.0
        %1970 = vmatprep.subr.mxu0 0.0
        %1971 = vmatpush1.xpose.msra.mxu0 0.0
        %1972 = vmatprep.subr.mxu0 0.0
        %1973 = vmatpush1.xpose.msra.mxu0 0.0
        %1974 = vmatprep.subr.mxu0 0.0
        %1975 = vmatpush1.xpose.msra.mxu0 0.0
        %1976 = vmatprep.subr.mxu0 0.0
        %1977 = vmatpush1.xpose.msra.mxu0 0.0
        %1978 = vmatprep.subr.mxu0 0.0
        %1979 = vmatpush1.xpose.msra.mxu0 0.0
        %1980 = vmatprep.subr.mxu0 0.0
        %1981 = vmatpush1.xpose.msra.mxu0 0.0
        %1982 = vmatprep.subr.mxu0 0.0
        %1983 = vmatpush1.xpose.msra.mxu0 0.0
        %1984 = vmatprep.subr.mxu0 0.0
        %1985 = vmatpush1.xpose.msra.mxu0 0.0
        %1986 = vmatprep.subr.mxu0 0.0
        %1987 = vmatpush1.xpose.msra.mxu0 0.0
        %1988 = vmatprep.subr.mxu0 0.0
        %1989 = vmatpush1.xpose.msra.mxu0 0.0
        %1990 = vmatprep.subr.mxu0 0.0
        %1991 = vmatpush1.xpose.msra.mxu0 0.0
        %1992 = vmatprep.subr.mxu0 0.0
        %1993 = vmatpush1.xpose.msra.mxu0 0.0
        %1994 = vmatprep.subr.mxu0 0.0
        %1995 = vmatpush1.xpose.msra.mxu0 0.0
        %1996 = vmatprep.subr.mxu0 0.0
        %1997 = vmatpush1.xpose.msra.mxu0 0.0
        %1998 = vmatprep.subr.mxu0 0.0
        %1999 = vmatpush1.xpose.msra.mxu0 0.0
        %2000 = vmatprep.subr.mxu0 0.0
        %2001 = vmatpush1.xpose.msra.mxu0 0.0
        %2002 = vmatprep.subr.mxu0 0.0
        %2003 = vmatpush1.xpose.msra.mxu0 0.0
        %2004 = vmatprep.mubr.f32.mxu0 0.0
        %2005 = vmatmul.mubr.f32.gmra.mrb[0].mxu0 %v1936
        %v2006 = vpop.f32.mrb[0].mxu0
        %v2007 = vadd.f32 0.0, %v2006
        %v2008 = vpop.f32.mrb[0].mxu0
        %2009 = vdwg.mxu0
        %v2010 = vsel %vm675, %v2007, -inf
        %2011 = vmax.xlane.f32.xlu0 %v2010
        %v2012 = vpop.xlane.xlu0 %2011
        %v2013 = vsub.f32 %v2007, %v2012
        %v2014 = vmul.f32 %v2013, 1.442695
        %v2015 = vpow.pop %v2014
        %v2016 = vsel %vm675, %v2015, 0.0
        %2017 = vadd.xlane.f32.xlu0 %v2016
        %v2018 = vpop.xlane.xlu0 %2017
        %v2019 = vrcp.pop %v2018
        %v2020 = vmul.f32 %v2015, %v2019
        %2021 = vrot.lane.b32.xlu0 %v1759, 56
        %v2022 = vpop.permute.xlu0 %2021
        %v2025 = vsel %vm675, %v2020, 0
        %2027 = vmatprep.subr.mxu0 0.0
        %2028 = vmatpush1.msra.mxu0 %v2022
        %2029 = vmatprep.subr.mxu0 0.0
        %2030 = vmatpush1.msra.mxu0 0.0
        %2031 = vmatprep.subr.mxu0 0.0
        %2032 = vmatpush1.msra.mxu0 0.0
        %2033 = vmatprep.subr.mxu0 0.0
        %2034 = vmatpush1.msra.mxu0 0.0
        %2035 = vmatprep.subr.mxu0 0.0
        %2036 = vmatpush1.msra.mxu0 0.0
        %2037 = vmatprep.subr.mxu0 0.0
        %2038 = vmatpush1.msra.mxu0 0.0
        %2039 = vmatprep.subr.mxu0 0.0
        %2040 = vmatpush1.msra.mxu0 0.0
        %2041 = vmatprep.subr.mxu0 0.0
        %2042 = vmatpush1.msra.mxu0 0.0
        %2043 = vmatprep.subr.mxu0 0.0
        %2044 = vmatpush1.msra.mxu0 0.0
        %2045 = vmatprep.subr.mxu0 0.0
        %2046 = vmatpush1.msra.mxu0 0.0
        %2047 = vmatprep.subr.mxu0 0.0
        %2048 = vmatpush1.msra.mxu0 0.0
        %2049 = vmatprep.subr.mxu0 0.0
        %2050 = vmatpush1.msra.mxu0 0.0
        %2051 = vmatprep.subr.mxu0 0.0
        %2052 = vmatpush1.msra.mxu0 0.0
        %2053 = vmatprep.subr.mxu0 0.0
        %2054 = vmatpush1.msra.mxu0 0.0
        %2055 = vmatprep.subr.mxu0 0.0
        %2056 = vmatpush1.msra.mxu0 0.0
        %2057 = vmatprep.subr.mxu0 0.0
        %2058 = vmatpush1.msra.mxu0 0.0
        %2059 = vmatprep.subr.mxu0 0.0
        %2060 = vmatpush1.msra.mxu0 0.0
        %2061 = vmatprep.subr.mxu0 0.0
        %2062 = vmatpush1.msra.mxu0 0.0
        %2063 = vmatprep.subr.mxu0 0.0
        %2064 = vmatpush1.msra.mxu0 0.0
        %2065 = vmatprep.subr.mxu0 0.0
        %2066 = vmatpush1.msra.mxu0 0.0
        %2067 = vmatprep.subr.mxu0 0.0
        %2068 = vmatpush1.msra.mxu0 0.0
        %2069 = vmatprep.subr.mxu0 0.0
        %2070 = vmatpush1.msra.mxu0 0.0
        %2071 = vmatprep.subr.mxu0 0.0
        %2072 = vmatpush1.msra.mxu0 0.0
        %2073 = vmatprep.subr.mxu0 0.0
        %2074 = vmatpush1.msra.mxu0 0.0
        %2075 = vmatprep.subr.mxu0 0.0
        %2076 = vmatpush1.msra.mxu0 0.0
        %2077 = vmatprep.subr.mxu0 0.0
        %2078 = vmatpush1.msra.mxu0 0.0
        %2079 = vmatprep.subr.mxu0 0.0
        %2080 = vmatpush1.msra.mxu0 0.0
        %2081 = vmatprep.subr.mxu0 0.0
        %2082 = vmatpush1.msra.mxu0 0.0
        %2083 = vmatprep.subr.mxu0 0.0
        %2084 = vmatpush1.msra.mxu0 0.0
        %2085 = vmatprep.subr.mxu0 0.0
        %2086 = vmatpush1.msra.mxu0 0.0
        %2087 = vmatprep.subr.mxu0 0.0
        %2088 = vmatpush1.msra.mxu0 0.0
        %2089 = vmatprep.subr.mxu0 0.0
        %2090 = vmatpush1.msra.mxu0 0.0
        %2091 = vmatprep.mubr.f32.mxu0 0.0
        %2092 = vmatmul.mubr.f32.gmra.mrb[0].mxu0 %v2025
        %v2093 = vpop.f32.mrb[0].mxu0
        %v2094 = vadd.f32 0.0, %v2093
        %v2095 = vpop.f32.mrb[0].mxu0
        %2096 = vdwg.mxu0
        %2097 = vrot.lane.b32.xlu0 %v1759, 112
        %v2098 = vpop.permute.xlu0 %2097
        %2099 = vrot.lane.b32.xlu0 %v1759, 80
        %v2100 = vpop.permute.xlu0 %2099
        %v2101 = vsel %vm675, %v2098, 0
        %v2103 = vsel %vm675, %v2100, 0
        %2105 = vmatprep.subr.mxu0 0.0
        %2106 = vmatpush1.xpose.msra.mxu0 %v2103
        %2107 = vmatprep.subr.mxu0 0.0
        %2108 = vmatpush1.xpose.msra.mxu0 0.0
        %2109 = vmatprep.subr.mxu0 0.0
        %2110 = vmatpush1.xpose.msra.mxu0 0.0
        %2111 = vmatprep.subr.mxu0 0.0
        %2112 = vmatpush1.xpose.msra.mxu0 0.0
        %2113 = vmatprep.subr.mxu0 0.0
        %2114 = vmatpush1.xpose.msra.mxu0 0.0
        %2115 = vmatprep.subr.mxu0 0.0
        %2116 = vmatpush1.xpose.msra.mxu0 0.0
        %2117 = vmatprep.subr.mxu0 0.0
        %2118 = vmatpush1.xpose.msra.mxu0 0.0
        %2119 = vmatprep.subr.mxu0 0.0
        %2120 = vmatpush1.xpose.msra.mxu0 0.0
        %2121 = vmatprep.subr.mxu0 0.0
        %2122 = vmatpush1.xpose.msra.mxu0 0.0
        %2123 = vmatprep.subr.mxu0 0.0
        %2124 = vmatpush1.xpose.msra.mxu0 0.0
        %2125 = vmatprep.subr.mxu0 0.0
        %2126 = vmatpush1.xpose.msra.mxu0 0.0
        %2127 = vmatprep.subr.mxu0 0.0
        %2128 = vmatpush1.xpose.msra.mxu0 0.0
        %2129 = vmatprep.subr.mxu0 0.0
        %2130 = vmatpush1.xpose.msra.mxu0 0.0
        %2131 = vmatprep.subr.mxu0 0.0
        %2132 = vmatpush1.xpose.msra.mxu0 0.0
        %2133 = vmatprep.subr.mxu0 0.0
        %2134 = vmatpush1.xpose.msra.mxu0 0.0
        %2135 = vmatprep.subr.mxu0 0.0
        %2136 = vmatpush1.xpose.msra.mxu0 0.0
        %2137 = vmatprep.subr.mxu0 0.0
        %2138 = vmatpush1.xpose.msra.mxu0 0.0
        %2139 = vmatprep.subr.mxu0 0.0
        %2140 = vmatpush1.xpose.msra.mxu0 0.0
        %2141 = vmatprep.subr.mxu0 0.0
        %2142 = vmatpush1.xpose.msra.mxu0 0.0
        %2143 = vmatprep.subr.mxu0 0.0
        %2144 = vmatpush1.xpose.msra.mxu0 0.0
        %2145 = vmatprep.subr.mxu0 0.0
        %2146 = vmatpush1.xpose.msra.mxu0 0.0
        %2147 = vmatprep.subr.mxu0 0.0
        %2148 = vmatpush1.xpose.msra.mxu0 0.0
        %2149 = vmatprep.subr.mxu0 0.0
        %2150 = vmatpush1.xpose.msra.mxu0 0.0
        %2151 = vmatprep.subr.mxu0 0.0
        %2152 = vmatpush1.xpose.msra.mxu0 0.0
        %2153 = vmatprep.subr.mxu0 0.0
        %2154 = vmatpush1.xpose.msra.mxu0 0.0
        %2155 = vmatprep.subr.mxu0 0.0
        %2156 = vmatpush1.xpose.msra.mxu0 0.0
        %2157 = vmatprep.subr.mxu0 0.0
        %2158 = vmatpush1.xpose.msra.mxu0 0.0
        %2159 = vmatprep.subr.mxu0 0.0
        %2160 = vmatpush1.xpose.msra.mxu0 0.0
        %2161 = vmatprep.subr.mxu0 0.0
        %2162 = vmatpush1.xpose.msra.mxu0 0.0
        %2163 = vmatprep.subr.mxu0 0.0
        %2164 = vmatpush1.xpose.msra.mxu0 0.0
        %2165 = vmatprep.subr.mxu0 0.0
        %2166 = vmatpush1.xpose.msra.mxu0 0.0
        %2167 = vmatprep.subr.mxu0 0.0
        %2168 = vmatpush1.xpose.msra.mxu0 0.0
        %2169 = vmatprep.mubr.f32.mxu0 0.0
        %2170 = vmatmul.mubr.f32.gmra.mrb[0].mxu0 %v2101
        %v2171 = vpop.f32.mrb[0].mxu0
        %v2172 = vadd.f32 0.0, %v2171
        %v2173 = vpop.f32.mrb[0].mxu0
        %2174 = vdwg.mxu0
        %v2175 = vsel %vm675, %v2172, -inf
        %2176 = vmax.xlane.f32.xlu0 %v2175
        %v2177 = vpop.xlane.xlu0 %2176
        %v2178 = vsub.f32 %v2172, %v2177
        %v2179 = vmul.f32 %v2178, 1.442695
        %v2180 = vpow.pop %v2179
        %v2181 = vsel %vm675, %v2180, 0.0
        %2182 = vadd.xlane.f32.xlu0 %v2181
        %v2183 = vpop.xlane.xlu0 %2182
        %v2184 = vrcp.pop %v2183
        %v2185 = vmul.f32 %v2180, %v2184
        %2186 = vrot.lane.b32.xlu0 %v1759, 48
        %v2187 = vpop.permute.xlu0 %2186
        %v2190 = vsel %vm675, %v2185, 0
        %2192 = vmatprep.subr.mxu0 0.0
        %2193 = vmatpush1.msra.mxu0 %v2187
        %2194 = vmatprep.subr.mxu0 0.0
        %2195 = vmatpush1.msra.mxu0 0.0
        %2196 = vmatprep.subr.mxu0 0.0
        %2197 = vmatpush1.msra.mxu0 0.0
        %2198 = vmatprep.subr.mxu0 0.0
        %2199 = vmatpush1.msra.mxu0 0.0
        %2200 = vmatprep.subr.mxu0 0.0
        %2201 = vmatpush1.msra.mxu0 0.0
        %2202 = vmatprep.subr.mxu0 0.0
        %2203 = vmatpush1.msra.mxu0 0.0
        %2204 = vmatprep.subr.mxu0 0.0
        %2205 = vmatpush1.msra.mxu0 0.0
        %2206 = vmatprep.subr.mxu0 0.0
        %2207 = vmatpush1.msra.mxu0 0.0
        %2208 = vmatprep.subr.mxu0 0.0
        %2209 = vmatpush1.msra.mxu0 0.0
        %2210 = vmatprep.subr.mxu0 0.0
        %2211 = vmatpush1.msra.mxu0 0.0
        %2212 = vmatprep.subr.mxu0 0.0
        %2213 = vmatpush1.msra.mxu0 0.0
        %2214 = vmatprep.subr.mxu0 0.0
        %2215 = vmatpush1.msra.mxu0 0.0
        %2216 = vmatprep.subr.mxu0 0.0
        %2217 = vmatpush1.msra.mxu0 0.0
        %2218 = vmatprep.subr.mxu0 0.0
        %2219 = vmatpush1.msra.mxu0 0.0
        %2220 = vmatprep.subr.mxu0 0.0
        %2221 = vmatpush1.msra.mxu0 0.0
        %2222 = vmatprep.subr.mxu0 0.0
        %2223 = vmatpush1.msra.mxu0 0.0
        %2224 = vmatprep.subr.mxu0 0.0
        %2225 = vmatpush1.msra.mxu0 0.0
        %2226 = vmatprep.subr.mxu0 0.0
        %2227 = vmatpush1.msra.mxu0 0.0
        %2228 = vmatprep.subr.mxu0 0.0
        %2229 = vmatpush1.msra.mxu0 0.0
        %2230 = vmatprep.subr.mxu0 0.0
        %2231 = vmatpush1.msra.mxu0 0.0
        %2232 = vmatprep.subr.mxu0 0.0
        %2233 = vmatpush1.msra.mxu0 0.0
        %2234 = vmatprep.subr.mxu0 0.0
        %2235 = vmatpush1.msra.mxu0 0.0
        %2236 = vmatprep.subr.mxu0 0.0
        %2237 = vmatpush1.msra.mxu0 0.0
        %2238 = vmatprep.subr.mxu0 0.0
        %2239 = vmatpush1.msra.mxu0 0.0
        %2240 = vmatprep.subr.mxu0 0.0
        %2241 = vmatpush1.msra.mxu0 0.0
        %2242 = vmatprep.subr.mxu0 0.0
        %2243 = vmatpush1.msra.mxu0 0.0
        %2244 = vmatprep.subr.mxu0 0.0
        %2245 = vmatpush1.msra.mxu0 0.0
        %2246 = vmatprep.subr.mxu0 0.0
        %2247 = vmatpush1.msra.mxu0 0.0
        %2248 = vmatprep.subr.mxu0 0.0
        %2249 = vmatpush1.msra.mxu0 0.0
        %2250 = vmatprep.subr.mxu0 0.0
        %2251 = vmatpush1.msra.mxu0 0.0
        %2252 = vmatprep.subr.mxu0 0.0
        %2253 = vmatpush1.msra.mxu0 0.0
        %2254 = vmatprep.subr.mxu0 0.0
        %2255 = vmatpush1.msra.mxu0 0.0
        %2256 = vmatprep.mubr.f32.mxu0 0.0
        %2257 = vmatmul.mubr.f32.gmra.mrb[0].mxu0 %v2190
        %v2258 = vpop.f32.mrb[0].mxu0
        %v2259 = vadd.f32 0.0, %v2258
        %v2260 = vpop.f32.mrb[0].mxu0
        %2261 = vdwg.mxu0
        %2262 = vrot.lane.b32.xlu0 %v1759, 104
        %v2263 = vpop.permute.xlu0 %2262
        %2264 = vrot.lane.b32.xlu0 %v1759, 72
        %v2265 = vpop.permute.xlu0 %2264
        %v2266 = vsel %vm675, %v2263, 0
        %v2268 = vsel %vm675, %v2265, 0
        %2270 = vmatprep.subr.mxu0 0.0
        %2271 = vmatpush1.xpose.msra.mxu0 %v2268
        %2272 = vmatprep.subr.mxu0 0.0
        %2273 = vmatpush1.xpose.msra.mxu0 0.0
        %2274 = vmatprep.subr.mxu0 0.0
        %2275 = vmatpush1.xpose.msra.mxu0 0.0
        %2276 = vmatprep.subr.mxu0 0.0
        %2277 = vmatpush1.xpose.msra.mxu0 0.0
        %2278 = vmatprep.subr.mxu0 0.0
        %2279 = vmatpush1.xpose.msra.mxu0 0.0
        %2280 = vmatprep.subr.mxu0 0.0
        %2281 = vmatpush1.xpose.msra.mxu0 0.0
        %2282 = vmatprep.subr.mxu0 0.0
        %2283 = vmatpush1.xpose.msra.mxu0 0.0
        %2284 = vmatprep.subr.mxu0 0.0
        %2285 = vmatpush1.xpose.msra.mxu0 0.0
        %2286 = vmatprep.subr.mxu0 0.0
        %2287 = vmatpush1.xpose.msra.mxu0 0.0
        %2288 = vmatprep.subr.mxu0 0.0
        %2289 = vmatpush1.xpose.msra.mxu0 0.0
        %2290 = vmatprep.subr.mxu0 0.0
        %2291 = vmatpush1.xpose.msra.mxu0 0.0
        %2292 = vmatprep.subr.mxu0 0.0
        %2293 = vmatpush1.xpose.msra.mxu0 0.0
        %2294 = vmatprep.subr.mxu0 0.0
        %2295 = vmatpush1.xpose.msra.mxu0 0.0
        %2296 = vmatprep.subr.mxu0 0.0
        %2297 = vmatpush1.xpose.msra.mxu0 0.0
        %2298 = vmatprep.subr.mxu0 0.0
        %2299 = vmatpush1.xpose.msra.mxu0 0.0
        %2300 = vmatprep.subr.mxu0 0.0
        %2301 = vmatpush1.xpose.msra.mxu0 0.0
        %2302 = vmatprep.subr.mxu0 0.0
        %2303 = vmatpush1.xpose.msra.mxu0 0.0
        %2304 = vmatprep.subr.mxu0 0.0
        %2305 = vmatpush1.xpose.msra.mxu0 0.0
        %2306 = vmatprep.subr.mxu0 0.0
        %2307 = vmatpush1.xpose.msra.mxu0 0.0
        %2308 = vmatprep.subr.mxu0 0.0
        %2309 = vmatpush1.xpose.msra.mxu0 0.0
        %2310 = vmatprep.subr.mxu0 0.0
        %2311 = vmatpush1.xpose.msra.mxu0 0.0
        %2312 = vmatprep.subr.mxu0 0.0
        %2313 = vmatpush1.xpose.msra.mxu0 0.0
        %2314 = vmatprep.subr.mxu0 0.0
        %2315 = vmatpush1.xpose.msra.mxu0 0.0
        %2316 = vmatprep.subr.mxu0 0.0
        %2317 = vmatpush1.xpose.msra.mxu0 0.0
        %2318 = vmatprep.subr.mxu0 0.0
        %2319 = vmatpush1.xpose.msra.mxu0 0.0
        %2320 = vmatprep.subr.mxu0 0.0
        %2321 = vmatpush1.xpose.msra.mxu0 0.0
        %2322 = vmatprep.subr.mxu0 0.0
        %2323 = vmatpush1.xpose.msra.mxu0 0.0
        %2324 = vmatprep.subr.mxu0 0.0
        %2325 = vmatpush1.xpose.msra.mxu0 0.0
        %2326 = vmatprep.subr.mxu0 0.0
        %2327 = vmatpush1.xpose.msra.mxu0 0.0
        %2328 = vmatprep.subr.mxu0 0.0
        %2329 = vmatpush1.xpose.msra.mxu0 0.0
        %2330 = vmatprep.subr.mxu0 0.0
        %2331 = vmatpush1.xpose.msra.mxu0 0.0
        %2332 = vmatprep.subr.mxu0 0.0
        %2333 = vmatpush1.xpose.msra.mxu0 0.0
        %2334 = vmatprep.mubr.f32.mxu0 0.0
        %2335 = vmatmul.mubr.f32.gmra.mrb[0].mxu0 %v2266
        %v2336 = vpop.f32.mrb[0].mxu0
        %v2337 = vadd.f32 0.0, %v2336
        %v2338 = vpop.f32.mrb[0].mxu0
        %2339 = vdwg.mxu0
        %v2340 = vsel %vm675, %v2337, -inf
        %2341 = vmax.xlane.f32.xlu0 %v2340
        %v2342 = vpop.xlane.xlu0 %2341
        %v2343 = vsub.f32 %v2337, %v2342
        %v2344 = vmul.f32 %v2343, 1.442695
        %v2345 = vpow.pop %v2344
        %v2346 = vsel %vm675, %v2345, 0.0
        %2347 = vadd.xlane.f32.xlu0 %v2346
        %v2348 = vpop.xlane.xlu0 %2347
        %v2349 = vrcp.pop %v2348
        %v2350 = vmul.f32 %v2345, %v2349
        %2351 = vrot.lane.b32.xlu0 %v1759, 40
        %v2352 = vpop.permute.xlu0 %2351
        %v2355 = vsel %vm675, %v2350, 0
        %2357 = vmatprep.subr.mxu0 0.0
        %2358 = vmatpush1.msra.mxu0 %v2352
        %2359 = vmatprep.subr.mxu0 0.0
        %2360 = vmatpush1.msra.mxu0 0.0
        %2361 = vmatprep.subr.mxu0 0.0
        %2362 = vmatpush1.msra.mxu0 0.0
        %2363 = vmatprep.subr.mxu0 0.0
        %2364 = vmatpush1.msra.mxu0 0.0
        %2365 = vmatprep.subr.mxu0 0.0
        %2366 = vmatpush1.msra.mxu0 0.0
        %2367 = vmatprep.subr.mxu0 0.0
        %2368 = vmatpush1.msra.mxu0 0.0
        %2369 = vmatprep.subr.mxu0 0.0
        %2370 = vmatpush1.msra.mxu0 0.0
        %2371 = vmatprep.subr.mxu0 0.0
        %2372 = vmatpush1.msra.mxu0 0.0
        %2373 = vmatprep.subr.mxu0 0.0
        %2374 = vmatpush1.msra.mxu0 0.0
        %2375 = vmatprep.subr.mxu0 0.0
        %2376 = vmatpush1.msra.mxu0 0.0
        %2377 = vmatprep.subr.mxu0 0.0
        %2378 = vmatpush1.msra.mxu0 0.0
        %2379 = vmatprep.subr.mxu0 0.0
        %2380 = vmatpush1.msra.mxu0 0.0
        %2381 = vmatprep.subr.mxu0 0.0
        %2382 = vmatpush1.msra.mxu0 0.0
        %2383 = vmatprep.subr.mxu0 0.0
        %2384 = vmatpush1.msra.mxu0 0.0
        %2385 = vmatprep.subr.mxu0 0.0
        %2386 = vmatpush1.msra.mxu0 0.0
        %2387 = vmatprep.subr.mxu0 0.0
        %2388 = vmatpush1.msra.mxu0 0.0
        %2389 = vmatprep.subr.mxu0 0.0
        %2390 = vmatpush1.msra.mxu0 0.0
        %2391 = vmatprep.subr.mxu0 0.0
        %2392 = vmatpush1.msra.mxu0 0.0
        %2393 = vmatprep.subr.mxu0 0.0
        %2394 = vmatpush1.msra.mxu0 0.0
        %2395 = vmatprep.subr.mxu0 0.0
        %2396 = vmatpush1.msra.mxu0 0.0
        %2397 = vmatprep.subr.mxu0 0.0
        %2398 = vmatpush1.msra.mxu0 0.0
        %2399 = vmatprep.subr.mxu0 0.0
        %2400 = vmatpush1.msra.mxu0 0.0
        %2401 = vmatprep.subr.mxu0 0.0
        %2402 = vmatpush1.msra.mxu0 0.0
        %2403 = vmatprep.subr.mxu0 0.0
        %2404 = vmatpush1.msra.mxu0 0.0
        %2405 = vmatprep.subr.mxu0 0.0
        %2406 = vmatpush1.msra.mxu0 0.0
        %2407 = vmatprep.subr.mxu0 0.0
        %2408 = vmatpush1.msra.mxu0 0.0
        %2409 = vmatprep.subr.mxu0 0.0
        %2410 = vmatpush1.msra.mxu0 0.0
        %2411 = vmatprep.subr.mxu0 0.0
        %2412 = vmatpush1.msra.mxu0 0.0
        %2413 = vmatprep.subr.mxu0 0.0
        %2414 = vmatpush1.msra.mxu0 0.0
        %2415 = vmatprep.subr.mxu0 0.0
        %2416 = vmatpush1.msra.mxu0 0.0
        %2417 = vmatprep.subr.mxu0 0.0
        %2418 = vmatpush1.msra.mxu0 0.0
        %2419 = vmatprep.subr.mxu0 0.0
        %2420 = vmatpush1.msra.mxu0 0.0
        %2421 = vmatprep.mubr.f32.mxu0 0.0
        %2422 = vmatmul.mubr.f32.gmra.mrb[0].mxu0 %v2355
        %v2423 = vpop.f32.mrb[0].mxu0
        %v2424 = vadd.f32 0.0, %v2423
        %v2425 = vpop.f32.mrb[0].mxu0
        %2426 = vdwg.mxu0
        %2428 = vrot.lane.b32.xlu0 %v2094, 8
        %v2429 = vpop.permute.xlu0 %2428
        %2432 = vrot.lane.b32.xlu0 %v2259, 16
        %v2433 = vpop.permute.xlu0 %2432
        %2436 = vrot.lane.b32.xlu0 %v2424, 24
        %v2437 = vpop.permute.xlu0 %2436
        %v2439 = vsel %vm675, %v1929, %v2429
        %v2440 = vsel %vm755, %v2439, %v2433
        %v2441 = vsel %vm1376, %v2440, %v2437
        %v2442 = vlaneseq
        %v2443 = vshrl.u32 %v2442, 7
        %v2444 = vsub.s32 0, %v2443
        %v2445 = vrot.slane %v1767, %v2444
        %v2447 = vsel %vm504, %v2441, 0
        %2449 = vmatprep.subr.mxu0 0.0
        %2450 = vmatpush1.msra.mxu0 %v1762
        %2451 = vmatprep.subr.mxu0 0.0
        %2452 = vmatpush1.msra.mxu0 %v1763
        %2453 = vmatprep.subr.mxu0 0.0
        %2454 = vmatpush1.msra.mxu0 %v1764
        %2455 = vmatprep.subr.mxu0 0.0
        %2456 = vmatpush1.msra.mxu0 %v1765
        %2457 = vmatprep.subr.mxu0 0.0
        %2458 = vmatpush1.msra.mxu0 0.0
        %2459 = vmatprep.subr.mxu0 0.0
        %2460 = vmatpush1.msra.mxu0 0.0
        %2461 = vmatprep.subr.mxu0 0.0
        %2462 = vmatpush1.msra.mxu0 0.0
        %2463 = vmatprep.subr.mxu0 0.0
        %2464 = vmatpush1.msra.mxu0 0.0
        %2465 = vmatprep.subr.mxu0 0.0
        %2466 = vmatpush1.msra.mxu0 0.0
        %2467 = vmatprep.subr.mxu0 0.0
        %2468 = vmatpush1.msra.mxu0 0.0
        %2469 = vmatprep.subr.mxu0 0.0
        %2470 = vmatpush1.msra.mxu0 0.0
        %2471 = vmatprep.subr.mxu0 0.0
        %2472 = vmatpush1.msra.mxu0 0.0
        %2473 = vmatprep.subr.mxu0 0.0
        %2474 = vmatpush1.msra.mxu0 0.0
        %2475 = vmatprep.subr.mxu0 0.0
        %2476 = vmatpush1.msra.mxu0 0.0
        %2477 = vmatprep.subr.mxu0 0.0
        %2478 = vmatpush1.msra.mxu0 0.0
        %2479 = vmatprep.subr.mxu0 0.0
        %2480 = vmatpush1.msra.mxu0 0.0
        %2481 = vmatprep.subr.mxu0 0.0
        %2482 = vmatpush1.msra.mxu0 0.0
        %2483 = vmatprep.subr.mxu0 0.0
        %2484 = vmatpush1.msra.mxu0 0.0
        %2485 = vmatprep.subr.mxu0 0.0
        %2486 = vmatpush1.msra.mxu0 0.0
        %2487 = vmatprep.subr.mxu0 0.0
        %2488 = vmatpush1.msra.mxu0 0.0
        %2489 = vmatprep.subr.mxu0 0.0
        %2490 = vmatpush1.msra.mxu0 0.0
        %2491 = vmatprep.subr.mxu0 0.0
        %2492 = vmatpush1.msra.mxu0 0.0
        %2493 = vmatprep.subr.mxu0 0.0
        %2494 = vmatpush1.msra.mxu0 0.0
        %2495 = vmatprep.subr.mxu0 0.0
        %2496 = vmatpush1.msra.mxu0 0.0
        %2497 = vmatprep.subr.mxu0 0.0
        %2498 = vmatpush1.msra.mxu0 0.0
        %2499 = vmatprep.subr.mxu0 0.0
        %2500 = vmatpush1.msra.mxu0 0.0
        %2501 = vmatprep.subr.mxu0 0.0
        %2502 = vmatpush1.msra.mxu0 0.0
        %2503 = vmatprep.subr.mxu0 0.0
        %2504 = vmatpush1.msra.mxu0 0.0
        %2505 = vmatprep.subr.mxu0 0.0
        %2506 = vmatpush1.msra.mxu0 0.0
        %2507 = vmatprep.subr.mxu0 0.0
        %2508 = vmatpush1.msra.mxu0 0.0
        %2509 = vmatprep.subr.mxu0 0.0
        %2510 = vmatpush1.msra.mxu0 0.0
        %2511 = vmatprep.subr.mxu0 0.0
        %2512 = vmatpush1.msra.mxu0 0.0
        %2513 = vmatprep.mubr.f32.mxu0 0.0
        %2514 = vmatmul.mubr.f32.gmra.mrb[0].mxu0 %v2447
        %v2515 = vpop.f32.mrb[0].mxu0
        %v2516 = vadd.f32 %v2445, %v2515
        %v2517 = vpop.f32.mrb[0].mxu0
        %2518 = vdwg.mxu0
        %v2519 = vadd.f32 %v1677, %v2516
        %v2520 = vld [vmem:[%s1766 + $0x1] sm:$0x1]
        %v2521 = vld [vmem:[%s1766 + $0x2] sm:$0x1]
        %v2522 = vsel %vm504, %v2519, 0.0
        %2523 = vadd.xlane.f32.xlu0 %v2522
        %v2524 = vpop.xlane.xlu0 %2523
        %v2525 = vmul.f32 %v2524, %v1461
        %v2526 = vsub.f32 %v2519, %v2525
        %v2527 = vmul.f32 %v2526, %v2526
        %v2528 = vsel %vm504, %v2527, 0.0
        %2529 = vadd.xlane.f32.xlu0 %v2528
        %v2530 = vpop.xlane.xlu0 %2529
        %v2531 = vmul.f32 %v2530, %v1461
        %v2532 = vadd.f32 %v2531, 1e-05
        %v2533 = vrsqrt.pop %v2532
        %v2534 = vmul.f32 %v2526, %v2533
        %v2535 = vlaneseq
        %v2536 = vshrl.u32 %v2535, 7
        %v2537 = vsub.s32 0, %v2536
        %v2538 = vrot.slane %v2520, %v2537
        %v2539 = vmul.f32 %v2534, %v2538
        %v2540 = vlaneseq
        %v2541 = vshrl.u32 %v2540, 7
        %v2542 = vsub.s32 0, %v2541
        %v2543 = vrot.slane %v2521, %v2542
        %v2544 = vadd.f32 %v2539, %v2543
        %s2545 = scalar_lea.vmem %s5, 32
        %v2546 = vld [vmem:[%s2545] sm:$0xff]
        %v2547 = vld [vmem:[%s2545 + $0x8] sm:$0xff]
        %v2548 = vld [vmem:[%s2545 + $0x10] sm:$0xff]
        %v2549 = vld [vmem:[%s2545 + $0x18] sm:$0xff]
        %v2550 = vld [vmem:[%s1766 + $0x3] sm:$0x1]
        %v2551 = vlaneseq
        %v2552 = vshrl.u32 %v2551, 7
        %v2553 = vsub.s32 0, %v2552
        %v2554 = vrot.slane %v2550, %v2553
        %v2556 = vsel %vm504, %v2544, 0
        %2558 = vmatprep.subr.mxu0 0.0
        %2559 = vmatpush1.msra.mxu0 %v2546
        %2560 = vmatprep.subr.mxu0 0.0
        %2561 = vmatpush1.msra.mxu0 %v2547
        %2562 = vmatprep.subr.mxu0 0.0
        %2563 = vmatpush1.msra.mxu0 %v2548
        %2564 = vmatprep.subr.mxu0 0.0
        %2565 = vmatpush1.msra.mxu0 %v2549
        %2566 = vmatprep.subr.mxu0 0.0
        %2567 = vmatpush1.msra.mxu0 0.0
        %2568 = vmatprep.subr.mxu0 0.0
        %2569 = vmatpush1.msra.mxu0 0.0
        %2570 = vmatprep.subr.mxu0 0.0
        %2571 = vmatpush1.msra.mxu0 0.0
        %2572 = vmatprep.subr.mxu0 0.0
        %2573 = vmatpush1.msra.mxu0 0.0
        %2574 = vmatprep.subr.mxu0 0.0
        %2575 = vmatpush1.msra.mxu0 0.0
        %2576 = vmatprep.subr.mxu0 0.0
        %2577 = vmatpush1.msra.mxu0 0.0
        %2578 = vmatprep.subr.mxu0 0.0
        %2579 = vmatpush1.msra.mxu0 0.0
        %2580 = vmatprep.subr.mxu0 0.0
        %2581 = vmatpush1.msra.mxu0 0.0
        %2582 = vmatprep.subr.mxu0 0.0
        %2583 = vmatpush1.msra.mxu0 0.0
        %2584 = vmatprep.subr.mxu0 0.0
        %2585 = vmatpush1.msra.mxu0 0.0
        %2586 = vmatprep.subr.mxu0 0.0
        %2587 = vmatpush1.msra.mxu0 0.0
        %2588 = vmatprep.subr.mxu0 0.0
        %2589 = vmatpush1.msra.mxu0 0.0
        %2590 = vmatprep.subr.mxu0 0.0
        %2591 = vmatpush1.msra.mxu0 0.0
        %2592 = vmatprep.subr.mxu0 0.0
        %2593 = vmatpush1.msra.mxu0 0.0
        %2594 = vmatprep.subr.mxu0 0.0
        %2595 = vmatpush1.msra.mxu0 0.0
        %2596 = vmatprep.subr.mxu0 0.0
        %2597 = vmatpush1.msra.mxu0 0.0
        %2598 = vmatprep.subr.mxu0 0.0
        %2599 = vmatpush1.msra.mxu0 0.0
        %2600 = vmatprep.subr.mxu0 0.0
        %2601 = vmatpush1.msra.mxu0 0.0
        %2602 = vmatprep.subr.mxu0 0.0
        %2603 = vmatpush1.msra.mxu0 0.0
        %2604 = vmatprep.subr.mxu0 0.0
        %2605 = vmatpush1.msra.mxu0 0.0
        %2606 = vmatprep.subr.mxu0 0.0
        %2607 = vmatpush1.msra.mxu0 0.0
        %2608 = vmatprep.subr.mxu0 0.0
        %2609 = vmatpush1.msra.mxu0 0.0
        %2610 = vmatprep.subr.mxu0 0.0
        %2611 = vmatpush1.msra.mxu0 0.0
        %2612 = vmatprep.subr.mxu0 0.0
        %2613 = vmatpush1.msra.mxu0 0.0
        %2614 = vmatprep.subr.mxu0 0.0
        %2615 = vmatpush1.msra.mxu0 0.0
        %2616 = vmatprep.subr.mxu0 0.0
        %2617 = vmatpush1.msra.mxu0 0.0
        %2618 = vmatprep.subr.mxu0 0.0
        %2619 = vmatpush1.msra.mxu0 0.0
        %2620 = vmatprep.subr.mxu0 0.0
        %2621 = vmatpush1.msra.mxu0 0.0
        %2622 = vmatprep.mubr.f32.mxu0 0.0
        %2623 = vmatmul.mubr.f32.gmra.mrb[0].mxu0 %v2556
        %v2624 = vpop.f32.mrb[0].mxu0
        %v2625 = vadd.f32 %v2554, %v2624
        %v2626 = vpop.f32.mrb[0].mxu0
        %2627 = vdwg.mxu0
        %s2628 = scalar_lea.vmem %s6, 4
        %v2629 = vld [vmem:[%s2628] sm:$0x7]
        %s2630 = scalar_lea.vmem %s11, 2
        %v2631 = vld [vmem:[%s2630] sm:$0x1]
        %v2632 = vlaneseq
        %v2633 = vshrl.u32 %v2632, 7
        %v2634 = vsub.s32 0, %v2633
        %v2635 = vrot.slane %v2631, %v2634
        %v2637 = vsel %vm591, %v2629, 0
        %2639 = vmatprep.subr.mxu0 0.0
        %2640 = vmatpush1.msra.mxu0 %v2637
        %2641 = vmatprep.subr.mxu0 0.0
        %2642 = vmatpush1.msra.mxu0 0.0
        %2643 = vmatprep.subr.mxu0 0.0
        %2644 = vmatpush1.msra.mxu0 0.0
        %2645 = vmatprep.subr.mxu0 0.0
        %2646 = vmatpush1.msra.mxu0 0.0
        %2647 = vmatprep.subr.mxu0 0.0
        %2648 = vmatpush1.msra.mxu0 0.0
        %2649 = vmatprep.subr.mxu0 0.0
        %2650 = vmatpush1.msra.mxu0 0.0
        %2651 = vmatprep.subr.mxu0 0.0
        %2652 = vmatpush1.msra.mxu0 0.0
        %2653 = vmatprep.subr.mxu0 0.0
        %2654 = vmatpush1.msra.mxu0 0.0
        %2655 = vmatprep.subr.mxu0 0.0
        %2656 = vmatpush1.msra.mxu0 0.0
        %2657 = vmatprep.subr.mxu0 0.0
        %2658 = vmatpush1.msra.mxu0 0.0
        %2659 = vmatprep.subr.mxu0 0.0
        %2660 = vmatpush1.msra.mxu0 0.0
        %2661 = vmatprep.subr.mxu0 0.0
        %2662 = vmatpush1.msra.mxu0 0.0
        %2663 = vmatprep.subr.mxu0 0.0
        %2664 = vmatpush1.msra.mxu0 0.0
        %2665 = vmatprep.subr.mxu0 0.0
        %2666 = vmatpush1.msra.mxu0 0.0
        %2667 = vmatprep.subr.mxu0 0.0
        %2668 = vmatpush1.msra.mxu0 0.0
        %2669 = vmatprep.subr.mxu0 0.0
        %2670 = vmatpush1.msra.mxu0 0.0
        %2671 = vmatprep.subr.mxu0 0.0
        %2672 = vmatpush1.msra.mxu0 0.0
        %2673 = vmatprep.subr.mxu0 0.0
        %2674 = vmatpush1.msra.mxu0 0.0
        %2675 = vmatprep.subr.mxu0 0.0
        %2676 = vmatpush1.msra.mxu0 0.0
        %2677 = vmatprep.subr.mxu0 0.0
        %2678 = vmatpush1.msra.mxu0 0.0
        %2679 = vmatprep.subr.mxu0 0.0
        %2680 = vmatpush1.msra.mxu0 0.0
        %2681 = vmatprep.subr.mxu0 0.0
        %2682 = vmatpush1.msra.mxu0 0.0
        %2683 = vmatprep.subr.mxu0 0.0
        %2684 = vmatpush1.msra.mxu0 0.0
        %2685 = vmatprep.subr.mxu0 0.0
        %2686 = vmatpush1.msra.mxu0 0.0
        %2687 = vmatprep.subr.mxu0 0.0
        %2688 = vmatpush1.msra.mxu0 0.0
        %2689 = vmatprep.subr.mxu0 0.0
        %2690 = vmatpush1.msra.mxu0 0.0
        %2691 = vmatprep.subr.mxu0 0.0
        %2692 = vmatpush1.msra.mxu0 0.0
        %2693 = vmatprep.subr.mxu0 0.0
        %2694 = vmatpush1.msra.mxu0 0.0
        %2695 = vmatprep.subr.mxu0 0.0
        %2696 = vmatpush1.msra.mxu0 0.0
        %2697 = vmatprep.subr.mxu0 0.0
        %2698 = vmatpush1.msra.mxu0 0.0
        %2699 = vmatprep.subr.mxu0 0.0
        %2700 = vmatpush1.msra.mxu0 0.0
        %2701 = vmatprep.subr.mxu0 0.0
        %2702 = vmatpush1.msra.mxu0 0.0
        %2703 = vmatprep.mubr.f32.mxu0 0.0
        %2704 = vmatmul.mubr.f32.gmra.mrb[0].mxu0 %v586
        %v2705 = vpop.f32.mrb[0].mxu0
        %v2706 = vadd.f32 %v2635, %v2705
        %v2707 = vpop.f32.mrb[0].mxu0
        %2708 = vmatprep.mubr.f32.mxu0 0.0
        %2709 = vmatmul.mubr.f32.gmra.mrb[0].mxu0 %v589
        %v2710 = vpop.f32.mrb[0].mxu0
        %v2711 = vadd.f32 %v2635, %v2710
        %v2712 = vpop.f32.mrb[0].mxu0
        %2713 = vdwg.mxu0
        %s2714 = scalar_lea.vmem %s7, 32
        %v2715 = vld [vmem:[%s2714] sm:$0xff]
        %v2716 = vld [vmem:[%s2714 + $0x8] sm:$0xff]
        %v2717 = vld [vmem:[%s2714 + $0x10] sm:$0xff]
        %v2718 = vld [vmem:[%s2714 + $0x18] sm:$0xff]
        %v2719 = vld [vmem:[%s1766 + $0x4] sm:$0x1]
        %v2721 = vsel %vm675, %v2625, 0
        %v2724 = vsel %vm675, %v2706, 0
        %v2727 = vsel %vm675, %v2711, 0
        %2729 = vmatprep.subr.mxu0 0.0
        %2730 = vmatpush1.xpose.msra.mxu0 %v2724
        %2731 = vmatprep.subr.mxu0 0.0
        %2732 = vmatpush1.xpose.msra.mxu0 %v2727
        %2733 = vmatprep.subr.mxu0 0.0
        %2734 = vmatpush1.xpose.msra.mxu0 0.0
        %2735 = vmatprep.subr.mxu0 0.0
        %2736 = vmatpush1.xpose.msra.mxu0 0.0
        %2737 = vmatprep.subr.mxu0 0.0
        %2738 = vmatpush1.xpose.msra.mxu0 0.0
        %2739 = vmatprep.subr.mxu0 0.0
        %2740 = vmatpush1.xpose.msra.mxu0 0.0
        %2741 = vmatprep.subr.mxu0 0.0
        %2742 = vmatpush1.xpose.msra.mxu0 0.0
        %2743 = vmatprep.subr.mxu0 0.0
        %2744 = vmatpush1.xpose.msra.mxu0 0.0
        %2745 = vmatprep.subr.mxu0 0.0
        %2746 = vmatpush1.xpose.msra.mxu0 0.0
        %2747 = vmatprep.subr.mxu0 0.0
        %2748 = vmatpush1.xpose.msra.mxu0 0.0
        %2749 = vmatprep.subr.mxu0 0.0
        %2750 = vmatpush1.xpose.msra.mxu0 0.0
        %2751 = vmatprep.subr.mxu0 0.0
        %2752 = vmatpush1.xpose.msra.mxu0 0.0
        %2753 = vmatprep.subr.mxu0 0.0
        %2754 = vmatpush1.xpose.msra.mxu0 0.0
        %2755 = vmatprep.subr.mxu0 0.0
        %2756 = vmatpush1.xpose.msra.mxu0 0.0
        %2757 = vmatprep.subr.mxu0 0.0
        %2758 = vmatpush1.xpose.msra.mxu0 0.0
        %2759 = vmatprep.subr.mxu0 0.0
        %2760 = vmatpush1.xpose.msra.mxu0 0.0
        %2761 = vmatprep.subr.mxu0 0.0
        %2762 = vmatpush1.xpose.msra.mxu0 0.0
        %2763 = vmatprep.subr.mxu0 0.0
        %2764 = vmatpush1.xpose.msra.mxu0 0.0
        %2765 = vmatprep.subr.mxu0 0.0
        %2766 = vmatpush1.xpose.msra.mxu0 0.0
        %2767 = vmatprep.subr.mxu0 0.0
        %2768 = vmatpush1.xpose.msra.mxu0 0.0
        %2769 = vmatprep.subr.mxu0 0.0
        %2770 = vmatpush1.xpose.msra.mxu0 0.0
        %2771 = vmatprep.subr.mxu0 0.0
        %2772 = vmatpush1.xpose.msra.mxu0 0.0
        %2773 = vmatprep.subr.mxu0 0.0
        %2774 = vmatpush1.xpose.msra.mxu0 0.0
        %2775 = vmatprep.subr.mxu0 0.0
        %2776 = vmatpush1.xpose.msra.mxu0 0.0
        %2777 = vmatprep.subr.mxu0 0.0
        %2778 = vmatpush1.xpose.msra.mxu0 0.0
        %2779 = vmatprep.subr.mxu0 0.0
        %2780 = vmatpush1.xpose.msra.mxu0 0.0
        %2781 = vmatprep.subr.mxu0 0.0
        %2782 = vmatpush1.xpose.msra.mxu0 0.0
        %2783 = vmatprep.subr.mxu0 0.0
        %2784 = vmatpush1.xpose.msra.mxu0 0.0
        %2785 = vmatprep.subr.mxu0 0.0
        %2786 = vmatpush1.xpose.msra.mxu0 0.0
        %2787 = vmatprep.subr.mxu0 0.0
        %2788 = vmatpush1.xpose.msra.mxu0 0.0
        %2789 = vmatprep.subr.mxu0 0.0
        %2790 = vmatpush1.xpose.msra.mxu0 0.0
        %2791 = vmatprep.subr.mxu0 0.0
        %2792 = vmatpush1.xpose.msra.mxu0 0.0
        %2793 = vmatprep.mubr.f32.mxu0 0.0
        %2794 = vmatmul.mubr.f32.gmra.mrb[0].mxu0 %v2721
        %v2795 = vpop.f32.mrb[0].mxu0
        %v2796 = vadd.f32 0.0, %v2795
        %v2797 = vpop.f32.mrb[0].mxu0
        %2798 = vdwg.mxu0
        %v2799 = vsel %vm755, %v2796, -inf
        %2800 = vmax.xlane.f32.xlu0 %v2799
        %v2801 = vpop.xlane.xlu0 %2800
        %v2802 = vsub.f32 %v2796, %v2801
        %v2803 = vmul.f32 %v2802, 1.442695
        %v2804 = vpow.pop %v2803
        %v2805 = vsel %vm755, %v2804, 0.0
        %2806 = vadd.xlane.f32.xlu0 %v2805
        %v2807 = vpop.xlane.xlu0 %2806
        %v2808 = vrcp.pop %v2807
        %v2809 = vmul.f32 %v2804, %v2808
        %2810 = vrot.lane.b32.xlu0 %v2706, 96
        %v2811 = vpop.permute.xlu0 %2810
        %2812 = vrot.lane.b32.xlu0 %v2711, 96
        %v2813 = vpop.permute.xlu0 %2812
        %v2817 = vsel %vm755, %v2809, 0
        %2819 = vmatprep.subr.mxu0 0.0
        %2820 = vmatpush1.msra.mxu0 %v2811
        %2821 = vmatprep.subr.mxu0 0.0
        %2822 = vmatpush1.msra.mxu0 %v2813
        %2823 = vmatprep.subr.mxu0 0.0
        %2824 = vmatpush1.msra.mxu0 0.0
        %2825 = vmatprep.subr.mxu0 0.0
        %2826 = vmatpush1.msra.mxu0 0.0
        %2827 = vmatprep.subr.mxu0 0.0
        %2828 = vmatpush1.msra.mxu0 0.0
        %2829 = vmatprep.subr.mxu0 0.0
        %2830 = vmatpush1.msra.mxu0 0.0
        %2831 = vmatprep.subr.mxu0 0.0
        %2832 = vmatpush1.msra.mxu0 0.0
        %2833 = vmatprep.subr.mxu0 0.0
        %2834 = vmatpush1.msra.mxu0 0.0
        %2835 = vmatprep.subr.mxu0 0.0
        %2836 = vmatpush1.msra.mxu0 0.0
        %2837 = vmatprep.subr.mxu0 0.0
        %2838 = vmatpush1.msra.mxu0 0.0
        %2839 = vmatprep.subr.mxu0 0.0
        %2840 = vmatpush1.msra.mxu0 0.0
        %2841 = vmatprep.subr.mxu0 0.0
        %2842 = vmatpush1.msra.mxu0 0.0
        %2843 = vmatprep.subr.mxu0 0.0
        %2844 = vmatpush1.msra.mxu0 0.0
        %2845 = vmatprep.subr.mxu0 0.0
        %2846 = vmatpush1.msra.mxu0 0.0
        %2847 = vmatprep.subr.mxu0 0.0
        %2848 = vmatpush1.msra.mxu0 0.0
        %2849 = vmatprep.subr.mxu0 0.0
        %2850 = vmatpush1.msra.mxu0 0.0
        %2851 = vmatprep.subr.mxu0 0.0
        %2852 = vmatpush1.msra.mxu0 0.0
        %2853 = vmatprep.subr.mxu0 0.0
        %2854 = vmatpush1.msra.mxu0 0.0
        %2855 = vmatprep.subr.mxu0 0.0
        %2856 = vmatpush1.msra.mxu0 0.0
        %2857 = vmatprep.subr.mxu0 0.0
        %2858 = vmatpush1.msra.mxu0 0.0
        %2859 = vmatprep.subr.mxu0 0.0
        %2860 = vmatpush1.msra.mxu0 0.0
        %2861 = vmatprep.subr.mxu0 0.0
        %2862 = vmatpush1.msra.mxu0 0.0
        %2863 = vmatprep.subr.mxu0 0.0
        %2864 = vmatpush1.msra.mxu0 0.0
        %2865 = vmatprep.subr.mxu0 0.0
        %2866 = vmatpush1.msra.mxu0 0.0
        %2867 = vmatprep.subr.mxu0 0.0
        %2868 = vmatpush1.msra.mxu0 0.0
        %2869 = vmatprep.subr.mxu0 0.0
        %2870 = vmatpush1.msra.mxu0 0.0
        %2871 = vmatprep.subr.mxu0 0.0
        %2872 = vmatpush1.msra.mxu0 0.0
        %2873 = vmatprep.subr.mxu0 0.0
        %2874 = vmatpush1.msra.mxu0 0.0
        %2875 = vmatprep.subr.mxu0 0.0
        %2876 = vmatpush1.msra.mxu0 0.0
        %2877 = vmatprep.subr.mxu0 0.0
        %2878 = vmatpush1.msra.mxu0 0.0
        %2879 = vmatprep.subr.mxu0 0.0
        %2880 = vmatpush1.msra.mxu0 0.0
        %2881 = vmatprep.subr.mxu0 0.0
        %2882 = vmatpush1.msra.mxu0 0.0
        %2883 = vmatprep.mubr.f32.mxu0 0.0
        %2884 = vmatmul.mubr.f32.gmra.mrb[0].mxu0 %v2817
        %v2885 = vpop.f32.mrb[0].mxu0
        %v2886 = vadd.f32 0.0, %v2885
        %v2887 = vpop.f32.mrb[0].mxu0
        %2888 = vdwg.mxu0
        %2889 = vrot.lane.b32.xlu0 %v2625, 120
        %v2890 = vpop.permute.xlu0 %2889
        %2891 = vrot.lane.b32.xlu0 %v2706, 120
        %v2892 = vpop.permute.xlu0 %2891
        %2893 = vrot.lane.b32.xlu0 %v2711, 120
        %v2894 = vpop.permute.xlu0 %2893
        %v2895 = vsel %vm675, %v2890, 0
        %v2897 = vsel %vm675, %v2892, 0
        %v2899 = vsel %vm675, %v2894, 0
        %2901 = vmatprep.subr.mxu0 0.0
        %2902 = vmatpush1.xpose.msra.mxu0 %v2897
        %2903 = vmatprep.subr.mxu0 0.0
        %2904 = vmatpush1.xpose.msra.mxu0 %v2899
        %2905 = vmatprep.subr.mxu0 0.0
        %2906 = vmatpush1.xpose.msra.mxu0 0.0
        %2907 = vmatprep.subr.mxu0 0.0
        %2908 = vmatpush1.xpose.msra.mxu0 0.0
        %2909 = vmatprep.subr.mxu0 0.0
        %2910 = vmatpush1.xpose.msra.mxu0 0.0
        %2911 = vmatprep.subr.mxu0 0.0
        %2912 = vmatpush1.xpose.msra.mxu0 0.0
        %2913 = vmatprep.subr.mxu0 0.0
        %2914 = vmatpush1.xpose.msra.mxu0 0.0
        %2915 = vmatprep.subr.mxu0 0.0
        %2916 = vmatpush1.xpose.msra.mxu0 0.0
        %2917 = vmatprep.subr.mxu0 0.0
        %2918 = vmatpush1.xpose.msra.mxu0 0.0
        %2919 = vmatprep.subr.mxu0 0.0
        %2920 = vmatpush1.xpose.msra.mxu0 0.0
        %2921 = vmatprep.subr.mxu0 0.0
        %2922 = vmatpush1.xpose.msra.mxu0 0.0
        %2923 = vmatprep.subr.mxu0 0.0
        %2924 = vmatpush1.xpose.msra.mxu0 0.0
        %2925 = vmatprep.subr.mxu0 0.0
        %2926 = vmatpush1.xpose.msra.mxu0 0.0
        %2927 = vmatprep.subr.mxu0 0.0
        %2928 = vmatpush1.xpose.msra.mxu0 0.0
        %2929 = vmatprep.subr.mxu0 0.0
        %2930 = vmatpush1.xpose.msra.mxu0 0.0
        %2931 = vmatprep.subr.mxu0 0.0
        %2932 = vmatpush1.xpose.msra.mxu0 0.0
        %2933 = vmatprep.subr.mxu0 0.0
        %2934 = vmatpush1.xpose.msra.mxu0 0.0
        %2935 = vmatprep.subr.mxu0 0.0
        %2936 = vmatpush1.xpose.msra.mxu0 0.0
        %2937 = vmatprep.subr.mxu0 0.0
        %2938 = vmatpush1.xpose.msra.mxu0 0.0
        %2939 = vmatprep.subr.mxu0 0.0
        %2940 = vmatpush1.xpose.msra.mxu0 0.0
        %2941 = vmatprep.subr.mxu0 0.0
        %2942 = vmatpush1.xpose.msra.mxu0 0.0
        %2943 = vmatprep.subr.mxu0 0.0
        %2944 = vmatpush1.xpose.msra.mxu0 0.0
        %2945 = vmatprep.subr.mxu0 0.0
        %2946 = vmatpush1.xpose.msra.mxu0 0.0
        %2947 = vmatprep.subr.mxu0 0.0
        %2948 = vmatpush1.xpose.msra.mxu0 0.0
        %2949 = vmatprep.subr.mxu0 0.0
        %2950 = vmatpush1.xpose.msra.mxu0 0.0
        %2951 = vmatprep.subr.mxu0 0.0
        %2952 = vmatpush1.xpose.msra.mxu0 0.0
        %2953 = vmatprep.subr.mxu0 0.0
        %2954 = vmatpush1.xpose.msra.mxu0 0.0
        %2955 = vmatprep.subr.mxu0 0.0
        %2956 = vmatpush1.xpose.msra.mxu0 0.0
        %2957 = vmatprep.subr.mxu0 0.0
        %2958 = vmatpush1.xpose.msra.mxu0 0.0
        %2959 = vmatprep.subr.mxu0 0.0
        %2960 = vmatpush1.xpose.msra.mxu0 0.0
        %2961 = vmatprep.subr.mxu0 0.0
        %2962 = vmatpush1.xpose.msra.mxu0 0.0
        %2963 = vmatprep.subr.mxu0 0.0
        %2964 = vmatpush1.xpose.msra.mxu0 0.0
        %2965 = vmatprep.mubr.f32.mxu0 0.0
        %2966 = vmatmul.mubr.f32.gmra.mrb[0].mxu0 %v2895
        %v2967 = vpop.f32.mrb[0].mxu0
        %v2968 = vadd.f32 0.0, %v2967
        %v2969 = vpop.f32.mrb[0].mxu0
        %2970 = vdwg.mxu0
        %v2971 = vsel %vm755, %v2968, -inf
        %2972 = vmax.xlane.f32.xlu0 %v2971
        %v2973 = vpop.xlane.xlu0 %2972
        %v2974 = vsub.f32 %v2968, %v2973
        %v2975 = vmul.f32 %v2974, 1.442695
        %v2976 = vpow.pop %v2975
        %v2977 = vsel %vm755, %v2976, 0.0
        %2978 = vadd.xlane.f32.xlu0 %v2977
        %v2979 = vpop.xlane.xlu0 %2978
        %v2980 = vrcp.pop %v2979
        %v2981 = vmul.f32 %v2976, %v2980
        %2982 = vrot.lane.b32.xlu0 %v2706, 88
        %v2983 = vpop.permute.xlu0 %2982
        %2984 = vrot.lane.b32.xlu0 %v2711, 88
        %v2985 = vpop.permute.xlu0 %2984
        %v2989 = vsel %vm755, %v2981, 0
        %2991 = vmatprep.subr.mxu0 0.0
        %2992 = vmatpush1.msra.mxu0 %v2983
        %2993 = vmatprep.subr.mxu0 0.0
        %2994 = vmatpush1.msra.mxu0 %v2985
        %2995 = vmatprep.subr.mxu0 0.0
        %2996 = vmatpush1.msra.mxu0 0.0
        %2997 = vmatprep.subr.mxu0 0.0
        %2998 = vmatpush1.msra.mxu0 0.0
        %2999 = vmatprep.subr.mxu0 0.0
        %3000 = vmatpush1.msra.mxu0 0.0
        %3001 = vmatprep.subr.mxu0 0.0
        %3002 = vmatpush1.msra.mxu0 0.0
        %3003 = vmatprep.subr.mxu0 0.0
        %3004 = vmatpush1.msra.mxu0 0.0
        %3005 = vmatprep.subr.mxu0 0.0
        %3006 = vmatpush1.msra.mxu0 0.0
        %3007 = vmatprep.subr.mxu0 0.0
        %3008 = vmatpush1.msra.mxu0 0.0
        %3009 = vmatprep.subr.mxu0 0.0
        %3010 = vmatpush1.msra.mxu0 0.0
        %3011 = vmatprep.subr.mxu0 0.0
        %3012 = vmatpush1.msra.mxu0 0.0
        %3013 = vmatprep.subr.mxu0 0.0
        %3014 = vmatpush1.msra.mxu0 0.0
        %3015 = vmatprep.subr.mxu0 0.0
        %3016 = vmatpush1.msra.mxu0 0.0
        %3017 = vmatprep.subr.mxu0 0.0
        %3018 = vmatpush1.msra.mxu0 0.0
        %3019 = vmatprep.subr.mxu0 0.0
        %3020 = vmatpush1.msra.mxu0 0.0
        %3021 = vmatprep.subr.mxu0 0.0
        %3022 = vmatpush1.msra.mxu0 0.0
        %3023 = vmatprep.subr.mxu0 0.0
        %3024 = vmatpush1.msra.mxu0 0.0
        %3025 = vmatprep.subr.mxu0 0.0
        %3026 = vmatpush1.msra.mxu0 0.0
        %3027 = vmatprep.subr.mxu0 0.0
        %3028 = vmatpush1.msra.mxu0 0.0
        %3029 = vmatprep.subr.mxu0 0.0
        %3030 = vmatpush1.msra.mxu0 0.0
        %3031 = vmatprep.subr.mxu0 0.0
        %3032 = vmatpush1.msra.mxu0 0.0
        %3033 = vmatprep.subr.mxu0 0.0
        %3034 = vmatpush1.msra.mxu0 0.0
        %3035 = vmatprep.subr.mxu0 0.0
        %3036 = vmatpush1.msra.mxu0 0.0
        %3037 = vmatprep.subr.mxu0 0.0
        %3038 = vmatpush1.msra.mxu0 0.0
        %3039 = vmatprep.subr.mxu0 0.0
        %3040 = vmatpush1.msra.mxu0 0.0
        %3041 = vmatprep.subr.mxu0 0.0
        %3042 = vmatpush1.msra.mxu0 0.0
        %3043 = vmatprep.subr.mxu0 0.0
        %3044 = vmatpush1.msra.mxu0 0.0
        %3045 = vmatprep.subr.mxu0 0.0
        %3046 = vmatpush1.msra.mxu0 0.0
        %3047 = vmatprep.subr.mxu0 0.0
        %3048 = vmatpush1.msra.mxu0 0.0
        %3049 = vmatprep.subr.mxu0 0.0
        %3050 = vmatpush1.msra.mxu0 0.0
        %3051 = vmatprep.subr.mxu0 0.0
        %3052 = vmatpush1.msra.mxu0 0.0
        %3053 = vmatprep.subr.mxu0 0.0
        %3054 = vmatpush1.msra.mxu0 0.0
        %3055 = vmatprep.mubr.f32.mxu0 0.0
        %3056 = vmatmul.mubr.f32.gmra.mrb[0].mxu0 %v2989
        %v3057 = vpop.f32.mrb[0].mxu0
        %v3058 = vadd.f32 0.0, %v3057
        %v3059 = vpop.f32.mrb[0].mxu0
        %3060 = vdwg.mxu0
        %3061 = vrot.lane.b32.xlu0 %v2625, 112
        %v3062 = vpop.permute.xlu0 %3061
        %3063 = vrot.lane.b32.xlu0 %v2706, 112
        %v3064 = vpop.permute.xlu0 %3063
        %3065 = vrot.lane.b32.xlu0 %v2711, 112
        %v3066 = vpop.permute.xlu0 %3065
        %v3067 = vsel %vm675, %v3062, 0
        %v3069 = vsel %vm675, %v3064, 0
        %v3071 = vsel %vm675, %v3066, 0
        %3073 = vmatprep.subr.mxu0 0.0
        %3074 = vmatpush1.xpose.msra.mxu0 %v3069
        %3075 = vmatprep.subr.mxu0 0.0
        %3076 = vmatpush1.xpose.msra.mxu0 %v3071
        %3077 = vmatprep.subr.mxu0 0.0
        %3078 = vmatpush1.xpose.msra.mxu0 0.0
        %3079 = vmatprep.subr.mxu0 0.0
        %3080 = vmatpush1.xpose.msra.mxu0 0.0
        %3081 = vmatprep.subr.mxu0 0.0
        %3082 = vmatpush1.xpose.msra.mxu0 0.0
        %3083 = vmatprep.subr.mxu0 0.0
        %3084 = vmatpush1.xpose.msra.mxu0 0.0
        %3085 = vmatprep.subr.mxu0 0.0
        %3086 = vmatpush1.xpose.msra.mxu0 0.0
        %3087 = vmatprep.subr.mxu0 0.0
        %3088 = vmatpush1.xpose.msra.mxu0 0.0
        %3089 = vmatprep.subr.mxu0 0.0
        %3090 = vmatpush1.xpose.msra.mxu0 0.0
        %3091 = vmatprep.subr.mxu0 0.0
        %3092 = vmatpush1.xpose.msra.mxu0 0.0
        %3093 = vmatprep.subr.mxu0 0.0
        %3094 = vmatpush1.xpose.msra.mxu0 0.0
        %3095 = vmatprep.subr.mxu0 0.0
        %3096 = vmatpush1.xpose.msra.mxu0 0.0
        %3097 = vmatprep.subr.mxu0 0.0
        %3098 = vmatpush1.xpose.msra.mxu0 0.0
        %3099 = vmatprep.subr.mxu0 0.0
        %3100 = vmatpush1.xpose.msra.mxu0 0.0
        %3101 = vmatprep.subr.mxu0 0.0
        %3102 = vmatpush1.xpose.msra.mxu0 0.0
        %3103 = vmatprep.subr.mxu0 0.0
        %3104 = vmatpush1.xpose.msra.mxu0 0.0
        %3105 = vmatprep.subr.mxu0 0.0
        %3106 = vmatpush1.xpose.msra.mxu0 0.0
        %3107 = vmatprep.subr.mxu0 0.0
        %3108 = vmatpush1.xpose.msra.mxu0 0.0
        %3109 = vmatprep.subr.mxu0 0.0
        %3110 = vmatpush1.xpose.msra.mxu0 0.0
        %3111 = vmatprep.subr.mxu0 0.0
        %3112 = vmatpush1.xpose.msra.mxu0 0.0
        %3113 = vmatprep.subr.mxu0 0.0
        %3114 = vmatpush1.xpose.msra.mxu0 0.0
        %3115 = vmatprep.subr.mxu0 0.0
        %3116 = vmatpush1.xpose.msra.mxu0 0.0
        %3117 = vmatprep.subr.mxu0 0.0
        %3118 = vmatpush1.xpose.msra.mxu0 0.0
        %3119 = vmatprep.subr.mxu0 0.0
        %3120 = vmatpush1.xpose.msra.mxu0 0.0
        %3121 = vmatprep.subr.mxu0 0.0
        %3122 = vmatpush1.xpose.msra.mxu0 0.0
        %3123 = vmatprep.subr.mxu0 0.0
        %3124 = vmatpush1.xpose.msra.mxu0 0.0
        %3125 = vmatprep.subr.mxu0 0.0
        %3126 = vmatpush1.xpose.msra.mxu0 0.0
        %3127 = vmatprep.subr.mxu0 0.0
        %3128 = vmatpush1.xpose.msra.mxu0 0.0
        %3129 = vmatprep.subr.mxu0 0.0
        %3130 = vmatpush1.xpose.msra.mxu0 0.0
        %3131 = vmatprep.subr.mxu0 0.0
        %3132 = vmatpush1.xpose.msra.mxu0 0.0
        %3133 = vmatprep.subr.mxu0 0.0
        %3134 = vmatpush1.xpose.msra.mxu0 0.0
        %3135 = vmatprep.subr.mxu0 0.0
        %3136 = vmatpush1.xpose.msra.mxu0 0.0
        %3137 = vmatprep.mubr.f32.mxu0 0.0
        %3138 = vmatmul.mubr.f32.gmra.mrb[0].mxu0 %v3067
        %v3139 = vpop.f32.mrb[0].mxu0
        %v3140 = vadd.f32 0.0, %v3139
        %v3141 = vpop.f32.mrb[0].mxu0
        %3142 = vdwg.mxu0
        %v3143 = vsel %vm755, %v3140, -inf
        %3144 = vmax.xlane.f32.xlu0 %v3143
        %v3145 = vpop.xlane.xlu0 %3144
        %v3146 = vsub.f32 %v3140, %v3145
        %v3147 = vmul.f32 %v3146, 1.442695
        %v3148 = vpow.pop %v3147
        %v3149 = vsel %vm755, %v3148, 0.0
        %3150 = vadd.xlane.f32.xlu0 %v3149
        %v3151 = vpop.xlane.xlu0 %3150
        %v3152 = vrcp.pop %v3151
        %v3153 = vmul.f32 %v3148, %v3152
        %3154 = vrot.lane.b32.xlu0 %v2706, 80
        %v3155 = vpop.permute.xlu0 %3154
        %3156 = vrot.lane.b32.xlu0 %v2711, 80
        %v3157 = vpop.permute.xlu0 %3156
        %v3161 = vsel %vm755, %v3153, 0
        %3163 = vmatprep.subr.mxu0 0.0
        %3164 = vmatpush1.msra.mxu0 %v3155
        %3165 = vmatprep.subr.mxu0 0.0
        %3166 = vmatpush1.msra.mxu0 %v3157
        %3167 = vmatprep.subr.mxu0 0.0
        %3168 = vmatpush1.msra.mxu0 0.0
        %3169 = vmatprep.subr.mxu0 0.0
        %3170 = vmatpush1.msra.mxu0 0.0
        %3171 = vmatprep.subr.mxu0 0.0
        %3172 = vmatpush1.msra.mxu0 0.0
        %3173 = vmatprep.subr.mxu0 0.0
        %3174 = vmatpush1.msra.mxu0 0.0
        %3175 = vmatprep.subr.mxu0 0.0
        %3176 = vmatpush1.msra.mxu0 0.0
        %3177 = vmatprep.subr.mxu0 0.0
        %3178 = vmatpush1.msra.mxu0 0.0
        %3179 = vmatprep.subr.mxu0 0.0
        %3180 = vmatpush1.msra.mxu0 0.0
        %3181 = vmatprep.subr.mxu0 0.0
        %3182 = vmatpush1.msra.mxu0 0.0
        %3183 = vmatprep.subr.mxu0 0.0
        %3184 = vmatpush1.msra.mxu0 0.0
        %3185 = vmatprep.subr.mxu0 0.0
        %3186 = vmatpush1.msra.mxu0 0.0
        %3187 = vmatprep.subr.mxu0 0.0
        %3188 = vmatpush1.msra.mxu0 0.0
        %3189 = vmatprep.subr.mxu0 0.0
        %3190 = vmatpush1.msra.mxu0 0.0
        %3191 = vmatprep.subr.mxu0 0.0
        %3192 = vmatpush1.msra.mxu0 0.0
        %3193 = vmatprep.subr.mxu0 0.0
        %3194 = vmatpush1.msra.mxu0 0.0
        %3195 = vmatprep.subr.mxu0 0.0
        %3196 = vmatpush1.msra.mxu0 0.0
        %3197 = vmatprep.subr.mxu0 0.0
        %3198 = vmatpush1.msra.mxu0 0.0
        %3199 = vmatprep.subr.mxu0 0.0
        %3200 = vmatpush1.msra.mxu0 0.0
        %3201 = vmatprep.subr.mxu0 0.0
        %3202 = vmatpush1.msra.mxu0 0.0
        %3203 = vmatprep.subr.mxu0 0.0
        %3204 = vmatpush1.msra.mxu0 0.0
        %3205 = vmatprep.subr.mxu0 0.0
        %3206 = vmatpush1.msra.mxu0 0.0
        %3207 = vmatprep.subr.mxu0 0.0
        %3208 = vmatpush1.msra.mxu0 0.0
        %3209 = vmatprep.subr.mxu0 0.0
        %3210 = vmatpush1.msra.mxu0 0.0
        %3211 = vmatprep.subr.mxu0 0.0
        %3212 = vmatpush1.msra.mxu0 0.0
        %3213 = vmatprep.subr.mxu0 0.0
        %3214 = vmatpush1.msra.mxu0 0.0
        %3215 = vmatprep.subr.mxu0 0.0
        %3216 = vmatpush1.msra.mxu0 0.0
        %3217 = vmatprep.subr.mxu0 0.0
        %3218 = vmatpush1.msra.mxu0 0.0
        %3219 = vmatprep.subr.mxu0 0.0
        %3220 = vmatpush1.msra.mxu0 0.0
        %3221 = vmatprep.subr.mxu0 0.0
        %3222 = vmatpush1.msra.mxu0 0.0
        %3223 = vmatprep.subr.mxu0 0.0
        %3224 = vmatpush1.msra.mxu0 0.0
        %3225 = vmatprep.subr.mxu0 0.0
        %3226 = vmatpush1.msra.mxu0 0.0
        %3227 = vmatprep.mubr.f32.mxu0 0.0
        %3228 = vmatmul.mubr.f32.gmra.mrb[0].mxu0 %v3161
        %v3229 = vpop.f32.mrb[0].mxu0
        %v3230 = vadd.f32 0.0, %v3229
        %v3231 = vpop.f32.mrb[0].mxu0
        %3232 = vdwg.mxu0
        %3233 = vrot.lane.b32.xlu0 %v2625, 104
        %v3234 = vpop.permute.xlu0 %3233
        %3235 = vrot.lane.b32.xlu0 %v2706, 104
        %v3236 = vpop.permute.xlu0 %3235
        %3237 = vrot.lane.b32.xlu0 %v2711, 104
        %v3238 = vpop.permute.xlu0 %3237
        %v3239 = vsel %vm675, %v3234, 0
        %v3241 = vsel %vm675, %v3236, 0
        %v3243 = vsel %vm675, %v3238, 0
        %3245 = vmatprep.subr.mxu0 0.0
        %3246 = vmatpush1.xpose.msra.mxu0 %v3241
        %3247 = vmatprep.subr.mxu0 0.0
        %3248 = vmatpush1.xpose.msra.mxu0 %v3243
        %3249 = vmatprep.subr.mxu0 0.0
        %3250 = vmatpush1.xpose.msra.mxu0 0.0
        %3251 = vmatprep.subr.mxu0 0.0
        %3252 = vmatpush1.xpose.msra.mxu0 0.0
        %3253 = vmatprep.subr.mxu0 0.0
        %3254 = vmatpush1.xpose.msra.mxu0 0.0
        %3255 = vmatprep.subr.mxu0 0.0
        %3256 = vmatpush1.xpose.msra.mxu0 0.0
        %3257 = vmatprep.subr.mxu0 0.0
        %3258 = vmatpush1.xpose.msra.mxu0 0.0
        %3259 = vmatprep.subr.mxu0 0.0
        %3260 = vmatpush1.xpose.msra.mxu0 0.0
        %3261 = vmatprep.subr.mxu0 0.0
        %3262 = vmatpush1.xpose.msra.mxu0 0.0
        %3263 = vmatprep.subr.mxu0 0.0
        %3264 = vmatpush1.xpose.msra.mxu0 0.0
        %3265 = vmatprep.subr.mxu0 0.0
        %3266 = vmatpush1.xpose.msra.mxu0 0.0
        %3267 = vmatprep.subr.mxu0 0.0
        %3268 = vmatpush1.xpose.msra.mxu0 0.0
        %3269 = vmatprep.subr.mxu0 0.0
        %3270 = vmatpush1.xpose.msra.mxu0 0.0
        %3271 = vmatprep.subr.mxu0 0.0
        %3272 = vmatpush1.xpose.msra.mxu0 0.0
        %3273 = vmatprep.subr.mxu0 0.0
        %3274 = vmatpush1.xpose.msra.mxu0 0.0
        %3275 = vmatprep.subr.mxu0 0.0
        %3276 = vmatpush1.xpose.msra.mxu0 0.0
        %3277 = vmatprep.subr.mxu0 0.0
        %3278 = vmatpush1.xpose.msra.mxu0 0.0
        %3279 = vmatprep.subr.mxu0 0.0
        %3280 = vmatpush1.xpose.msra.mxu0 0.0
        %3281 = vmatprep.subr.mxu0 0.0
        %3282 = vmatpush1.xpose.msra.mxu0 0.0
        %3283 = vmatprep.subr.mxu0 0.0
        %3284 = vmatpush1.xpose.msra.mxu0 0.0
        %3285 = vmatprep.subr.mxu0 0.0
        %3286 = vmatpush1.xpose.msra.mxu0 0.0
        %3287 = vmatprep.subr.mxu0 0.0
        %3288 = vmatpush1.xpose.msra.mxu0 0.0
        %3289 = vmatprep.subr.mxu0 0.0
        %3290 = vmatpush1.xpose.msra.mxu0 0.0
        %3291 = vmatprep.subr.mxu0 0.0
        %3292 = vmatpush1.xpose.msra.mxu0 0.0
        %3293 = vmatprep.subr.mxu0 0.0
        %3294 = vmatpush1.xpose.msra.mxu0 0.0
        %3295 = vmatprep.subr.mxu0 0.0
        %3296 = vmatpush1.xpose.msra.mxu0 0.0
        %3297 = vmatprep.subr.mxu0 0.0
        %3298 = vmatpush1.xpose.msra.mxu0 0.0
        %3299 = vmatprep.subr.mxu0 0.0
        %3300 = vmatpush1.xpose.msra.mxu0 0.0
        %3301 = vmatprep.subr.mxu0 0.0
        %3302 = vmatpush1.xpose.msra.mxu0 0.0
        %3303 = vmatprep.subr.mxu0 0.0
        %3304 = vmatpush1.xpose.msra.mxu0 0.0
        %3305 = vmatprep.subr.mxu0 0.0
        %3306 = vmatpush1.xpose.msra.mxu0 0.0
        %3307 = vmatprep.subr.mxu0 0.0
        %3308 = vmatpush1.xpose.msra.mxu0 0.0
        %3309 = vmatprep.mubr.f32.mxu0 0.0
        %3310 = vmatmul.mubr.f32.gmra.mrb[0].mxu0 %v3239
        %v3311 = vpop.f32.mrb[0].mxu0
        %v3312 = vadd.f32 0.0, %v3311
        %v3313 = vpop.f32.mrb[0].mxu0
        %3314 = vdwg.mxu0
        %v3315 = vsel %vm755, %v3312, -inf
        %3316 = vmax.xlane.f32.xlu0 %v3315
        %v3317 = vpop.xlane.xlu0 %3316
        %v3318 = vsub.f32 %v3312, %v3317
        %v3319 = vmul.f32 %v3318, 1.442695
        %v3320 = vpow.pop %v3319
        %v3321 = vsel %vm755, %v3320, 0.0
        %3322 = vadd.xlane.f32.xlu0 %v3321
        %v3323 = vpop.xlane.xlu0 %3322
        %v3324 = vrcp.pop %v3323
        %v3325 = vmul.f32 %v3320, %v3324
        %3326 = vrot.lane.b32.xlu0 %v2706, 72
        %v3327 = vpop.permute.xlu0 %3326
        %3328 = vrot.lane.b32.xlu0 %v2711, 72
        %v3329 = vpop.permute.xlu0 %3328
        %v3333 = vsel %vm755, %v3325, 0
        %3335 = vmatprep.subr.mxu0 0.0
        %3336 = vmatpush1.msra.mxu0 %v3327
        %3337 = vmatprep.subr.mxu0 0.0
        %3338 = vmatpush1.msra.mxu0 %v3329
        %3339 = vmatprep.subr.mxu0 0.0
        %3340 = vmatpush1.msra.mxu0 0.0
        %3341 = vmatprep.subr.mxu0 0.0
        %3342 = vmatpush1.msra.mxu0 0.0
        %3343 = vmatprep.subr.mxu0 0.0
        %3344 = vmatpush1.msra.mxu0 0.0
        %3345 = vmatprep.subr.mxu0 0.0
        %3346 = vmatpush1.msra.mxu0 0.0
        %3347 = vmatprep.subr.mxu0 0.0
        %3348 = vmatpush1.msra.mxu0 0.0
        %3349 = vmatprep.subr.mxu0 0.0
        %3350 = vmatpush1.msra.mxu0 0.0
        %3351 = vmatprep.subr.mxu0 0.0
        %3352 = vmatpush1.msra.mxu0 0.0
        %3353 = vmatprep.subr.mxu0 0.0
        %3354 = vmatpush1.msra.mxu0 0.0
        %3355 = vmatprep.subr.mxu0 0.0
        %3356 = vmatpush1.msra.mxu0 0.0
        %3357 = vmatprep.subr.mxu0 0.0
        %3358 = vmatpush1.msra.mxu0 0.0
        %3359 = vmatprep.subr.mxu0 0.0
        %3360 = vmatpush1.msra.mxu0 0.0
        %3361 = vmatprep.subr.mxu0 0.0
        %3362 = vmatpush1.msra.mxu0 0.0
        %3363 = vmatprep.subr.mxu0 0.0
        %3364 = vmatpush1.msra.mxu0 0.0
        %3365 = vmatprep.subr.mxu0 0.0
        %3366 = vmatpush1.msra.mxu0 0.0
        %3367 = vmatprep.subr.mxu0 0.0
        %3368 = vmatpush1.msra.mxu0 0.0
        %3369 = vmatprep.subr.mxu0 0.0
        %3370 = vmatpush1.msra.mxu0 0.0
        %3371 = vmatprep.subr.mxu0 0.0
        %3372 = vmatpush1.msra.mxu0 0.0
        %3373 = vmatprep.subr.mxu0 0.0
        %3374 = vmatpush1.msra.mxu0 0.0
        %3375 = vmatprep.subr.mxu0 0.0
        %3376 = vmatpush1.msra.mxu0 0.0
        %3377 = vmatprep.subr.mxu0 0.0
        %3378 = vmatpush1.msra.mxu0 0.0
        %3379 = vmatprep.subr.mxu0 0.0
        %3380 = vmatpush1.msra.mxu0 0.0
        %3381 = vmatprep.subr.mxu0 0.0
        %3382 = vmatpush1.msra.mxu0 0.0
        %3383 = vmatprep.subr.mxu0 0.0
        %3384 = vmatpush1.msra.mxu0 0.0
        %3385 = vmatprep.subr.mxu0 0.0
        %3386 = vmatpush1.msra.mxu0 0.0
        %3387 = vmatprep.subr.mxu0 0.0
        %3388 = vmatpush1.msra.mxu0 0.0
        %3389 = vmatprep.subr.mxu0 0.0
        %3390 = vmatpush1.msra.mxu0 0.0
        %3391 = vmatprep.subr.mxu0 0.0
        %3392 = vmatpush1.msra.mxu0 0.0
        %3393 = vmatprep.subr.mxu0 0.0
        %3394 = vmatpush1.msra.mxu0 0.0
        %3395 = vmatprep.subr.mxu0 0.0
        %3396 = vmatpush1.msra.mxu0 0.0
        %3397 = vmatprep.subr.mxu0 0.0
        %3398 = vmatpush1.msra.mxu0 0.0
        %3399 = vmatprep.mubr.f32.mxu0 0.0
        %3400 = vmatmul.mubr.f32.gmra.mrb[0].mxu0 %v3333
        %v3401 = vpop.f32.mrb[0].mxu0
        %v3402 = vadd.f32 0.0, %v3401
        %v3403 = vpop.f32.mrb[0].mxu0
        %3404 = vdwg.mxu0
        %3406 = vrot.lane.b32.xlu0 %v3058, 8
        %v3407 = vpop.permute.xlu0 %3406
        %3410 = vrot.lane.b32.xlu0 %v3230, 16
        %v3411 = vpop.permute.xlu0 %3410
        %3414 = vrot.lane.b32.xlu0 %v3402, 24
        %v3415 = vpop.permute.xlu0 %3414
        %v3417 = vsel %vm675, %v2886, %v3407
        %v3418 = vsel %vm755, %v3417, %v3411
        %v3419 = vsel %vm1376, %v3418, %v3415
        %v3420 = vlaneseq
        %v3421 = vshrl.u32 %v3420, 7
        %v3422 = vsub.s32 0, %v3421
        %v3423 = vrot.slane %v2719, %v3422
        %v3425 = vsel %vm504, %v3419, 0
        %3427 = vmatprep.subr.mxu0 0.0
        %3428 = vmatpush1.msra.mxu0 %v2715
        %3429 = vmatprep.subr.mxu0 0.0
        %3430 = vmatpush1.msra.mxu0 %v2716
        %3431 = vmatprep.subr.mxu0 0.0
        %3432 = vmatpush1.msra.mxu0 %v2717
        %3433 = vmatprep.subr.mxu0 0.0
        %3434 = vmatpush1.msra.mxu0 %v2718
        %3435 = vmatprep.subr.mxu0 0.0
        %3436 = vmatpush1.msra.mxu0 0.0
        %3437 = vmatprep.subr.mxu0 0.0
        %3438 = vmatpush1.msra.mxu0 0.0
        %3439 = vmatprep.subr.mxu0 0.0
        %3440 = vmatpush1.msra.mxu0 0.0
        %3441 = vmatprep.subr.mxu0 0.0
        %3442 = vmatpush1.msra.mxu0 0.0
        %3443 = vmatprep.subr.mxu0 0.0
        %3444 = vmatpush1.msra.mxu0 0.0
        %3445 = vmatprep.subr.mxu0 0.0
        %3446 = vmatpush1.msra.mxu0 0.0
        %3447 = vmatprep.subr.mxu0 0.0
        %3448 = vmatpush1.msra.mxu0 0.0
        %3449 = vmatprep.subr.mxu0 0.0
        %3450 = vmatpush1.msra.mxu0 0.0
        %3451 = vmatprep.subr.mxu0 0.0
        %3452 = vmatpush1.msra.mxu0 0.0
        %3453 = vmatprep.subr.mxu0 0.0
        %3454 = vmatpush1.msra.mxu0 0.0
        %3455 = vmatprep.subr.mxu0 0.0
        %3456 = vmatpush1.msra.mxu0 0.0
        %3457 = vmatprep.subr.mxu0 0.0
        %3458 = vmatpush1.msra.mxu0 0.0
        %3459 = vmatprep.subr.mxu0 0.0
        %3460 = vmatpush1.msra.mxu0 0.0
        %3461 = vmatprep.subr.mxu0 0.0
        %3462 = vmatpush1.msra.mxu0 0.0
        %3463 = vmatprep.subr.mxu0 0.0
        %3464 = vmatpush1.msra.mxu0 0.0
        %3465 = vmatprep.subr.mxu0 0.0
        %3466 = vmatpush1.msra.mxu0 0.0
        %3467 = vmatprep.subr.mxu0 0.0
        %3468 = vmatpush1.msra.mxu0 0.0
        %3469 = vmatprep.subr.mxu0 0.0
        %3470 = vmatpush1.msra.mxu0 0.0
        %3471 = vmatprep.subr.mxu0 0.0
        %3472 = vmatpush1.msra.mxu0 0.0
        %3473 = vmatprep.subr.mxu0 0.0
        %3474 = vmatpush1.msra.mxu0 0.0
        %3475 = vmatprep.subr.mxu0 0.0
        %3476 = vmatpush1.msra.mxu0 0.0
        %3477 = vmatprep.subr.mxu0 0.0
        %3478 = vmatpush1.msra.mxu0 0.0
        %3479 = vmatprep.subr.mxu0 0.0
        %3480 = vmatpush1.msra.mxu0 0.0
        %3481 = vmatprep.subr.mxu0 0.0
        %3482 = vmatpush1.msra.mxu0 0.0
        %3483 = vmatprep.subr.mxu0 0.0
        %3484 = vmatpush1.msra.mxu0 0.0
        %3485 = vmatprep.subr.mxu0 0.0
        %3486 = vmatpush1.msra.mxu0 0.0
        %3487 = vmatprep.subr.mxu0 0.0
        %3488 = vmatpush1.msra.mxu0 0.0
        %3489 = vmatprep.subr.mxu0 0.0
        %3490 = vmatpush1.msra.mxu0 0.0
        %3491 = vmatprep.mubr.f32.mxu0 0.0
        %3492 = vmatmul.mubr.f32.gmra.mrb[0].mxu0 %v3425
        %v3493 = vpop.f32.mrb[0].mxu0
        %v3494 = vadd.f32 %v3423, %v3493
        %v3495 = vpop.f32.mrb[0].mxu0
        %3496 = vdwg.mxu0
        %v3497 = vadd.f32 %v2544, %v3494
        %v3498 = vld [vmem:[%s1766 + $0x5] sm:$0x1]
        %v3499 = vld [vmem:[%s1766 + $0x6] sm:$0x1]
        %v3500 = vsel %vm504, %v3497, 0.0
        %3501 = vadd.xlane.f32.xlu0 %v3500
        %v3502 = vpop.xlane.xlu0 %3501
        %v3503 = vmul.f32 %v3502, %v1461
        %v3504 = vsub.f32 %v3497, %v3503
        %v3505 = vmul.f32 %v3504, %v3504
        %v3506 = vsel %vm504, %v3505, 0.0
        %3507 = vadd.xlane.f32.xlu0 %v3506
        %v3508 = vpop.xlane.xlu0 %3507
        %v3509 = vmul.f32 %v3508, %v1461
        %v3510 = vadd.f32 %v3509, 1e-05
        %v3511 = vrsqrt.pop %v3510
        %v3512 = vmul.f32 %v3504, %v3511
        %v3513 = vlaneseq
        %v3514 = vshrl.u32 %v3513, 7
        %v3515 = vsub.s32 0, %v3514
        %v3516 = vrot.slane %v3498, %v3515
        %v3517 = vmul.f32 %v3512, %v3516
        %v3518 = vlaneseq
        %v3519 = vshrl.u32 %v3518, 7
        %v3520 = vsub.s32 0, %v3519
        %v3521 = vrot.slane %v3499, %v3520
        %v3522 = vadd.f32 %v3517, %v3521
        %s3523 = scalar_lea.vmem %s8, 32
        %v3524 = vld [vmem:[%s3523] sm:$0xff]
        %v3525 = vld [vmem:[%s3523 + $0x8] sm:$0xff]
        %v3526 = vld [vmem:[%s3523 + $0x10] sm:$0xff]
        %v3527 = vld [vmem:[%s3523 + $0x18] sm:$0xff]
        %v3528 = vld [vmem:[%s2630 + $0x1] sm:$0x1]
        %v3529 = vlaneseq
        %v3530 = vshrl.u32 %v3529, 7
        %v3531 = vsub.s32 0, %v3530
        %v3532 = vrot.slane %v3528, %v3531
        %v3534 = vsel %vm504, %v3522, 0
        %3536 = vmatprep.subr.mxu0 0.0
        %3537 = vmatpush1.msra.mxu0 %v3524
        %3538 = vmatprep.subr.mxu0 0.0
        %3539 = vmatpush1.msra.mxu0 %v3525
        %3540 = vmatprep.subr.mxu0 0.0
        %3541 = vmatpush1.msra.mxu0 %v3526
        %3542 = vmatprep.subr.mxu0 0.0
        %3543 = vmatpush1.msra.mxu0 %v3527
        %3544 = vmatprep.subr.mxu0 0.0
        %3545 = vmatpush1.msra.mxu0 0.0
        %3546 = vmatprep.subr.mxu0 0.0
        %3547 = vmatpush1.msra.mxu0 0.0
        %3548 = vmatprep.subr.mxu0 0.0
        %3549 = vmatpush1.msra.mxu0 0.0
        %3550 = vmatprep.subr.mxu0 0.0
        %3551 = vmatpush1.msra.mxu0 0.0
        %3552 = vmatprep.subr.mxu0 0.0
        %3553 = vmatpush1.msra.mxu0 0.0
        %3554 = vmatprep.subr.mxu0 0.0
        %3555 = vmatpush1.msra.mxu0 0.0
        %3556 = vmatprep.subr.mxu0 0.0
        %3557 = vmatpush1.msra.mxu0 0.0
        %3558 = vmatprep.subr.mxu0 0.0
        %3559 = vmatpush1.msra.mxu0 0.0
        %3560 = vmatprep.subr.mxu0 0.0
        %3561 = vmatpush1.msra.mxu0 0.0
        %3562 = vmatprep.subr.mxu0 0.0
        %3563 = vmatpush1.msra.mxu0 0.0
        %3564 = vmatprep.subr.mxu0 0.0
        %3565 = vmatpush1.msra.mxu0 0.0
        %3566 = vmatprep.subr.mxu0 0.0
        %3567 = vmatpush1.msra.mxu0 0.0
        %3568 = vmatprep.subr.mxu0 0.0
        %3569 = vmatpush1.msra.mxu0 0.0
        %3570 = vmatprep.subr.mxu0 0.0
        %3571 = vmatpush1.msra.mxu0 0.0
        %3572 = vmatprep.subr.mxu0 0.0
        %3573 = vmatpush1.msra.mxu0 0.0
        %3574 = vmatprep.subr.mxu0 0.0
        %3575 = vmatpush1.msra.mxu0 0.0
        %3576 = vmatprep.subr.mxu0 0.0
        %3577 = vmatpush1.msra.mxu0 0.0
        %3578 = vmatprep.subr.mxu0 0.0
        %3579 = vmatpush1.msra.mxu0 0.0
        %3580 = vmatprep.subr.mxu0 0.0
        %3581 = vmatpush1.msra.mxu0 0.0
        %3582 = vmatprep.subr.mxu0 0.0
        %3583 = vmatpush1.msra.mxu0 0.0
        %3584 = vmatprep.subr.mxu0 0.0
        %3585 = vmatpush1.msra.mxu0 0.0
        %3586 = vmatprep.subr.mxu0 0.0
        %3587 = vmatpush1.msra.mxu0 0.0
        %3588 = vmatprep.subr.mxu0 0.0
        %3589 = vmatpush1.msra.mxu0 0.0
        %3590 = vmatprep.subr.mxu0 0.0
        %3591 = vmatpush1.msra.mxu0 0.0
        %3592 = vmatprep.subr.mxu0 0.0
        %3593 = vmatpush1.msra.mxu0 0.0
        %3594 = vmatprep.subr.mxu0 0.0
        %3595 = vmatpush1.msra.mxu0 0.0
        %3596 = vmatprep.subr.mxu0 0.0
        %3597 = vmatpush1.msra.mxu0 0.0
        %3598 = vmatprep.subr.mxu0 0.0
        %3599 = vmatpush1.msra.mxu0 0.0
        %3600 = vmatprep.mubr.f32.mxu0 0.0
        %3601 = vmatmul.mubr.f32.gmra.mrb[0].mxu0 %v3534
        %v3602 = vpop.f32.mrb[0].mxu0
        %v3603 = vadd.f32 %v3532, %v3602
        %v3604 = vpop.f32.mrb[0].mxu0
        %3605 = vdwg.mxu0
        %v3606 = vmax.f32 %v3603, 0.0
        %s3607 = scalar_lea.vmem %s9, 64
        %v3608 = vld [vmem:[%s3607] sm:$0xff]
        %v3609 = vld [vmem:[%s3607 + $0x8] sm:$0xff]
        %v3610 = vld [vmem:[%s3607 + $0x10] sm:$0xff]
        %v3611 = vld [vmem:[%s3607 + $0x18] sm:$0xff]
        %v3612 = vld [vmem:[%s3607 + $0x20] sm:$0xff]
        %v3613 = vld [vmem:[%s3607 + $0x28] sm:$0xff]
        %v3614 = vld [vmem:[%s3607 + $0x30] sm:$0xff]
        %v3615 = vld [vmem:[%s3607 + $0x38] sm:$0xff]
        %v3616 = vld [vmem:[%s1766 + $0x7] sm:$0x1]
        %v3617 = vlaneseq
        %v3618 = vshrl.u32 %v3617, 7
        %v3619 = vsub.s32 0, %v3618
        %v3620 = vrot.slane %v3616, %v3619
        %v3622 = vsel %vm1578, %v3606, 0
        %3624 = vmatprep.subr.mxu0 0.0
        %3625 = vmatpush1.msra.mxu0 %v3608
        %3626 = vmatprep.subr.mxu0 0.0
        %3627 = vmatpush1.msra.mxu0 %v3609
        %3628 = vmatprep.subr.mxu0 0.0
        %3629 = vmatpush1.msra.mxu0 %v3610
        %3630 = vmatprep.subr.mxu0 0.0
        %3631 = vmatpush1.msra.mxu0 %v3611
        %3632 = vmatprep.subr.mxu0 0.0
        %3633 = vmatpush1.msra.mxu0 %v3612
        %3634 = vmatprep.subr.mxu0 0.0
        %3635 = vmatpush1.msra.mxu0 %v3613
        %3636 = vmatprep.subr.mxu0 0.0
        %3637 = vmatpush1.msra.mxu0 %v3614
        %3638 = vmatprep.subr.mxu0 0.0
        %3639 = vmatpush1.msra.mxu0 %v3615
        %3640 = vmatprep.subr.mxu0 0.0
        %3641 = vmatpush1.msra.mxu0 0.0
        %3642 = vmatprep.subr.mxu0 0.0
        %3643 = vmatpush1.msra.mxu0 0.0
        %3644 = vmatprep.subr.mxu0 0.0
        %3645 = vmatpush1.msra.mxu0 0.0
        %3646 = vmatprep.subr.mxu0 0.0
        %3647 = vmatpush1.msra.mxu0 0.0
        %3648 = vmatprep.subr.mxu0 0.0
        %3649 = vmatpush1.msra.mxu0 0.0
        %3650 = vmatprep.subr.mxu0 0.0
        %3651 = vmatpush1.msra.mxu0 0.0
        %3652 = vmatprep.subr.mxu0 0.0
        %3653 = vmatpush1.msra.mxu0 0.0
        %3654 = vmatprep.subr.mxu0 0.0
        %3655 = vmatpush1.msra.mxu0 0.0
        %3656 = vmatprep.subr.mxu0 0.0
        %3657 = vmatpush1.msra.mxu0 0.0
        %3658 = vmatprep.subr.mxu0 0.0
        %3659 = vmatpush1.msra.mxu0 0.0
        %3660 = vmatprep.subr.mxu0 0.0
        %3661 = vmatpush1.msra.mxu0 0.0
        %3662 = vmatprep.subr.mxu0 0.0
        %3663 = vmatpush1.msra.mxu0 0.0
        %3664 = vmatprep.subr.mxu0 0.0
        %3665 = vmatpush1.msra.mxu0 0.0
        %3666 = vmatprep.subr.mxu0 0.0
        %3667 = vmatpush1.msra.mxu0 0.0
        %3668 = vmatprep.subr.mxu0 0.0
        %3669 = vmatpush1.msra.mxu0 0.0
        %3670 = vmatprep.subr.mxu0 0.0
        %3671 = vmatpush1.msra.mxu0 0.0
        %3672 = vmatprep.subr.mxu0 0.0
        %3673 = vmatpush1.msra.mxu0 0.0
        %3674 = vmatprep.subr.mxu0 0.0
        %3675 = vmatpush1.msra.mxu0 0.0
        %3676 = vmatprep.subr.mxu0 0.0
        %3677 = vmatpush1.msra.mxu0 0.0
        %3678 = vmatprep.subr.mxu0 0.0
        %3679 = vmatpush1.msra.mxu0 0.0
        %3680 = vmatprep.subr.mxu0 0.0
        %3681 = vmatpush1.msra.mxu0 0.0
        %3682 = vmatprep.subr.mxu0 0.0
        %3683 = vmatpush1.msra.mxu0 0.0
        %3684 = vmatprep.subr.mxu0 0.0
        %3685 = vmatpush1.msra.mxu0 0.0
        %3686 = vmatprep.subr.mxu0 0.0
        %3687 = vmatpush1.msra.mxu0 0.0
        %3688 = vmatprep.mubr.f32.mxu0 0.0
        %3689 = vmatmul.mubr.f32.gmra.mrb[0].mxu0 %v3622
        %v3690 = vpop.f32.mrb[0].mxu0
        %v3691 = vadd.f32 %v3620, %v3690
        %v3692 = vpop.f32.mrb[0].mxu0
        %3693 = vdwg.mxu0
        %v3694 = vadd.f32 %v3522, %v3691
        %v3695 = vsel %vm504, %v3694, 0.0
        %3696 = vadd.xlane.f32.xlu0 %v3695
        %v3697 = vpop.xlane.xlu0 %3696
        %v3698 = vmul.f32 %v3697, %v1461
        %v3699 = vsub.f32 %v3694, %v3698
        %v3700 = vmul.f32 %v3699, %v3699
        %v3701 = vsel %vm504, %v3700, 0.0
        %3702 = vadd.xlane.f32.xlu0 %v3701
        %v3703 = vpop.xlane.xlu0 %3702
        %v3704 = vmul.f32 %v3703, %v1461
        %v3705 = vadd.f32 %v3704, 1e-05
        %v3706 = vrsqrt.pop %v3705
        %v3707 = vmul.f32 %v3699, %v3706
        %v3708 = vld [vmem:[%s12] sm:$0xff]
        %v3709 = vld [vmem:[%s12 + $0x8] sm:$0xff]
        %v3710 = vld [vmem:[%s12 + $0x10] sm:$0xff]
        %v3711 = vld [vmem:[%s12 + $0x18] sm:$0xff]
        %v3712 = vld [vmem:[%s13] sm:$0x1]
        %v3714 = vlaneseq
        %v3715 = vshrl.u32 %v3714, 7
        %v3716 = vsub.s32 0, %v3715
        %v3717 = vrot.slane %v3712, %v3716
        %v3720 = vsel %vm504, %v3707, 0
        %3722 = vmatprep.subr.mxu0 0.0
        %3723 = vmatpush1.msra.mxu0 %v3708
        %3724 = vmatprep.subr.mxu0 0.0
        %3725 = vmatpush1.msra.mxu0 %v3709
        %3726 = vmatprep.subr.mxu0 0.0
        %3727 = vmatpush1.msra.mxu0 %v3710
        %3728 = vmatprep.subr.mxu0 0.0
        %3729 = vmatpush1.msra.mxu0 %v3711
        %3730 = vmatprep.subr.mxu0 0.0
        %3731 = vmatpush1.msra.mxu0 0.0
        %3732 = vmatprep.subr.mxu0 0.0
        %3733 = vmatpush1.msra.mxu0 0.0
        %3734 = vmatprep.subr.mxu0 0.0
        %3735 = vmatpush1.msra.mxu0 0.0
        %3736 = vmatprep.subr.mxu0 0.0
        %3737 = vmatpush1.msra.mxu0 0.0
        %3738 = vmatprep.subr.mxu0 0.0
        %3739 = vmatpush1.msra.mxu0 0.0
        %3740 = vmatprep.subr.mxu0 0.0
        %3741 = vmatpush1.msra.mxu0 0.0
        %3742 = vmatprep.subr.mxu0 0.0
        %3743 = vmatpush1.msra.mxu0 0.0
        %3744 = vmatprep.subr.mxu0 0.0
        %3745 = vmatpush1.msra.mxu0 0.0
        %3746 = vmatprep.subr.mxu0 0.0
        %3747 = vmatpush1.msra.mxu0 0.0
        %3748 = vmatprep.subr.mxu0 0.0
        %3749 = vmatpush1.msra.mxu0 0.0
        %3750 = vmatprep.subr.mxu0 0.0
        %3751 = vmatpush1.msra.mxu0 0.0
        %3752 = vmatprep.subr.mxu0 0.0
        %3753 = vmatpush1.msra.mxu0 0.0
        %3754 = vmatprep.subr.mxu0 0.0
        %3755 = vmatpush1.msra.mxu0 0.0
        %3756 = vmatprep.subr.mxu0 0.0
        %3757 = vmatpush1.msra.mxu0 0.0
        %3758 = vmatprep.subr.mxu0 0.0
        %3759 = vmatpush1.msra.mxu0 0.0
        %3760 = vmatprep.subr.mxu0 0.0
        %3761 = vmatpush1.msra.mxu0 0.0
        %3762 = vmatprep.subr.mxu0 0.0
        %3763 = vmatpush1.msra.mxu0 0.0
        %3764 = vmatprep.subr.mxu0 0.0
        %3765 = vmatpush1.msra.mxu0 0.0
        %3766 = vmatprep.subr.mxu0 0.0
        %3767 = vmatpush1.msra.mxu0 0.0
        %3768 = vmatprep.subr.mxu0 0.0
        %3769 = vmatpush1.msra.mxu0 0.0
        %3770 = vmatprep.subr.mxu0 0.0
        %3771 = vmatpush1.msra.mxu0 0.0
        %3772 = vmatprep.subr.mxu0 0.0
        %3773 = vmatpush1.msra.mxu0 0.0
        %3774 = vmatprep.subr.mxu0 0.0
        %3775 = vmatpush1.msra.mxu0 0.0
        %3776 = vmatprep.subr.mxu0 0.0
        %3777 = vmatpush1.msra.mxu0 0.0
        %3778 = vmatprep.subr.mxu0 0.0
        %3779 = vmatpush1.msra.mxu0 0.0
        %3780 = vmatprep.subr.mxu0 0.0
        %3781 = vmatpush1.msra.mxu0 0.0
        %3782 = vmatprep.subr.mxu0 0.0
        %3783 = vmatpush1.msra.mxu0 0.0
        %3784 = vmatprep.subr.mxu0 0.0
        %3785 = vmatpush1.msra.mxu0 0.0
        %3786 = vmatprep.mubr.f32.mxu0 0.0
        %3787 = vmatmul.mubr.f32.gmra.mrb[0].mxu0 %v3720
        %v3788 = vpop.f32.mrb[0].mxu0
        %v3789 = vadd.f32 %v3717, %v3788
        %v3790 = vpop.f32.mrb[0].mxu0
        %3791 = vdwg.mxu0
        %vm3792 = vcmask 97280
        %3793 = vst.msk [vmem:[%s486] sm:$0xff] %vm3792, %v3789
        %s3794 = sand.u32 %s337, 1
        %s3795 = scalar_lea.sflag [#allocation4], %s3794
        %s3796 = sand.u32 %s337, 1
        %s3797 = smul.addr %s3796, 8
        %s3798 = scalar_lea.vmem [#allocation7], %s3797
        // Predicated region
        $region85: #{tpu_custom_call.1} parent=75 // pred_check
          %p3799 = pneg %p347
        $region86: #{tpu_custom_call.1} parent=75 // pred_check_branch
          %3801 = sbr.rel (%p3799) target = $region88
        $region87: #{tpu_custom_call.1} parent=75 // pred_region
          %s3803 = ssub.s32 128, 128
          %3804 = vsyncadd %s3795, %s3803
          %s3805 = smul.addr %s30, 128
          %s3806 = scalar_lea.hbm %s14, %s3805
          %s3808 = sshll.u32 %s3798, 4
          %s3809 = int_to_ptr.vmem [resolvable:$true] %s3808
          %3811 = dma.vmem_to_hbm [thread:$0]  %s3809, 128, %s3806, %s3795
        $region88: #{tpu_custom_call.1} parent=75 // pred_fallthru
          _
      $region76: #{tpu_custom_call.1} parent=5 // pred_fallthru
        _
      %p3812 = scmp.le.s32.totalorder 2, %s25
      // Predicated region
      $region89: #{tpu_custom_call.1} parent=5 // pred_check
        %p3813 = pneg %p3812
      $region90: #{tpu_custom_call.1} parent=5 // pred_check_branch
        %3815 = sbr.rel (%p3813) target = $region92
      $region91: #{tpu_custom_call.1} parent=5 // pred_region
        %s3816 = ssub.s32 %s25, 2
        // Predicated region
        $region93: #{tpu_custom_call.1} parent=91 // pred_check
          %p3817 = pneg %p353
        $region94: #{tpu_custom_call.1} parent=91 // pred_check_branch
          %3819 = sbr.rel (%p3817) target = $region96
        $region95: #{tpu_custom_call.1} parent=91 // pred_region
          %s3820 = sand.u32 %s338, 1
          %s3821 = scalar_lea.sflag [#allocation4], %s3820
          %s3822 = sand.u32 %s338, 1
          %s3823 = smul.addr %s3822, 8
          %s3824 = scalar_lea.vmem [#allocation7], %s3823
          %3825 = dma.done %s3821, 128
        $region96: #{tpu_custom_call.1} parent=91 // pred_fallthru
          _
      $region92: #{tpu_custom_call.1} parent=5 // pred_fallthru
        _
    $region6: #{tpu_custom_call.1} parent=1 // loop_footer
      %s29 = sadd.s32 1, %s25
    $region7: #{tpu_custom_call.1} parent=1 // loop_footer_branch
      %24 = sbr.rel target = $region3
    $region8: #{tpu_custom_call.1} parent=1 // loop_exit
      _
    %3826 = vsyncpa [#allocation3], 1
    %s3827 = scalar_lea.sflag [#allocation3], 1
    %3828 = vsyncpa %s3827, 1
    %3829 = vsyncpa [#allocation6], 1
    %3830 = vsyncpa [#allocation4], 1
    %s3831 = scalar_lea.sflag [#allocation4], 1
    %3832 = vsyncpa %s3831, 1

</llo_original>
